<compile_context>
chip_gen: v5e
topology: v5e:2x2
jax: 0.10.0
libtpu: 0.0.40
codegen_flags: <defaults>
</compile_context>

<pallas_src>
import functools

import jax
import jax.numpy as jnp
from jax.experimental import pallas as pl
from jax.experimental.pallas import tpu as pltpu


def _double_conv_kernel(x_ref, w1_ref, b1_ref, w2_ref, b2_ref, o_ref, h1_ref,
                        *, W, Mb, C_mid, PAD):
    # x_ref : (Mb + 2*PAD, C_in)   one image, HW-flattened, zero halo rows
    # w*_ref: (9, cin, cout)       3x3 taps with BN scale folded in
    # b*_ref: (1, cout)            folded BN shift
    # o_ref : (Mb, C_out)
    # h1_ref: (Mb + 2*PAD, C_mid)  VMEM scratch holding the conv1 activation
    xpos = jax.lax.broadcasted_iota(jnp.int32, (Mb, 1), 0) % W
    left_ok = xpos >= 1           # rows where a dx == -1 tap is in-image
    right_ok = xpos <= W - 2      # rows where a dx == +1 tap is in-image
    taps = [(dy, dx) for dy in (-1, 0, 1) for dx in (-1, 0, 1)]

    def conv3x3(src_ref, w_ref):
        # 9 accumulating MXU matmuls on row-shifted slabs of the flat image.
        # y-boundary taps read the zero halo rows; only x-boundary taps need
        # an explicit mask (column wrap-around between adjacent image rows).
        acc = None
        for t, (dy, dx) in enumerate(taps):
            start = PAD + dy * W + dx              # static python int >= 0
            slab = src_ref[pl.ds(start, Mb), :]    # (Mb, cin) row-shifted tap
            if dx == -1:
                slab = jnp.where(left_ok, slab, 0.0)
            elif dx == 1:
                slab = jnp.where(right_ok, slab, 0.0)
            part = jnp.dot(slab, w_ref[t], preferred_element_type=jnp.float32)
            acc = part if acc is None else acc + part
        return acc

    # conv1 + folded BN1 + ReLU -> padded VMEM scratch (zero halo for conv2).
    halo = jnp.zeros((PAD, C_mid), jnp.float32)
    h1_ref[pl.ds(0, PAD), :] = halo
    h1_ref[pl.ds(PAD + Mb, PAD), :] = halo
    y1 = conv3x3(x_ref, w1_ref) + b1_ref[...]
    h1_ref[pl.ds(PAD, Mb), :] = jnp.maximum(y1, 0.0)   # Dropout2d == identity (eval)

    # conv2 + folded BN2 + ReLU -> output.
    y2 = conv3x3(h1_ref, w2_ref) + b2_ref[...]
    o_ref[...] = jnp.maximum(y2, 0.0).astype(o_ref.dtype)


def double_conv(x_nchw, params, *, eps=1e-5):
    """x_nchw: (B, C_in, H, W).  params: HWIO conv weights + BN affine/stats."""
    B, C_in, H, W = x_nchw.shape
    w1 = params["w1"]                      # (3, 3, C_in,  C_mid)  HWIO
    w2 = params["w2"]                      # (3, 3, C_mid, C_out)  HWIO
    C_mid = w1.shape[-1]
    C_out = w2.shape[-1]

    # Fold eval-mode BatchNorm into the conv weights / bias:
    #   bn(conv(x; W)) = conv(x; W*s) + (beta - mean*s),  s = gamma/sqrt(var+eps)
    s1 = params["g1"] / jnp.sqrt(params["v1"] + eps)
    b1 = (params["be1"] - params["m1"] * s1).reshape(1, C_mid)
    w1f = (w1 * s1).reshape(9, C_in, C_mid)
    s2 = params["g2"] / jnp.sqrt(params["v2"] + eps)
    b2 = (params["be2"] - params["m2"] * s2).reshape(1, C_out)
    w2f = (w2 * s2).reshape(9, C_mid, C_out)

    # Per-image flat layout (H*W, C) with channels on lanes.  PAD zero halo
    # rows (rounded up to a multiple of 8 sublanes so every store is aligned)
    # absorb the y-boundary taps of the 3x3 stencil.
    Mb = H * W
    PAD = -(-(W + 1) // 8) * 8
    x_flat = jnp.transpose(x_nchw, (0, 2, 3, 1)).reshape(B, Mb, C_in)
    x_pad = jnp.pad(x_flat, ((0, 0), (PAD, PAD), (0, 0)))

    kernel = functools.partial(_double_conv_kernel, W=W, Mb=Mb,
                               C_mid=C_mid, PAD=PAD)

    out = pl.pallas_call(
        kernel,
        out_shape=jax.ShapeDtypeStruct((B, Mb, C_out), x_nchw.dtype),
        grid_spec=pltpu.PrefetchScalarGridSpec(
            num_scalar_prefetch=0,
            grid=(B,),   # one image per grid step; batch axis is parallel
            in_specs=[
                pl.BlockSpec((None, Mb + 2 * PAD, C_in), lambda b: (b, 0, 0)),  # x
                pl.BlockSpec((9, C_in, C_mid), lambda b: (0, 0, 0)),   # w1 (BN folded)
                pl.BlockSpec((1, C_mid), lambda b: (0, 0)),            # b1
                pl.BlockSpec((9, C_mid, C_out), lambda b: (0, 0, 0)),  # w2 (BN folded)
                pl.BlockSpec((1, C_out), lambda b: (0, 0)),            # b2
            ],
            out_specs=pl.BlockSpec((None, Mb, C_out), lambda b: (b, 0, 0)),
            scratch_shapes=[pltpu.VMEM((Mb + 2 * PAD, C_mid), jnp.float32)],
        ),
        compiler_params=pltpu.CompilerParams(
            dimension_semantics=("parallel",)),
    )(x_pad, w1f, b1, w2f, b2)

    return out.reshape(B, H, W, C_out).transpose(0, 3, 1, 2)


def _reference(x_nchw, params, *, eps=1e-5):
    """Plain-JAX (XLA conv) replica of eval-mode DoubleConv for verification."""
    x = jnp.transpose(x_nchw, (0, 2, 3, 1))          # NHWC

    def block(x, w, gamma, beta, mean, var):
        y = jax.lax.conv_general_dilated(
            x, w, window_strides=(1, 1), padding=((1, 1), (1, 1)),
            dimension_numbers=("NHWC", "HWIO", "NHWC"))
        y = gamma * (y - mean) / jnp.sqrt(var + eps) + beta
        return jnp.maximum(y, 0.0)                    # Dropout2d is identity (eval)

    y = block(x, params["w1"], params["g1"], params["be1"], params["m1"], params["v1"])
    y = block(y, params["w2"], params["g2"], params["be2"], params["m2"], params["v2"])
    return jnp.transpose(y, (0, 3, 1, 2))


if __name__ == "__main__":
    # Small shapes consistent with the module: in_channels=4, out_channels=8,
    # 16x16 spatial, batch=2, drop_out=0.0 (identity).
    B, C_in, C_out, H, W = 2, 4, 8, 16, 16

    key = jax.random.PRNGKey(0)
    ks = jax.random.split(key, 11)
    params = {
        "w1": 0.3 * jax.random.normal(ks[0], (3, 3, C_in, C_out), jnp.float32),
        "g1": 1.0 + 0.1 * jax.random.normal(ks[1], (C_out,), jnp.float32),
        "be1": 0.1 * jax.random.normal(ks[2], (C_out,), jnp.float32),
        "m1": 0.1 * jax.random.normal(ks[3], (C_out,), jnp.float32),
        "v1": jnp.abs(jax.random.normal(ks[4], (C_out,), jnp.float32)) + 0.5,
        "w2": 0.3 * jax.random.normal(ks[5], (3, 3, C_out, C_out), jnp.float32),
        "g2": 1.0 + 0.1 * jax.random.normal(ks[6], (C_out,), jnp.float32),
        "be2": 0.1 * jax.random.normal(ks[7], (C_out,), jnp.float32),
        "m2": 0.1 * jax.random.normal(ks[8], (C_out,), jnp.float32),
        "v2": jnp.abs(jax.random.normal(ks[9], (C_out,), jnp.float32)) + 0.5,
    }
    x = jax.random.normal(ks[10], (B, C_in, H, W), jnp.float32)

    out = double_conv(x, params)
    out = jax.block_until_ready(out)

    ref = _reference(x, params)
    assert out.shape == (B, C_out, H, W)
    assert jnp.allclose(out, ref, atol=1e-3, rtol=1e-3), "mismatch vs reference"

    print("KERNEL_OK")
</pallas_src>

<mosaic_0001>
module attributes {stable_mosaic.version = 11 : i64} {
  func.func @_double_conv_kernel(%arg0: i32, %arg1: memref<1x304x4xf32, #tpu.memory_space<vmem>>, %arg2: memref<9x4x8xf32, #tpu.memory_space<vmem>>, %arg3: memref<1x8xf32, #tpu.memory_space<vmem>>, %arg4: memref<9x8x8xf32, #tpu.memory_space<vmem>>, %arg5: memref<1x8xf32, #tpu.memory_space<vmem>>, %arg6: memref<1x256x8xf32, #tpu.memory_space<vmem>>, %arg7: memref<304x8xf32, #tpu.memory_space<vmem>>) attributes {dimension_semantics = [#tpu.dimension_semantics<parallel>], iteration_bounds = array<i64: 2>, scalar_prefetch = 0 : i64, scratch_operands = 1 : i64, tpu.core_type = #tpu.core_type<tc>, window_params = [{transform_indices = @transform_0, window_bounds = array<i64: 1, 304, 4>}, {pipeline_mode = #tpu.pipeline_mode<synchronous>, transform_indices = @transform_1, window_bounds = array<i64: 9, 4, 8>}, {pipeline_mode = #tpu.pipeline_mode<synchronous>, transform_indices = @transform_2, window_bounds = array<i64: 1, 8>}, {pipeline_mode = #tpu.pipeline_mode<synchronous>, transform_indices = @transform_3, window_bounds = array<i64: 9, 8, 8>}, {pipeline_mode = #tpu.pipeline_mode<synchronous>, transform_indices = @transform_4, window_bounds = array<i64: 1, 8>}, {transform_indices = @transform_5, window_bounds = array<i64: 1, 256, 8>}]} {
    %0 = tpu.iota {dimensions = array<i32: 0>} : vector<256x1xi32>
    %c16_i32 = arith.constant 16 : i32
    %c0_i32 = arith.constant 0 : i32
    %1 = arith.cmpi eq, %c16_i32, %c0_i32 : i32
    %c1_i32 = arith.constant 1 : i32
    %2 = arith.select %1, %c1_i32, %c16_i32 : i32
    %3 = vector.broadcast %2 : i32 to vector<256x1xi32>
    %4 = arith.remsi %0, %3 : vector<256x1xi32>
    %c0_i32_0 = arith.constant 0 : i32
    %5 = vector.broadcast %c0_i32_0 : i32 to vector<256x1xi32>
    %6 = arith.cmpi ne, %4, %5 : vector<256x1xi32>
    %c0_i32_1 = arith.constant 0 : i32
    %7 = vector.broadcast %c0_i32_1 : i32 to vector<256x1xi32>
    %8 = arith.cmpi slt, %4, %7 : vector<256x1xi32>
    %c0_i32_2 = arith.constant 0 : i32
    %9 = arith.cmpi slt, %2, %c0_i32_2 : i32
    %10 = vector.broadcast %9 : i1 to vector<256x1xi1>
    %11 = vector.broadcast %10 : vector<256x1xi1> to vector<256x1xi1>
    %12 = arith.xori %8, %11 : vector<256x1xi1>
    %13 = arith.andi %12, %6 : vector<256x1xi1>
    %14 = vector.broadcast %2 : i32 to vector<256x1xi32>
    %15 = arith.addi %4, %14 : vector<256x1xi32>
    %16 = arith.select %13, %15, %4 : vector<256x1xi1>, vector<256x1xi32>
    %c1_i32_3 = arith.constant 1 : i32
    %17 = vector.broadcast %c1_i32_3 : i32 to vector<256x1xi32>
    %18 = arith.cmpi sge, %16, %17 : vector<256x1xi32>
    %c14_i32 = arith.constant 14 : i32
    %19 = vector.broadcast %c14_i32 : i32 to vector<256x1xi32>
    %20 = arith.cmpi sle, %16, %19 : vector<256x1xi32>
    %cst = arith.constant 0.000000e+00 : f32
    %21 = vector.broadcast %cst : f32 to vector<24x8xf32>
    %c0 = arith.constant 0 : index
    %c0_4 = arith.constant 0 : index
    %22 = vector.load %arg7[%c0, %c0_4] : memref<304x8xf32, #tpu.memory_space<vmem>>, vector<24x8xf32>
    tpu.vector_store %arg7[%c0, %c0_4], %21 {strides = array<i32>} : memref<304x8xf32, #tpu.memory_space<vmem>>, vector<24x8xf32>,
    %c280 = arith.constant 280 : index
    %c0_5 = arith.constant 0 : index
    %23 = vector.load %arg7[%c280, %c0_5] : memref<304x8xf32, #tpu.memory_space<vmem>>, vector<24x8xf32>
    tpu.vector_store %arg7[%c280, %c0_5], %21 {strides = array<i32>} : memref<304x8xf32, #tpu.memory_space<vmem>>, vector<24x8xf32>,
    %c0_6 = arith.constant 0 : index
    %c7 = arith.constant 7 : index
    %c0_7 = arith.constant 0 : index
    %24 = vector.load %arg1[%c0_6, %c7, %c0_7] : memref<1x304x4xf32, #tpu.memory_space<vmem>>, vector<1x256x4xf32>
    %25 = vector.shape_cast %24 : vector<1x256x4xf32> to vector<256x4xf32>
    %cst_8 = arith.constant 0.000000e+00 : f32
    %26 = vector.shape_cast %18 : vector<256x1xi1> to vector<256x1xi1>
    %27 = vector.broadcast %26 : vector<256x1xi1> to vector<256x4xi1>
    %28 = vector.broadcast %cst_8 : f32 to vector<256x4xf32>
    %29 = arith.select %27, %25, %28 : vector<256x4xi1>, vector<256x4xf32>
    %c0_9 = arith.constant 0 : index
    %c0_10 = arith.constant 0 : index
    %c0_11 = arith.constant 0 : index
    %30 = vector.load %arg2[%c0_9, %c0_10, %c0_11] : memref<9x4x8xf32, #tpu.memory_space<vmem>>, vector<1x4x8xf32>
    %31 = vector.shape_cast %30 : vector<1x4x8xf32> to vector<4x8xf32>
    %cst_12 = arith.constant dense<0.000000e+00> : vector<256x8xf32>
    %32 = tpu.matmul %29, %31, %cst_12 {dimension_numbers = #tpu.dot_dimension_numbers<[1], [0], [0], [1], [0, 0, 1, 1], [], []>} : vector<256x4xf32>, vector<4x8xf32>, vector<256x8xf32> -> vector<256x8xf32>
    %c0_13 = arith.constant 0 : index
    %c8 = arith.constant 8 : index
    %c0_14 = arith.constant 0 : index
    %33 = vector.load %arg1[%c0_13, %c8, %c0_14] : memref<1x304x4xf32, #tpu.memory_space<vmem>>, vector<1x256x4xf32>
    %34 = vector.shape_cast %33 : vector<1x256x4xf32> to vector<256x4xf32>
    %c1 = arith.constant 1 : index
    %c0_15 = arith.constant 0 : index
    %c0_16 = arith.constant 0 : index
    %35 = vector.load %arg2[%c1, %c0_15, %c0_16] : memref<9x4x8xf32, #tpu.memory_space<vmem>>, vector<1x4x8xf32>
    %36 = vector.shape_cast %35 : vector<1x4x8xf32> to vector<4x8xf32>
    %cst_17 = arith.constant dense<0.000000e+00> : vector<256x8xf32>
    %37 = tpu.matmul %34, %36, %cst_17 {dimension_numbers = #tpu.dot_dimension_numbers<[1], [0], [0], [1], [0, 0, 1, 1], [], []>} : vector<256x4xf32>, vector<4x8xf32>, vector<256x8xf32> -> vector<256x8xf32>
    %38 = arith.addf %32, %37 : vector<256x8xf32>
    %c0_18 = arith.constant 0 : index
    %c9 = arith.constant 9 : index
    %c0_19 = arith.constant 0 : index
    %39 = vector.load %arg1[%c0_18, %c9, %c0_19] : memref<1x304x4xf32, #tpu.memory_space<vmem>>, vector<1x256x4xf32>
    %40 = vector.shape_cast %39 : vector<1x256x4xf32> to vector<256x4xf32>
    %cst_20 = arith.constant 0.000000e+00 : f32
    %41 = vector.shape_cast %20 : vector<256x1xi1> to vector<256x1xi1>
    %42 = vector.broadcast %41 : vector<256x1xi1> to vector<256x4xi1>
    %43 = vector.broadcast %cst_20 : f32 to vector<256x4xf32>
    %44 = arith.select %42, %40, %43 : vector<256x4xi1>, vector<256x4xf32>
    %c2 = arith.constant 2 : index
    %c0_21 = arith.constant 0 : index
    %c0_22 = arith.constant 0 : index
    %45 = vector.load %arg2[%c2, %c0_21, %c0_22] : memref<9x4x8xf32, #tpu.memory_space<vmem>>, vector<1x4x8xf32>
    %46 = vector.shape_cast %45 : vector<1x4x8xf32> to vector<4x8xf32>
    %cst_23 = arith.constant dense<0.000000e+00> : vector<256x8xf32>
    %47 = tpu.matmul %44, %46, %cst_23 {dimension_numbers = #tpu.dot_dimension_numbers<[1], [0], [0], [1], [0, 0, 1, 1], [], []>} : vector<256x4xf32>, vector<4x8xf32>, vector<256x8xf32> -> vector<256x8xf32>
    %48 = arith.addf %38, %47 : vector<256x8xf32>
    %c0_24 = arith.constant 0 : index
    %c23 = arith.constant 23 : index
    %c0_25 = arith.constant 0 : index
    %49 = vector.load %arg1[%c0_24, %c23, %c0_25] : memref<1x304x4xf32, #tpu.memory_space<vmem>>, vector<1x256x4xf32>
    %50 = vector.shape_cast %49 : vector<1x256x4xf32> to vector<256x4xf32>
    %cst_26 = arith.constant 0.000000e+00 : f32
    %51 = vector.shape_cast %18 : vector<256x1xi1> to vector<256x1xi1>
    %52 = vector.broadcast %51 : vector<256x1xi1> to vector<256x4xi1>
    %53 = vector.broadcast %cst_26 : f32 to vector<256x4xf32>
    %54 = arith.select %52, %50, %53 : vector<256x4xi1>, vector<256x4xf32>
    %c3 = arith.constant 3 : index
    %c0_27 = arith.constant 0 : index
    %c0_28 = arith.constant 0 : index
    %55 = vector.load %arg2[%c3, %c0_27, %c0_28] : memref<9x4x8xf32, #tpu.memory_space<vmem>>, vector<1x4x8xf32>
    %56 = vector.shape_cast %55 : vector<1x4x8xf32> to vector<4x8xf32>
    %cst_29 = arith.constant dense<0.000000e+00> : vector<256x8xf32>
    %57 = tpu.matmul %54, %56, %cst_29 {dimension_numbers = #tpu.dot_dimension_numbers<[1], [0], [0], [1], [0, 0, 1, 1], [], []>} : vector<256x4xf32>, vector<4x8xf32>, vector<256x8xf32> -> vector<256x8xf32>
    %58 = arith.addf %48, %57 : vector<256x8xf32>
    %c0_30 = arith.constant 0 : index
    %c24 = arith.constant 24 : index
    %c0_31 = arith.constant 0 : index
    %59 = vector.load %arg1[%c0_30, %c24, %c0_31] : memref<1x304x4xf32, #tpu.memory_space<vmem>>, vector<1x256x4xf32>
    %60 = vector.shape_cast %59 : vector<1x256x4xf32> to vector<256x4xf32>
    %c4 = arith.constant 4 : index
    %c0_32 = arith.constant 0 : index
    %c0_33 = arith.constant 0 : index
    %61 = vector.load %arg2[%c4, %c0_32, %c0_33] : memref<9x4x8xf32, #tpu.memory_space<vmem>>, vector<1x4x8xf32>
    %62 = vector.shape_cast %61 : vector<1x4x8xf32> to vector<4x8xf32>
    %cst_34 = arith.constant dense<0.000000e+00> : vector<256x8xf32>
    %63 = tpu.matmul %60, %62, %cst_34 {dimension_numbers = #tpu.dot_dimension_numbers<[1], [0], [0], [1], [0, 0, 1, 1], [], []>} : vector<256x4xf32>, vector<4x8xf32>, vector<256x8xf32> -> vector<256x8xf32>
    %64 = arith.addf %58, %63 : vector<256x8xf32>
    %c0_35 = arith.constant 0 : index
    %c25 = arith.constant 25 : index
    %c0_36 = arith.constant 0 : index
    %65 = vector.load %arg1[%c0_35, %c25, %c0_36] : memref<1x304x4xf32, #tpu.memory_space<vmem>>, vector<1x256x4xf32>
    %66 = vector.shape_cast %65 : vector<1x256x4xf32> to vector<256x4xf32>
    %cst_37 = arith.constant 0.000000e+00 : f32
    %67 = vector.shape_cast %20 : vector<256x1xi1> to vector<256x1xi1>
    %68 = vector.broadcast %67 : vector<256x1xi1> to vector<256x4xi1>
    %69 = vector.broadcast %cst_37 : f32 to vector<256x4xf32>
    %70 = arith.select %68, %66, %69 : vector<256x4xi1>, vector<256x4xf32>
    %c5 = arith.constant 5 : index
    %c0_38 = arith.constant 0 : index
    %c0_39 = arith.constant 0 : index
    %71 = vector.load %arg2[%c5, %c0_38, %c0_39] : memref<9x4x8xf32, #tpu.memory_space<vmem>>, vector<1x4x8xf32>
    %72 = vector.shape_cast %71 : vector<1x4x8xf32> to vector<4x8xf32>
    %cst_40 = arith.constant dense<0.000000e+00> : vector<256x8xf32>
    %73 = tpu.matmul %70, %72, %cst_40 {dimension_numbers = #tpu.dot_dimension_numbers<[1], [0], [0], [1], [0, 0, 1, 1], [], []>} : vector<256x4xf32>, vector<4x8xf32>, vector<256x8xf32> -> vector<256x8xf32>
    %74 = arith.addf %64, %73 : vector<256x8xf32>
    %c0_41 = arith.constant 0 : index
    %c39 = arith.constant 39 : index
    %c0_42 = arith.constant 0 : index
    %75 = vector.load %arg1[%c0_41, %c39, %c0_42] : memref<1x304x4xf32, #tpu.memory_space<vmem>>, vector<1x256x4xf32>
    %76 = vector.shape_cast %75 : vector<1x256x4xf32> to vector<256x4xf32>
    %cst_43 = arith.constant 0.000000e+00 : f32
    %77 = vector.shape_cast %18 : vector<256x1xi1> to vector<256x1xi1>
    %78 = vector.broadcast %77 : vector<256x1xi1> to vector<256x4xi1>
    %79 = vector.broadcast %cst_43 : f32 to vector<256x4xf32>
    %80 = arith.select %78, %76, %79 : vector<256x4xi1>, vector<256x4xf32>
    %c6 = arith.constant 6 : index
    %c0_44 = arith.constant 0 : index
    %c0_45 = arith.constant 0 : index
    %81 = vector.load %arg2[%c6, %c0_44, %c0_45] : memref<9x4x8xf32, #tpu.memory_space<vmem>>, vector<1x4x8xf32>
    %82 = vector.shape_cast %81 : vector<1x4x8xf32> to vector<4x8xf32>
    %cst_46 = arith.constant dense<0.000000e+00> : vector<256x8xf32>
    %83 = tpu.matmul %80, %82, %cst_46 {dimension_numbers = #tpu.dot_dimension_numbers<[1], [0], [0], [1], [0, 0, 1, 1], [], []>} : vector<256x4xf32>, vector<4x8xf32>, vector<256x8xf32> -> vector<256x8xf32>
    %84 = arith.addf %74, %83 : vector<256x8xf32>
    %c0_47 = arith.constant 0 : index
    %c40 = arith.constant 40 : index
    %c0_48 = arith.constant 0 : index
    %85 = vector.load %arg1[%c0_47, %c40, %c0_48] : memref<1x304x4xf32, #tpu.memory_space<vmem>>, vector<1x256x4xf32>
    %86 = vector.shape_cast %85 : vector<1x256x4xf32> to vector<256x4xf32>
    %c7_49 = arith.constant 7 : index
    %c0_50 = arith.constant 0 : index
    %c0_51 = arith.constant 0 : index
    %87 = vector.load %arg2[%c7_49, %c0_50, %c0_51] : memref<9x4x8xf32, #tpu.memory_space<vmem>>, vector<1x4x8xf32>
    %88 = vector.shape_cast %87 : vector<1x4x8xf32> to vector<4x8xf32>
    %cst_52 = arith.constant dense<0.000000e+00> : vector<256x8xf32>
    %89 = tpu.matmul %86, %88, %cst_52 {dimension_numbers = #tpu.dot_dimension_numbers<[1], [0], [0], [1], [0, 0, 1, 1], [], []>} : vector<256x4xf32>, vector<4x8xf32>, vector<256x8xf32> -> vector<256x8xf32>
    %90 = arith.addf %84, %89 : vector<256x8xf32>
    %c0_53 = arith.constant 0 : index
    %c41 = arith.constant 41 : index
    %c0_54 = arith.constant 0 : index
    %91 = vector.load %arg1[%c0_53, %c41, %c0_54] : memref<1x304x4xf32, #tpu.memory_space<vmem>>, vector<1x256x4xf32>
    %92 = vector.shape_cast %91 : vector<1x256x4xf32> to vector<256x4xf32>
    %cst_55 = arith.constant 0.000000e+00 : f32
    %93 = vector.shape_cast %20 : vector<256x1xi1> to vector<256x1xi1>
    %94 = vector.broadcast %93 : vector<256x1xi1> to vector<256x4xi1>
    %95 = vector.broadcast %cst_55 : f32 to vector<256x4xf32>
    %96 = arith.select %94, %92, %95 : vector<256x4xi1>, vector<256x4xf32>
    %c8_56 = arith.constant 8 : index
    %c0_57 = arith.constant 0 : index
    %c0_58 = arith.constant 0 : index
    %97 = vector.load %arg2[%c8_56, %c0_57, %c0_58] : memref<9x4x8xf32, #tpu.memory_space<vmem>>, vector<1x4x8xf32>
    %98 = vector.shape_cast %97 : vector<1x4x8xf32> to vector<4x8xf32>
    %cst_59 = arith.constant dense<0.000000e+00> : vector<256x8xf32>
    %99 = tpu.matmul %96, %98, %cst_59 {dimension_numbers = #tpu.dot_dimension_numbers<[1], [0], [0], [1], [0, 0, 1, 1], [], []>} : vector<256x4xf32>, vector<4x8xf32>, vector<256x8xf32> -> vector<256x8xf32>
    %100 = arith.addf %90, %99 : vector<256x8xf32>
    %c0_60 = arith.constant 0 : index
    %c0_61 = arith.constant 0 : index
    %101 = vector.load %arg3[%c0_60, %c0_61] : memref<1x8xf32, #tpu.memory_space<vmem>>, vector<1x8xf32>
    %102 = vector.broadcast %101 : vector<1x8xf32> to vector<256x8xf32>
    %103 = arith.addf %100, %102 : vector<256x8xf32>
    %cst_62 = arith.constant 0.000000e+00 : f32
    %104 = vector.broadcast %cst_62 : f32 to vector<256x8xf32>
    %105 = arith.maximumf %103, %104 : vector<256x8xf32>
    %c24_63 = arith.constant 24 : index
    %c0_64 = arith.constant 0 : index
    %106 = vector.load %arg7[%c24_63, %c0_64] : memref<304x8xf32, #tpu.memory_space<vmem>>, vector<256x8xf32>
    tpu.vector_store %arg7[%c24_63, %c0_64], %105 {strides = array<i32>} : memref<304x8xf32, #tpu.memory_space<vmem>>, vector<256x8xf32>,
    %c7_65 = arith.constant 7 : index
    %c0_66 = arith.constant 0 : index
    %107 = vector.load %arg7[%c7_65, %c0_66] : memref<304x8xf32, #tpu.memory_space<vmem>>, vector<256x8xf32>
    %cst_67 = arith.constant 0.000000e+00 : f32
    %108 = vector.shape_cast %18 : vector<256x1xi1> to vector<256x1xi1>
    %109 = vector.broadcast %108 : vector<256x1xi1> to vector<256x8xi1>
    %110 = vector.broadcast %cst_67 : f32 to vector<256x8xf32>
    %111 = arith.select %109, %107, %110 : vector<256x8xi1>, vector<256x8xf32>
    %c0_68 = arith.constant 0 : index
    %c0_69 = arith.constant 0 : index
    %c0_70 = arith.constant 0 : index
    %112 = vector.load %arg4[%c0_68, %c0_69, %c0_70] : memref<9x8x8xf32, #tpu.memory_space<vmem>>, vector<1x8x8xf32>
    %113 = vector.shape_cast %112 : vector<1x8x8xf32> to vector<8x8xf32>
    %cst_71 = arith.constant dense<0.000000e+00> : vector<256x8xf32>
    %114 = tpu.matmul %111, %113, %cst_71 {dimension_numbers = #tpu.dot_dimension_numbers<[1], [0], [0], [1], [0, 0, 1, 1], [], []>} : vector<256x8xf32>, vector<8x8xf32>, vector<256x8xf32> -> vector<256x8xf32>
    %c8_72 = arith.constant 8 : index
    %c0_73 = arith.constant 0 : index
    %115 = vector.load %arg7[%c8_72, %c0_73] : memref<304x8xf32, #tpu.memory_space<vmem>>, vector<256x8xf32>
    %c1_74 = arith.constant 1 : index
    %c0_75 = arith.constant 0 : index
    %c0_76 = arith.constant 0 : index
    %116 = vector.load %arg4[%c1_74, %c0_75, %c0_76] : memref<9x8x8xf32, #tpu.memory_space<vmem>>, vector<1x8x8xf32>
    %117 = vector.shape_cast %116 : vector<1x8x8xf32> to vector<8x8xf32>
    %cst_77 = arith.constant dense<0.000000e+00> : vector<256x8xf32>
    %118 = tpu.matmul %115, %117, %cst_77 {dimension_numbers = #tpu.dot_dimension_numbers<[1], [0], [0], [1], [0, 0, 1, 1], [], []>} : vector<256x8xf32>, vector<8x8xf32>, vector<256x8xf32> -> vector<256x8xf32>
    %119 = arith.addf %114, %118 : vector<256x8xf32>
    %c9_78 = arith.constant 9 : index
    %c0_79 = arith.constant 0 : index
    %120 = vector.load %arg7[%c9_78, %c0_79] : memref<304x8xf32, #tpu.memory_space<vmem>>, vector<256x8xf32>
    %cst_80 = arith.constant 0.000000e+00 : f32
    %121 = vector.shape_cast %20 : vector<256x1xi1> to vector<256x1xi1>
    %122 = vector.broadcast %121 : vector<256x1xi1> to vector<256x8xi1>
    %123 = vector.broadcast %cst_80 : f32 to vector<256x8xf32>
    %124 = arith.select %122, %120, %123 : vector<256x8xi1>, vector<256x8xf32>
    %c2_81 = arith.constant 2 : index
    %c0_82 = arith.constant 0 : index
    %c0_83 = arith.constant 0 : index
    %125 = vector.load %arg4[%c2_81, %c0_82, %c0_83] : memref<9x8x8xf32, #tpu.memory_space<vmem>>, vector<1x8x8xf32>
    %126 = vector.shape_cast %125 : vector<1x8x8xf32> to vector<8x8xf32>
    %cst_84 = arith.constant dense<0.000000e+00> : vector<256x8xf32>
    %127 = tpu.matmul %124, %126, %cst_84 {dimension_numbers = #tpu.dot_dimension_numbers<[1], [0], [0], [1], [0, 0, 1, 1], [], []>} : vector<256x8xf32>, vector<8x8xf32>, vector<256x8xf32> -> vector<256x8xf32>
    %128 = arith.addf %119, %127 : vector<256x8xf32>
    %c23_85 = arith.constant 23 : index
    %c0_86 = arith.constant 0 : index
    %129 = vector.load %arg7[%c23_85, %c0_86] : memref<304x8xf32, #tpu.memory_space<vmem>>, vector<256x8xf32>
    %cst_87 = arith.constant 0.000000e+00 : f32
    %130 = vector.shape_cast %18 : vector<256x1xi1> to vector<256x1xi1>
    %131 = vector.broadcast %130 : vector<256x1xi1> to vector<256x8xi1>
    %132 = vector.broadcast %cst_87 : f32 to vector<256x8xf32>
    %133 = arith.select %131, %129, %132 : vector<256x8xi1>, vector<256x8xf32>
    %c3_88 = arith.constant 3 : index
    %c0_89 = arith.constant 0 : index
    %c0_90 = arith.constant 0 : index
    %134 = vector.load %arg4[%c3_88, %c0_89, %c0_90] : memref<9x8x8xf32, #tpu.memory_space<vmem>>, vector<1x8x8xf32>
    %135 = vector.shape_cast %134 : vector<1x8x8xf32> to vector<8x8xf32>
    %cst_91 = arith.constant dense<0.000000e+00> : vector<256x8xf32>
    %136 = tpu.matmul %133, %135, %cst_91 {dimension_numbers = #tpu.dot_dimension_numbers<[1], [0], [0], [1], [0, 0, 1, 1], [], []>} : vector<256x8xf32>, vector<8x8xf32>, vector<256x8xf32> -> vector<256x8xf32>
    %137 = arith.addf %128, %136 : vector<256x8xf32>
    %c24_92 = arith.constant 24 : index
    %c0_93 = arith.constant 0 : index
    %138 = vector.load %arg7[%c24_92, %c0_93] : memref<304x8xf32, #tpu.memory_space<vmem>>, vector<256x8xf32>
    %c4_94 = arith.constant 4 : index
    %c0_95 = arith.constant 0 : index
    %c0_96 = arith.constant 0 : index
    %139 = vector.load %arg4[%c4_94, %c0_95, %c0_96] : memref<9x8x8xf32, #tpu.memory_space<vmem>>, vector<1x8x8xf32>
    %140 = vector.shape_cast %139 : vector<1x8x8xf32> to vector<8x8xf32>
    %cst_97 = arith.constant dense<0.000000e+00> : vector<256x8xf32>
    %141 = tpu.matmul %138, %140, %cst_97 {dimension_numbers = #tpu.dot_dimension_numbers<[1], [0], [0], [1], [0, 0, 1, 1], [], []>} : vector<256x8xf32>, vector<8x8xf32>, vector<256x8xf32> -> vector<256x8xf32>
    %142 = arith.addf %137, %141 : vector<256x8xf32>
    %c25_98 = arith.constant 25 : index
    %c0_99 = arith.constant 0 : index
    %143 = vector.load %arg7[%c25_98, %c0_99] : memref<304x8xf32, #tpu.memory_space<vmem>>, vector<256x8xf32>
    %cst_100 = arith.constant 0.000000e+00 : f32
    %144 = vector.shape_cast %20 : vector<256x1xi1> to vector<256x1xi1>
    %145 = vector.broadcast %144 : vector<256x1xi1> to vector<256x8xi1>
    %146 = vector.broadcast %cst_100 : f32 to vector<256x8xf32>
    %147 = arith.select %145, %143, %146 : vector<256x8xi1>, vector<256x8xf32>
    %c5_101 = arith.constant 5 : index
    %c0_102 = arith.constant 0 : index
    %c0_103 = arith.constant 0 : index
    %148 = vector.load %arg4[%c5_101, %c0_102, %c0_103] : memref<9x8x8xf32, #tpu.memory_space<vmem>>, vector<1x8x8xf32>
    %149 = vector.shape_cast %148 : vector<1x8x8xf32> to vector<8x8xf32>
    %cst_104 = arith.constant dense<0.000000e+00> : vector<256x8xf32>
    %150 = tpu.matmul %147, %149, %cst_104 {dimension_numbers = #tpu.dot_dimension_numbers<[1], [0], [0], [1], [0, 0, 1, 1], [], []>} : vector<256x8xf32>, vector<8x8xf32>, vector<256x8xf32> -> vector<256x8xf32>
    %151 = arith.addf %142, %150 : vector<256x8xf32>
    %c39_105 = arith.constant 39 : index
    %c0_106 = arith.constant 0 : index
    %152 = vector.load %arg7[%c39_105, %c0_106] : memref<304x8xf32, #tpu.memory_space<vmem>>, vector<256x8xf32>
    %cst_107 = arith.constant 0.000000e+00 : f32
    %153 = vector.shape_cast %18 : vector<256x1xi1> to vector<256x1xi1>
    %154 = vector.broadcast %153 : vector<256x1xi1> to vector<256x8xi1>
    %155 = vector.broadcast %cst_107 : f32 to vector<256x8xf32>
    %156 = arith.select %154, %152, %155 : vector<256x8xi1>, vector<256x8xf32>
    %c6_108 = arith.constant 6 : index
    %c0_109 = arith.constant 0 : index
    %c0_110 = arith.constant 0 : index
    %157 = vector.load %arg4[%c6_108, %c0_109, %c0_110] : memref<9x8x8xf32, #tpu.memory_space<vmem>>, vector<1x8x8xf32>
    %158 = vector.shape_cast %157 : vector<1x8x8xf32> to vector<8x8xf32>
    %cst_111 = arith.constant dense<0.000000e+00> : vector<256x8xf32>
    %159 = tpu.matmul %156, %158, %cst_111 {dimension_numbers = #tpu.dot_dimension_numbers<[1], [0], [0], [1], [0, 0, 1, 1], [], []>} : vector<256x8xf32>, vector<8x8xf32>, vector<256x8xf32> -> vector<256x8xf32>
    %160 = arith.addf %151, %159 : vector<256x8xf32>
    %c40_112 = arith.constant 40 : index
    %c0_113 = arith.constant 0 : index
    %161 = vector.load %arg7[%c40_112, %c0_113] : memref<304x8xf32, #tpu.memory_space<vmem>>, vector<256x8xf32>
    %c7_114 = arith.constant 7 : index
    %c0_115 = arith.constant 0 : index
    %c0_116 = arith.constant 0 : index
    %162 = vector.load %arg4[%c7_114, %c0_115, %c0_116] : memref<9x8x8xf32, #tpu.memory_space<vmem>>, vector<1x8x8xf32>
    %163 = vector.shape_cast %162 : vector<1x8x8xf32> to vector<8x8xf32>
    %cst_117 = arith.constant dense<0.000000e+00> : vector<256x8xf32>
    %164 = tpu.matmul %161, %163, %cst_117 {dimension_numbers = #tpu.dot_dimension_numbers<[1], [0], [0], [1], [0, 0, 1, 1], [], []>} : vector<256x8xf32>, vector<8x8xf32>, vector<256x8xf32> -> vector<256x8xf32>
    %165 = arith.addf %160, %164 : vector<256x8xf32>
    %c41_118 = arith.constant 41 : index
    %c0_119 = arith.constant 0 : index
    %166 = vector.load %arg7[%c41_118, %c0_119] : memref<304x8xf32, #tpu.memory_space<vmem>>, vector<256x8xf32>
    %cst_120 = arith.constant 0.000000e+00 : f32
    %167 = vector.shape_cast %20 : vector<256x1xi1> to vector<256x1xi1>
    %168 = vector.broadcast %167 : vector<256x1xi1> to vector<256x8xi1>
    %169 = vector.broadcast %cst_120 : f32 to vector<256x8xf32>
    %170 = arith.select %168, %166, %169 : vector<256x8xi1>, vector<256x8xf32>
    %c8_121 = arith.constant 8 : index
    %c0_122 = arith.constant 0 : index
    %c0_123 = arith.constant 0 : index
    %171 = vector.load %arg4[%c8_121, %c0_122, %c0_123] : memref<9x8x8xf32, #tpu.memory_space<vmem>>, vector<1x8x8xf32>
    %172 = vector.shape_cast %171 : vector<1x8x8xf32> to vector<8x8xf32>
    %cst_124 = arith.constant dense<0.000000e+00> : vector<256x8xf32>
    %173 = tpu.matmul %170, %172, %cst_124 {dimension_numbers = #tpu.dot_dimension_numbers<[1], [0], [0], [1], [0, 0, 1, 1], [], []>} : vector<256x8xf32>, vector<8x8xf32>, vector<256x8xf32> -> vector<256x8xf32>
    %174 = arith.addf %165, %173 : vector<256x8xf32>
    %c0_125 = arith.constant 0 : index
    %c0_126 = arith.constant 0 : index
    %175 = vector.load %arg5[%c0_125, %c0_126] : memref<1x8xf32, #tpu.memory_space<vmem>>, vector<1x8xf32>
    %176 = vector.broadcast %175 : vector<1x8xf32> to vector<256x8xf32>
    %177 = arith.addf %174, %176 : vector<256x8xf32>
    %cst_127 = arith.constant 0.000000e+00 : f32
    %178 = vector.broadcast %cst_127 : f32 to vector<256x8xf32>
    %179 = arith.maximumf %177, %178 : vector<256x8xf32>
    %c0_128 = arith.constant 0 : index
    %c0_129 = arith.constant 0 : index
    %c0_130 = arith.constant 0 : index
    %180 = vector.load %arg6[%c0_128, %c0_129, %c0_130] : memref<1x256x8xf32, #tpu.memory_space<vmem>>, vector<1x256x8xf32>
    %181 = vector.shape_cast %180 : vector<1x256x8xf32> to vector<256x8xf32>
    %182 = vector.shape_cast %179 : vector<256x8xf32> to vector<1x256x8xf32>
    tpu.vector_store %arg6[%c0_128, %c0_129, %c0_130], %182 {strides = array<i32>} : memref<1x256x8xf32, #tpu.memory_space<vmem>>, vector<1x256x8xf32>,
    return
  }
  func.func @transform_0(%arg0: i32) -> (i32, i32, i32) {
    %c0_i32 = arith.constant 0 : i32
    %c0_i32_0 = arith.constant 0 : i32
    %c0_i32_1 = arith.constant 0 : i32
    return %arg0, %c0_i32, %c0_i32_0 : i32, i32, i32
  }
  func.func @transform_1(%arg0: i32) -> (i32, i32, i32) {
    %c0_i32 = arith.constant 0 : i32
    %c0_i32_0 = arith.constant 0 : i32
    %c0_i32_1 = arith.constant 0 : i32
    %c0_i32_2 = arith.constant 0 : i32
    return %c0_i32, %c0_i32_0, %c0_i32_1 : i32, i32, i32
  }
  func.func @transform_2(%arg0: i32) -> (i32, i32) {
    %c0_i32 = arith.constant 0 : i32
    %c0_i32_0 = arith.constant 0 : i32
    %c0_i32_1 = arith.constant 0 : i32
    return %c0_i32, %c0_i32_0 : i32, i32
  }
  func.func @transform_3(%arg0: i32) -> (i32, i32, i32) {
    %c0_i32 = arith.constant 0 : i32
    %c0_i32_0 = arith.constant 0 : i32
    %c0_i32_1 = arith.constant 0 : i32
    %c0_i32_2 = arith.constant 0 : i32
    return %c0_i32, %c0_i32_0, %c0_i32_1 : i32, i32, i32
  }
  func.func @transform_4(%arg0: i32) -> (i32, i32) {
    %c0_i32 = arith.constant 0 : i32
    %c0_i32_0 = arith.constant 0 : i32
    %c0_i32_1 = arith.constant 0 : i32
    return %c0_i32, %c0_i32_0 : i32, i32
  }
  func.func @transform_5(%arg0: i32) -> (i32, i32, i32) {
    %c0_i32 = arith.constant 0 : i32
    %c0_i32_0 = arith.constant 0 : i32
    %c0_i32_1 = arith.constant 0 : i32
    return %arg0, %c0_i32, %c0_i32_0 : i32, i32, i32
  }
}

</mosaic_0001>

<llo_original>
// kernel: tpu_custom_call.1
$region0: #{tpu_custom_call.1}
  #allocation0 [shape = 'u32[]', space=smem, size = 0x4, offset = 0x4, fixed_abs, tag = 'smem constant byte address 0x4 - core index']
  #allocation1 [shape = 'u32[72,128]{1,0:T(1,128)}', space=vmem, size = 0x9000, scoped, tag = 'internal scratch']
  #allocation2 [shape = 'f32[304,8]{1,0:T(8,128)}', space=vmem, size = 0x26000, scoped, tag = 'scratch operand']
  %s0 = inlined_call_operand.vmem [shape: f32[2,304,4], index: 0, kind: input, shape index: {}]
  %s1 = inlined_call_operand.vmem [shape: f32[9,4,8], index: 1, kind: input, shape index: {}]
  %s2 = inlined_call_operand.vmem [shape: f32[1,8], index: 2, kind: input, shape index: {}]
  %s3 = inlined_call_operand.vmem [shape: f32[9,8,8], index: 3, kind: input, shape index: {}]
  %s4 = inlined_call_operand.vmem [shape: f32[1,8], index: 4, kind: input, shape index: {}]
  %s5 = inlined_call_operand.vmem [shape: f32[2,256,8], index: 5, kind: output, shape index: {}]
  %s6 = sld [smem:[#allocation0]]
  $region53: #{tpu_custom_call.1} parent=0
    _
  %s8 = ssub.s32 1, %s6
  %s9 = scalar_select 0, %s8, %s6
  loop: start=0, step=1, limit=4
  $region2: #{tpu_custom_call.1} parent=0 // loop_pre_header
    _
  $region3: #{tpu_custom_call.1} parent=0 // loop_header
    %s11 = sphi 0, %s15
    %p12 = scmp.ge.s32.totalorder %s11, 4
    %s21 = sphi 0, %s23
    %s24 = sphi 0, %s21
    %s25 = sphi 0, %s24
    %s41 = sphi 0, %s25
    %s45 = sphi 0, %s45
    %s47 = sphi 0, %s45
    %s48 = sphi 0, %s47
    %s62 = sphi 0, %s48
    %s66 = sphi 0, %s66
    %s68 = sphi 0, %s66
    %s69 = sphi 0, %s68
    %s83 = sphi 0, %s69
    %s87 = sphi 0, %s87
    %s89 = sphi 0, %s87
    %s90 = sphi 0, %s89
    %s104 = sphi 0, %s90
    %s108 = sphi 0, %s108
    %s110 = sphi 0, %s108
    %s111 = sphi 0, %s110
    %s125 = sphi 0, %s111
    %s131 = sphi 0, %s133
    %s134 = sphi 0, %s131
    %s135 = sphi 0, %s134
    %s151 = sphi 0, %s135
  $region4: #{tpu_custom_call.1} parent=0 // loop_header_branch
    %14 = sbr.rel (%p12) target = $region8
  $region5: #{tpu_custom_call.1} parent=0 // loop_body
    %s16 = ssub.s32 %s11, 1
    %s17 = ssub.s32 %s11, 2
    %s18 = sadd.s32 %s11, 1
    %s19 = ssub.s32 %s11, %s18
    %p20 = scmp.eq.s32.totalorder %s19, 0
    %s22 = sadd.s32 %s21, 1
    %s23 = scalar_select %p20, %s21, %s22
    %p26 = pneg %p20
    %p27 = scmp.eq.s32.totalorder %s11, 1
    %p28 = por %p26, %p27
    %p29 = scmp.ne.s32.totalorder %s21, %s24
    %p30 = scmp.eq.s32.totalorder %s11, 0
    %p31 = por %p29, %p30
    %p32 = scmp.ne.s32.totalorder %s21, %s24
    %p33 = scmp.eq.s32.totalorder %s16, 1
    %p34 = por %p32, %p33
    %p35 = scmp.ne.s32.totalorder %s24, %s25
    %p36 = scmp.eq.s32.totalorder %s16, 0
    %p37 = por %p35, %p36
    %p38 = scmp.ne.s32.totalorder %s24, %s25
    %p39 = scmp.eq.s32.totalorder %s17, 1
    %p40 = por %p38, %p39
    %p42 = scmp.ne.s32.totalorder %s25, %s41
    %p43 = scmp.eq.s32.totalorder %s17, 0
    %p44 = por %p42, %p43
    %s46 = sadd.s32 %s45, 1
    %p49 = scmp.eq.s32.totalorder %s11, 1
    %p50 = scmp.ne.s32.totalorder %s45, %s47
    %p51 = scmp.eq.s32.totalorder %s11, 0
    %p52 = por %p50, %p51
    %p53 = scmp.ne.s32.totalorder %s45, %s47
    %p54 = scmp.eq.s32.totalorder %s16, 1
    %p55 = por %p53, %p54
    %p56 = scmp.ne.s32.totalorder %s47, %s48
    %p57 = scmp.eq.s32.totalorder %s16, 0
    %p58 = por %p56, %p57
    %p59 = scmp.ne.s32.totalorder %s47, %s48
    %p60 = scmp.eq.s32.totalorder %s17, 1
    %p61 = por %p59, %p60
    %p63 = scmp.ne.s32.totalorder %s48, %s62
    %p64 = scmp.eq.s32.totalorder %s17, 0
    %p65 = por %p63, %p64
    %s67 = sadd.s32 %s66, 1
    %p70 = scmp.eq.s32.totalorder %s11, 1
    %p71 = scmp.ne.s32.totalorder %s66, %s68
    %p72 = scmp.eq.s32.totalorder %s11, 0
    %p73 = por %p71, %p72
    %p74 = scmp.ne.s32.totalorder %s66, %s68
    %p75 = scmp.eq.s32.totalorder %s16, 1
    %p76 = por %p74, %p75
    %p77 = scmp.ne.s32.totalorder %s68, %s69
    %p78 = scmp.eq.s32.totalorder %s16, 0
    %p79 = por %p77, %p78
    %p80 = scmp.ne.s32.totalorder %s68, %s69
    %p81 = scmp.eq.s32.totalorder %s17, 1
    %p82 = por %p80, %p81
    %p84 = scmp.ne.s32.totalorder %s69, %s83
    %p85 = scmp.eq.s32.totalorder %s17, 0
    %p86 = por %p84, %p85
    %s88 = sadd.s32 %s87, 1
    %p91 = scmp.eq.s32.totalorder %s11, 1
    %p92 = scmp.ne.s32.totalorder %s87, %s89
    %p93 = scmp.eq.s32.totalorder %s11, 0
    %p94 = por %p92, %p93
    %p95 = scmp.ne.s32.totalorder %s87, %s89
    %p96 = scmp.eq.s32.totalorder %s16, 1
    %p97 = por %p95, %p96
    %p98 = scmp.ne.s32.totalorder %s89, %s90
    %p99 = scmp.eq.s32.totalorder %s16, 0
    %p100 = por %p98, %p99
    %p101 = scmp.ne.s32.totalorder %s89, %s90
    %p102 = scmp.eq.s32.totalorder %s17, 1
    %p103 = por %p101, %p102
    %p105 = scmp.ne.s32.totalorder %s90, %s104
    %p106 = scmp.eq.s32.totalorder %s17, 0
    %p107 = por %p105, %p106
    %s109 = sadd.s32 %s108, 1
    %p112 = scmp.eq.s32.totalorder %s11, 1
    %p113 = scmp.ne.s32.totalorder %s108, %s110
    %p114 = scmp.eq.s32.totalorder %s11, 0
    %p115 = por %p113, %p114
    %p116 = scmp.ne.s32.totalorder %s108, %s110
    %p117 = scmp.eq.s32.totalorder %s16, 1
    %p118 = por %p116, %p117
    %p119 = scmp.ne.s32.totalorder %s110, %s111
    %p120 = scmp.eq.s32.totalorder %s16, 0
    %p121 = por %p119, %p120
    %p122 = scmp.ne.s32.totalorder %s110, %s111
    %p123 = scmp.eq.s32.totalorder %s17, 1
    %p124 = por %p122, %p123
    %p126 = scmp.ne.s32.totalorder %s111, %s125
    %p127 = scmp.eq.s32.totalorder %s17, 0
    %p128 = por %p126, %p127
    %s129 = ssub.s32 %s11, %s18
    %p130 = scmp.eq.s32.totalorder %s129, 0
    %s132 = sadd.s32 %s131, 1
    %s133 = scalar_select %p130, %s131, %s132
    %p136 = pneg %p130
    %p137 = scmp.eq.s32.totalorder %s11, 1
    %p138 = por %p136, %p137
    %p139 = scmp.ne.s32.totalorder %s131, %s134
    %p140 = scmp.eq.s32.totalorder %s11, 0
    %p141 = por %p139, %p140
    %p142 = scmp.ne.s32.totalorder %s131, %s134
    %p143 = scmp.eq.s32.totalorder %s16, 1
    %p144 = por %p142, %p143
    %p145 = scmp.ne.s32.totalorder %s134, %s135
    %p146 = scmp.eq.s32.totalorder %s16, 0
    %p147 = por %p145, %p146
    %p148 = scmp.ne.s32.totalorder %s134, %s135
    %p149 = scmp.eq.s32.totalorder %s17, 1
    %p150 = por %p148, %p149
    %p152 = scmp.ne.s32.totalorder %s135, %s151
    %p153 = scmp.eq.s32.totalorder %s17, 0
    %p154 = por %p152, %p153
    %p155 = scmp.le.s32.totalorder 1, %s11
    %p156 = scmp.lt.s32.totalorder %s11, 3
    %p157 = pnand %p155, %p156
    %p158 = pneg %p157
    // Predicated region
    $region9: #{tpu_custom_call.1} parent=5 // pred_check
      _
    $region10: #{tpu_custom_call.1} parent=5 // pred_check_branch
      %160 = sbr.rel (%p157) target = $region12
    $region11: #{tpu_custom_call.1} parent=5 // pred_region
      %s161 = ssub.s32 %s11, 1
      // Predicated region
      $region13: #{tpu_custom_call.1} parent=11 // pred_check
        %p162 = pneg %p58
      $region14: #{tpu_custom_call.1} parent=11 // pred_check_branch
        %164 = sbr.rel (%p162) target = $region16
      $region15: #{tpu_custom_call.1} parent=11 // pred_region
        _
      $region16: #{tpu_custom_call.1} parent=11 // pred_fallthru
        _
      // Predicated region
      $region17: #{tpu_custom_call.1} parent=11 // pred_check
        %p165 = pneg %p79
      $region18: #{tpu_custom_call.1} parent=11 // pred_check_branch
        %167 = sbr.rel (%p165) target = $region20
      $region19: #{tpu_custom_call.1} parent=11 // pred_region
        _
      $region20: #{tpu_custom_call.1} parent=11 // pred_fallthru
        _
      // Predicated region
      $region21: #{tpu_custom_call.1} parent=11 // pred_check
        %p168 = pneg %p100
      $region22: #{tpu_custom_call.1} parent=11 // pred_check_branch
        %170 = sbr.rel (%p168) target = $region24
      $region23: #{tpu_custom_call.1} parent=11 // pred_region
        _
      $region24: #{tpu_custom_call.1} parent=11 // pred_fallthru
        _
      // Predicated region
      $region25: #{tpu_custom_call.1} parent=11 // pred_check
        %p171 = pneg %p121
      $region26: #{tpu_custom_call.1} parent=11 // pred_check_branch
        %173 = sbr.rel (%p171) target = $region28
      $region27: #{tpu_custom_call.1} parent=11 // pred_region
        _
      $region28: #{tpu_custom_call.1} parent=11 // pred_fallthru
        _
    $region12: #{tpu_custom_call.1} parent=5 // pred_fallthru
      _
    %p174 = scmp.lt.s32.totalorder %s11, 2
    // Predicated region
    $region29: #{tpu_custom_call.1} parent=5 // pred_check
      %p175 = pneg %p174
    $region30: #{tpu_custom_call.1} parent=5 // pred_check_branch
      %177 = sbr.rel (%p175) target = $region32
    $region31: #{tpu_custom_call.1} parent=5 // pred_region
      // Predicated region
      $region33: #{tpu_custom_call.1} parent=31 // pred_check
        %p178 = pneg %p31
      $region34: #{tpu_custom_call.1} parent=31 // pred_check_branch
        %180 = sbr.rel (%p178) target = $region36
      $region35: #{tpu_custom_call.1} parent=31 // pred_region
        %p181 = scmp.lt.s32.totalorder %s11, 1
        %s182 = scalar_select %p181, %s11, 1
        %s183 = smul.addr %s182, 38
        %s184 = smul.addr %s183, 8
        %s185 = scalar_lea.vmem %s0, %s184
      $region36: #{tpu_custom_call.1} parent=31 // pred_fallthru
        _
    $region32: #{tpu_custom_call.1} parent=5 // pred_fallthru
      _
    %p186 = scmp.le.s32.totalorder 1, %s11
    %p187 = scmp.lt.s32.totalorder %s11, 3
    %p188 = pnand %p186, %p187
    %p189 = pneg %p188
    // Predicated region
    $region37: #{tpu_custom_call.1} parent=5 // pred_check
      _
    $region38: #{tpu_custom_call.1} parent=5 // pred_check_branch
      %191 = sbr.rel (%p188) target = $region40
    $region39: #{tpu_custom_call.1} parent=5 // pred_region
      %s192 = ssub.s32 %s11, 1
      %p193 = scmp.lt.s32.totalorder %s16, 1
      %s194 = scalar_select %p193, %s16, 1
      %s195 = smul.addr %s194, 38
      %s196 = smul.addr %s195, 8
      %s197 = scalar_lea.vmem %s0, %s196
      %p198 = pneg %p37
      %p199 = pneg %p34
      %p200 = pneg %p58
      %p201 = pneg %p55
      %p202 = pneg %p79
      %p203 = pneg %p76
      %p204 = pneg %p100
      %p205 = pneg %p97
      %p206 = pneg %p121
      %p207 = pneg %p118
      %p208 = pneg %p147
      %p209 = pneg %p144
      %p210 = scmp.lt.s32.totalorder %s16, 1
      %s211 = scalar_select %p210, %s16, 1
      %s212 = smul.addr %s211, 32
      %s213 = smul.addr %s212, 8
      %s214 = scalar_lea.vmem %s5, %s213
      %p215 = scmp.lt.s32.totalorder %s16, 1
      %s216 = scalar_select %p215, %s16, 1
      %s217 = smul.addr %s216, 38
      %s218 = smul.addr %s217, 8
      %s219 = scalar_lea.vmem %s0, %s218
      %p220 = scmp.lt.s32.totalorder %s16, 1
      %s221 = scalar_select %p220, %s16, 1
      %s222 = smul.addr %s221, 32
      %s223 = smul.addr %s222, 8
      %s224 = scalar_lea.vmem %s5, %s223
      %v225 = vlaneseq
      %v226 = vshrl.u32 %v225, 7
      %v227 = vadd.s32 %v226, 8
      %v228 = vadd.s32 %v226, 16
      %v229 = vadd.s32 %v226, 24
      %v230 = vadd.s32 %v226, 32
      %v231 = vadd.s32 %v226, 40
      %v232 = vadd.s32 %v226, 48
      %v233 = vadd.s32 %v226, 56
      %v234 = vadd.s32 %v226, 64
      %v235 = vadd.s32 %v226, 72
      %v236 = vadd.s32 %v226, 80
      %v237 = vadd.s32 %v226, 88
      %v238 = vadd.s32 %v226, 96
      %v239 = vadd.s32 %v226, 104
      %v240 = vadd.s32 %v226, 112
      %v241 = vadd.s32 %v226, 120
      %v242 = vadd.s32 %v226, 128
      %v243 = vadd.s32 %v226, 136
      %v244 = vadd.s32 %v226, 144
      %v245 = vadd.s32 %v226, 152
      %v246 = vadd.s32 %v226, 160
      %v247 = vadd.s32 %v226, 168
      %v248 = vadd.s32 %v226, 176
      %v249 = vadd.s32 %v226, 184
      %v250 = vadd.s32 %v226, 192
      %v251 = vadd.s32 %v226, 200
      %v252 = vadd.s32 %v226, 208
      %v253 = vadd.s32 %v226, 216
      %v254 = vadd.s32 %v226, 224
      %v255 = vadd.s32 %v226, 232
      %v256 = vadd.s32 %v226, 240
      %v257 = vadd.s32 %v226, 248
      %vm258 = vcmp.lt.s32.totalorder %v226, 0
      %v259 = vsub.s32 0, %v226
      %v260 = vsel %vm258, %v259, %v226
      %v261 = vshrl.u32 %v260, 4
      %v262 = vand.u32 %v260, 15
      %v263 = vsub.s32 0, %v262
      %v264 = vsel %vm258, %v263, %v262
      %vm265 = vcmp.lt.s32.totalorder %v227, 0
      %v266 = vsub.s32 0, %v227
      %v267 = vsel %vm265, %v266, %v227
      %v268 = vshrl.u32 %v267, 4
      %v269 = vand.u32 %v267, 15
      %v270 = vsub.s32 0, %v269
      %v271 = vsel %vm265, %v270, %v269
      %vm272 = vcmp.lt.s32.totalorder %v228, 0
      %v273 = vsub.s32 0, %v228
      %v274 = vsel %vm272, %v273, %v228
      %v275 = vshrl.u32 %v274, 4
      %v276 = vand.u32 %v274, 15
      %v277 = vsub.s32 0, %v276
      %v278 = vsel %vm272, %v277, %v276
      %vm279 = vcmp.lt.s32.totalorder %v229, 0
      %v280 = vsub.s32 0, %v229
      %v281 = vsel %vm279, %v280, %v229
      %v282 = vshrl.u32 %v281, 4
      %v283 = vand.u32 %v281, 15
      %v284 = vsub.s32 0, %v283
      %v285 = vsel %vm279, %v284, %v283
      %vm286 = vcmp.lt.s32.totalorder %v230, 0
      %v287 = vsub.s32 0, %v230
      %v288 = vsel %vm286, %v287, %v230
      %v289 = vshrl.u32 %v288, 4
      %v290 = vand.u32 %v288, 15
      %v291 = vsub.s32 0, %v290
      %v292 = vsel %vm286, %v291, %v290
      %vm293 = vcmp.lt.s32.totalorder %v231, 0
      %v294 = vsub.s32 0, %v231
      %v295 = vsel %vm293, %v294, %v231
      %v296 = vshrl.u32 %v295, 4
      %v297 = vand.u32 %v295, 15
      %v298 = vsub.s32 0, %v297
      %v299 = vsel %vm293, %v298, %v297
      %vm300 = vcmp.lt.s32.totalorder %v232, 0
      %v301 = vsub.s32 0, %v232
      %v302 = vsel %vm300, %v301, %v232
      %v303 = vshrl.u32 %v302, 4
      %v304 = vand.u32 %v302, 15
      %v305 = vsub.s32 0, %v304
      %v306 = vsel %vm300, %v305, %v304
      %vm307 = vcmp.lt.s32.totalorder %v233, 0
      %v308 = vsub.s32 0, %v233
      %v309 = vsel %vm307, %v308, %v233
      %v310 = vshrl.u32 %v309, 4
      %v311 = vand.u32 %v309, 15
      %v312 = vsub.s32 0, %v311
      %v313 = vsel %vm307, %v312, %v311
      %vm314 = vcmp.lt.s32.totalorder %v234, 0
      %v315 = vsub.s32 0, %v234
      %v316 = vsel %vm314, %v315, %v234
      %v317 = vshrl.u32 %v316, 4
      %v318 = vand.u32 %v316, 15
      %v319 = vsub.s32 0, %v318
      %v320 = vsel %vm314, %v319, %v318
      %vm321 = vcmp.lt.s32.totalorder %v235, 0
      %v322 = vsub.s32 0, %v235
      %v323 = vsel %vm321, %v322, %v235
      %v324 = vshrl.u32 %v323, 4
      %v325 = vand.u32 %v323, 15
      %v326 = vsub.s32 0, %v325
      %v327 = vsel %vm321, %v326, %v325
      %vm328 = vcmp.lt.s32.totalorder %v236, 0
      %v329 = vsub.s32 0, %v236
      %v330 = vsel %vm328, %v329, %v236
      %v331 = vshrl.u32 %v330, 4
      %v332 = vand.u32 %v330, 15
      %v333 = vsub.s32 0, %v332
      %v334 = vsel %vm328, %v333, %v332
      %vm335 = vcmp.lt.s32.totalorder %v237, 0
      %v336 = vsub.s32 0, %v237
      %v337 = vsel %vm335, %v336, %v237
      %v338 = vshrl.u32 %v337, 4
      %v339 = vand.u32 %v337, 15
      %v340 = vsub.s32 0, %v339
      %v341 = vsel %vm335, %v340, %v339
      %vm342 = vcmp.lt.s32.totalorder %v238, 0
      %v343 = vsub.s32 0, %v238
      %v344 = vsel %vm342, %v343, %v238
      %v345 = vshrl.u32 %v344, 4
      %v346 = vand.u32 %v344, 15
      %v347 = vsub.s32 0, %v346
      %v348 = vsel %vm342, %v347, %v346
      %vm349 = vcmp.lt.s32.totalorder %v239, 0
      %v350 = vsub.s32 0, %v239
      %v351 = vsel %vm349, %v350, %v239
      %v352 = vshrl.u32 %v351, 4
      %v353 = vand.u32 %v351, 15
      %v354 = vsub.s32 0, %v353
      %v355 = vsel %vm349, %v354, %v353
      %vm356 = vcmp.lt.s32.totalorder %v240, 0
      %v357 = vsub.s32 0, %v240
      %v358 = vsel %vm356, %v357, %v240
      %v359 = vshrl.u32 %v358, 4
      %v360 = vand.u32 %v358, 15
      %v361 = vsub.s32 0, %v360
      %v362 = vsel %vm356, %v361, %v360
      %vm363 = vcmp.lt.s32.totalorder %v241, 0
      %v364 = vsub.s32 0, %v241
      %v365 = vsel %vm363, %v364, %v241
      %v366 = vshrl.u32 %v365, 4
      %v367 = vand.u32 %v365, 15
      %v368 = vsub.s32 0, %v367
      %v369 = vsel %vm363, %v368, %v367
      %vm370 = vcmp.lt.s32.totalorder %v242, 0
      %v371 = vsub.s32 0, %v242
      %v372 = vsel %vm370, %v371, %v242
      %v373 = vshrl.u32 %v372, 4
      %v374 = vand.u32 %v372, 15
      %v375 = vsub.s32 0, %v374
      %v376 = vsel %vm370, %v375, %v374
      %vm377 = vcmp.lt.s32.totalorder %v243, 0
      %v378 = vsub.s32 0, %v243
      %v379 = vsel %vm377, %v378, %v243
      %v380 = vshrl.u32 %v379, 4
      %v381 = vand.u32 %v379, 15
      %v382 = vsub.s32 0, %v381
      %v383 = vsel %vm377, %v382, %v381
      %vm384 = vcmp.lt.s32.totalorder %v244, 0
      %v385 = vsub.s32 0, %v244
      %v386 = vsel %vm384, %v385, %v244
      %v387 = vshrl.u32 %v386, 4
      %v388 = vand.u32 %v386, 15
      %v389 = vsub.s32 0, %v388
      %v390 = vsel %vm384, %v389, %v388
      %vm391 = vcmp.lt.s32.totalorder %v245, 0
      %v392 = vsub.s32 0, %v245
      %v393 = vsel %vm391, %v392, %v245
      %v394 = vshrl.u32 %v393, 4
      %v395 = vand.u32 %v393, 15
      %v396 = vsub.s32 0, %v395
      %v397 = vsel %vm391, %v396, %v395
      %vm398 = vcmp.lt.s32.totalorder %v246, 0
      %v399 = vsub.s32 0, %v246
      %v400 = vsel %vm398, %v399, %v246
      %v401 = vshrl.u32 %v400, 4
      %v402 = vand.u32 %v400, 15
      %v403 = vsub.s32 0, %v402
      %v404 = vsel %vm398, %v403, %v402
      %vm405 = vcmp.lt.s32.totalorder %v247, 0
      %v406 = vsub.s32 0, %v247
      %v407 = vsel %vm405, %v406, %v247
      %v408 = vshrl.u32 %v407, 4
      %v409 = vand.u32 %v407, 15
      %v410 = vsub.s32 0, %v409
      %v411 = vsel %vm405, %v410, %v409
      %vm412 = vcmp.lt.s32.totalorder %v248, 0
      %v413 = vsub.s32 0, %v248
      %v414 = vsel %vm412, %v413, %v248
      %v415 = vshrl.u32 %v414, 4
      %v416 = vand.u32 %v414, 15
      %v417 = vsub.s32 0, %v416
      %v418 = vsel %vm412, %v417, %v416
      %vm419 = vcmp.lt.s32.totalorder %v249, 0
      %v420 = vsub.s32 0, %v249
      %v421 = vsel %vm419, %v420, %v249
      %v422 = vshrl.u32 %v421, 4
      %v423 = vand.u32 %v421, 15
      %v424 = vsub.s32 0, %v423
      %v425 = vsel %vm419, %v424, %v423
      %vm426 = vcmp.lt.s32.totalorder %v250, 0
      %v427 = vsub.s32 0, %v250
      %v428 = vsel %vm426, %v427, %v250
      %v429 = vshrl.u32 %v428, 4
      %v430 = vand.u32 %v428, 15
      %v431 = vsub.s32 0, %v430
      %v432 = vsel %vm426, %v431, %v430
      %vm433 = vcmp.lt.s32.totalorder %v251, 0
      %v434 = vsub.s32 0, %v251
      %v435 = vsel %vm433, %v434, %v251
      %v436 = vshrl.u32 %v435, 4
      %v437 = vand.u32 %v435, 15
      %v438 = vsub.s32 0, %v437
      %v439 = vsel %vm433, %v438, %v437
      %vm440 = vcmp.lt.s32.totalorder %v252, 0
      %v441 = vsub.s32 0, %v252
      %v442 = vsel %vm440, %v441, %v252
      %v443 = vshrl.u32 %v442, 4
      %v444 = vand.u32 %v442, 15
      %v445 = vsub.s32 0, %v444
      %v446 = vsel %vm440, %v445, %v444
      %vm447 = vcmp.lt.s32.totalorder %v253, 0
      %v448 = vsub.s32 0, %v253
      %v449 = vsel %vm447, %v448, %v253
      %v450 = vshrl.u32 %v449, 4
      %v451 = vand.u32 %v449, 15
      %v452 = vsub.s32 0, %v451
      %v453 = vsel %vm447, %v452, %v451
      %vm454 = vcmp.lt.s32.totalorder %v254, 0
      %v455 = vsub.s32 0, %v254
      %v456 = vsel %vm454, %v455, %v254
      %v457 = vshrl.u32 %v456, 4
      %v458 = vand.u32 %v456, 15
      %v459 = vsub.s32 0, %v458
      %v460 = vsel %vm454, %v459, %v458
      %vm461 = vcmp.lt.s32.totalorder %v255, 0
      %v462 = vsub.s32 0, %v255
      %v463 = vsel %vm461, %v462, %v255
      %v464 = vshrl.u32 %v463, 4
      %v465 = vand.u32 %v463, 15
      %v466 = vsub.s32 0, %v465
      %v467 = vsel %vm461, %v466, %v465
      %vm468 = vcmp.lt.s32.totalorder %v256, 0
      %v469 = vsub.s32 0, %v256
      %v470 = vsel %vm468, %v469, %v256
      %v471 = vshrl.u32 %v470, 4
      %v472 = vand.u32 %v470, 15
      %v473 = vsub.s32 0, %v472
      %v474 = vsel %vm468, %v473, %v472
      %vm475 = vcmp.lt.s32.totalorder %v257, 0
      %v476 = vsub.s32 0, %v257
      %v477 = vsel %vm475, %v476, %v257
      %v478 = vshrl.u32 %v477, 4
      %v479 = vand.u32 %v477, 15
      %v480 = vsub.s32 0, %v479
      %v481 = vsel %vm475, %v480, %v479
      %vm482 = vcmp.ne.s32.totalorder %v264, 0
      %vm483 = vcmp.ne.s32.totalorder %v271, 0
      %vm484 = vcmp.ne.s32.totalorder %v278, 0
      %vm485 = vcmp.ne.s32.totalorder %v285, 0
      %vm486 = vcmp.ne.s32.totalorder %v292, 0
      %vm487 = vcmp.ne.s32.totalorder %v299, 0
      %vm488 = vcmp.ne.s32.totalorder %v306, 0
      %vm489 = vcmp.ne.s32.totalorder %v313, 0
      %vm490 = vcmp.ne.s32.totalorder %v320, 0
      %vm491 = vcmp.ne.s32.totalorder %v327, 0
      %vm492 = vcmp.ne.s32.totalorder %v334, 0
      %vm493 = vcmp.ne.s32.totalorder %v341, 0
      %vm494 = vcmp.ne.s32.totalorder %v348, 0
      %vm495 = vcmp.ne.s32.totalorder %v355, 0
      %vm496 = vcmp.ne.s32.totalorder %v362, 0
      %vm497 = vcmp.ne.s32.totalorder %v369, 0
      %vm498 = vcmp.ne.s32.totalorder %v376, 0
      %vm499 = vcmp.ne.s32.totalorder %v383, 0
      %vm500 = vcmp.ne.s32.totalorder %v390, 0
      %vm501 = vcmp.ne.s32.totalorder %v397, 0
      %vm502 = vcmp.ne.s32.totalorder %v404, 0
      %vm503 = vcmp.ne.s32.totalorder %v411, 0
      %vm504 = vcmp.ne.s32.totalorder %v418, 0
      %vm505 = vcmp.ne.s32.totalorder %v425, 0
      %vm506 = vcmp.ne.s32.totalorder %v432, 0
      %vm507 = vcmp.ne.s32.totalorder %v439, 0
      %vm508 = vcmp.ne.s32.totalorder %v446, 0
      %vm509 = vcmp.ne.s32.totalorder %v453, 0
      %vm510 = vcmp.ne.s32.totalorder %v460, 0
      %vm511 = vcmp.ne.s32.totalorder %v467, 0
      %vm512 = vcmp.ne.s32.totalorder %v474, 0
      %vm513 = vcmp.ne.s32.totalorder %v481, 0
      %vm514 = vcmp.lt.s32.totalorder %v264, 0
      %vm515 = vcmp.lt.s32.totalorder %v271, 0
      %vm516 = vcmp.lt.s32.totalorder %v278, 0
      %vm517 = vcmp.lt.s32.totalorder %v285, 0
      %vm518 = vcmp.lt.s32.totalorder %v292, 0
      %vm519 = vcmp.lt.s32.totalorder %v299, 0
      %vm520 = vcmp.lt.s32.totalorder %v306, 0
      %vm521 = vcmp.lt.s32.totalorder %v313, 0
      %vm522 = vcmp.lt.s32.totalorder %v320, 0
      %vm523 = vcmp.lt.s32.totalorder %v327, 0
      %vm524 = vcmp.lt.s32.totalorder %v334, 0
      %vm525 = vcmp.lt.s32.totalorder %v341, 0
      %vm526 = vcmp.lt.s32.totalorder %v348, 0
      %vm527 = vcmp.lt.s32.totalorder %v355, 0
      %vm528 = vcmp.lt.s32.totalorder %v362, 0
      %vm529 = vcmp.lt.s32.totalorder %v369, 0
      %vm530 = vcmp.lt.s32.totalorder %v376, 0
      %vm531 = vcmp.lt.s32.totalorder %v383, 0
      %vm532 = vcmp.lt.s32.totalorder %v390, 0
      %vm533 = vcmp.lt.s32.totalorder %v397, 0
      %vm534 = vcmp.lt.s32.totalorder %v404, 0
      %vm535 = vcmp.lt.s32.totalorder %v411, 0
      %vm536 = vcmp.lt.s32.totalorder %v418, 0
      %vm537 = vcmp.lt.s32.totalorder %v425, 0
      %vm538 = vcmp.lt.s32.totalorder %v432, 0
      %vm539 = vcmp.lt.s32.totalorder %v439, 0
      %vm540 = vcmp.lt.s32.totalorder %v446, 0
      %vm541 = vcmp.lt.s32.totalorder %v453, 0
      %vm542 = vcmp.lt.s32.totalorder %v460, 0
      %vm543 = vcmp.lt.s32.totalorder %v467, 0
      %vm544 = vcmp.lt.s32.totalorder %v474, 0
      %vm545 = vcmp.lt.s32.totalorder %v481, 0
      %vm546 = vmand %vm514, %vm482
      %vm547 = vmand %vm515, %vm483
      %vm548 = vmand %vm516, %vm484
      %vm549 = vmand %vm517, %vm485
      %vm550 = vmand %vm518, %vm486
      %vm551 = vmand %vm519, %vm487
      %vm552 = vmand %vm520, %vm488
      %vm553 = vmand %vm521, %vm489
      %vm554 = vmand %vm522, %vm490
      %vm555 = vmand %vm523, %vm491
      %vm556 = vmand %vm524, %vm492
      %vm557 = vmand %vm525, %vm493
      %vm558 = vmand %vm526, %vm494
      %vm559 = vmand %vm527, %vm495
      %vm560 = vmand %vm528, %vm496
      %vm561 = vmand %vm529, %vm497
      %vm562 = vmand %vm530, %vm498
      %vm563 = vmand %vm531, %vm499
      %vm564 = vmand %vm532, %vm500
      %vm565 = vmand %vm533, %vm501
      %vm566 = vmand %vm534, %vm502
      %vm567 = vmand %vm535, %vm503
      %vm568 = vmand %vm536, %vm504
      %vm569 = vmand %vm537, %vm505
      %vm570 = vmand %vm538, %vm506
      %vm571 = vmand %vm539, %vm507
      %vm572 = vmand %vm540, %vm508
      %vm573 = vmand %vm541, %vm509
      %vm574 = vmand %vm542, %vm510
      %vm575 = vmand %vm543, %vm511
      %vm576 = vmand %vm544, %vm512
      %vm577 = vmand %vm545, %vm513
      %v578 = vadd.s32 %v264, 16
      %v579 = vadd.s32 %v271, 16
      %v580 = vadd.s32 %v278, 16
      %v581 = vadd.s32 %v285, 16
      %v582 = vadd.s32 %v292, 16
      %v583 = vadd.s32 %v299, 16
      %v584 = vadd.s32 %v306, 16
      %v585 = vadd.s32 %v313, 16
      %v586 = vadd.s32 %v320, 16
      %v587 = vadd.s32 %v327, 16
      %v588 = vadd.s32 %v334, 16
      %v589 = vadd.s32 %v341, 16
      %v590 = vadd.s32 %v348, 16
      %v591 = vadd.s32 %v355, 16
      %v592 = vadd.s32 %v362, 16
      %v593 = vadd.s32 %v369, 16
      %v594 = vadd.s32 %v376, 16
      %v595 = vadd.s32 %v383, 16
      %v596 = vadd.s32 %v390, 16
      %v597 = vadd.s32 %v397, 16
      %v598 = vadd.s32 %v404, 16
      %v599 = vadd.s32 %v411, 16
      %v600 = vadd.s32 %v418, 16
      %v601 = vadd.s32 %v425, 16
      %v602 = vadd.s32 %v432, 16
      %v603 = vadd.s32 %v439, 16
      %v604 = vadd.s32 %v446, 16
      %v605 = vadd.s32 %v453, 16
      %v606 = vadd.s32 %v460, 16
      %v607 = vadd.s32 %v467, 16
      %v608 = vadd.s32 %v474, 16
      %v609 = vadd.s32 %v481, 16
      %v610 = vsel %vm546, %v578, %v264
      %v611 = vsel %vm547, %v579, %v271
      %v612 = vsel %vm548, %v580, %v278
      %v613 = vsel %vm549, %v581, %v285
      %v614 = vsel %vm550, %v582, %v292
      %v615 = vsel %vm551, %v583, %v299
      %v616 = vsel %vm552, %v584, %v306
      %v617 = vsel %vm553, %v585, %v313
      %v618 = vsel %vm554, %v586, %v320
      %v619 = vsel %vm555, %v587, %v327
      %v620 = vsel %vm556, %v588, %v334
      %v621 = vsel %vm557, %v589, %v341
      %v622 = vsel %vm558, %v590, %v348
      %v623 = vsel %vm559, %v591, %v355
      %v624 = vsel %vm560, %v592, %v362
      %v625 = vsel %vm561, %v593, %v369
      %v626 = vsel %vm562, %v594, %v376
      %v627 = vsel %vm563, %v595, %v383
      %v628 = vsel %vm564, %v596, %v390
      %v629 = vsel %vm565, %v597, %v397
      %v630 = vsel %vm566, %v598, %v404
      %v631 = vsel %vm567, %v599, %v411
      %v632 = vsel %vm568, %v600, %v418
      %v633 = vsel %vm569, %v601, %v425
      %v634 = vsel %vm570, %v602, %v432
      %v635 = vsel %vm571, %v603, %v439
      %v636 = vsel %vm572, %v604, %v446
      %v637 = vsel %vm573, %v605, %v453
      %v638 = vsel %vm574, %v606, %v460
      %v639 = vsel %vm575, %v607, %v467
      %v640 = vsel %vm576, %v608, %v474
      %v641 = vsel %vm577, %v609, %v481
      %vm642 = vcmp.ge.s32.totalorder %v610, 1
      %vm643 = vcmp.ge.s32.totalorder %v611, 1
      %vm644 = vcmp.ge.s32.totalorder %v612, 1
      %vm645 = vcmp.ge.s32.totalorder %v613, 1
      %vm646 = vcmp.ge.s32.totalorder %v614, 1
      %vm647 = vcmp.ge.s32.totalorder %v615, 1
      %vm648 = vcmp.ge.s32.totalorder %v616, 1
      %vm649 = vcmp.ge.s32.totalorder %v617, 1
      %vm650 = vcmp.ge.s32.totalorder %v618, 1
      %vm651 = vcmp.ge.s32.totalorder %v619, 1
      %vm652 = vcmp.ge.s32.totalorder %v620, 1
      %vm653 = vcmp.ge.s32.totalorder %v621, 1
      %vm654 = vcmp.ge.s32.totalorder %v622, 1
      %vm655 = vcmp.ge.s32.totalorder %v623, 1
      %vm656 = vcmp.ge.s32.totalorder %v624, 1
      %vm657 = vcmp.ge.s32.totalorder %v625, 1
      %vm658 = vcmp.ge.s32.totalorder %v626, 1
      %vm659 = vcmp.ge.s32.totalorder %v627, 1
      %vm660 = vcmp.ge.s32.totalorder %v628, 1
      %vm661 = vcmp.ge.s32.totalorder %v629, 1
      %vm662 = vcmp.ge.s32.totalorder %v630, 1
      %vm663 = vcmp.ge.s32.totalorder %v631, 1
      %vm664 = vcmp.ge.s32.totalorder %v632, 1
      %vm665 = vcmp.ge.s32.totalorder %v633, 1
      %vm666 = vcmp.ge.s32.totalorder %v634, 1
      %vm667 = vcmp.ge.s32.totalorder %v635, 1
      %vm668 = vcmp.ge.s32.totalorder %v636, 1
      %vm669 = vcmp.ge.s32.totalorder %v637, 1
      %vm670 = vcmp.ge.s32.totalorder %v638, 1
      %vm671 = vcmp.ge.s32.totalorder %v639, 1
      %vm672 = vcmp.ge.s32.totalorder %v640, 1
      %vm673 = vcmp.ge.s32.totalorder %v641, 1
      %vm674 = vcmp.le.s32.totalorder %v610, 14
      %vm675 = vcmp.le.s32.totalorder %v611, 14
      %vm676 = vcmp.le.s32.totalorder %v612, 14
      %vm677 = vcmp.le.s32.totalorder %v613, 14
      %vm678 = vcmp.le.s32.totalorder %v614, 14
      %vm679 = vcmp.le.s32.totalorder %v615, 14
      %vm680 = vcmp.le.s32.totalorder %v616, 14
      %vm681 = vcmp.le.s32.totalorder %v617, 14
      %vm682 = vcmp.le.s32.totalorder %v618, 14
      %vm683 = vcmp.le.s32.totalorder %v619, 14
      %vm684 = vcmp.le.s32.totalorder %v620, 14
      %vm685 = vcmp.le.s32.totalorder %v621, 14
      %vm686 = vcmp.le.s32.totalorder %v622, 14
      %vm687 = vcmp.le.s32.totalorder %v623, 14
      %vm688 = vcmp.le.s32.totalorder %v624, 14
      %vm689 = vcmp.le.s32.totalorder %v625, 14
      %vm690 = vcmp.le.s32.totalorder %v626, 14
      %vm691 = vcmp.le.s32.totalorder %v627, 14
      %vm692 = vcmp.le.s32.totalorder %v628, 14
      %vm693 = vcmp.le.s32.totalorder %v629, 14
      %vm694 = vcmp.le.s32.totalorder %v630, 14
      %vm695 = vcmp.le.s32.totalorder %v631, 14
      %vm696 = vcmp.le.s32.totalorder %v632, 14
      %vm697 = vcmp.le.s32.totalorder %v633, 14
      %vm698 = vcmp.le.s32.totalorder %v634, 14
      %vm699 = vcmp.le.s32.totalorder %v635, 14
      %vm700 = vcmp.le.s32.totalorder %v636, 14
      %vm701 = vcmp.le.s32.totalorder %v637, 14
      %vm702 = vcmp.le.s32.totalorder %v638, 14
      %vm703 = vcmp.le.s32.totalorder %v639, 14
      %vm704 = vcmp.le.s32.totalorder %v640, 14
      %vm705 = vcmp.le.s32.totalorder %v641, 14
      %vm706 = vcmask 64512
      %707 = vst.msk [vmem:[#allocation2] sm:$0xff] %vm706, 0.0
      %708 = vst.msk [vmem:[#allocation2 + $0x8] sm:$0xff] %vm706, 0.0
      %709 = vst.msk [vmem:[#allocation2 + $0x10] sm:$0xff] %vm706, 0.0
      %710 = vst.msk [vmem:[#allocation2 + $0x118] sm:$0xff] %vm706, 0.0
      %711 = vst.msk [vmem:[#allocation2 + $0x120] sm:$0xff] %vm706, 0.0
      %712 = vst.msk [vmem:[#allocation2 + $0x128] sm:$0xff] %vm706, 0.0
      %v713 = vld [vmem:[%s219 + $0x7] sm:$0xff]
      %v714 = vld [vmem:[%s219 + $0xf] sm:$0xff]
      %v715 = vld [vmem:[%s219 + $0x17] sm:$0xff]
      %v716 = vld [vmem:[%s219 + $0x1f] sm:$0xff]
      %v717 = vld [vmem:[%s219 + $0x27] sm:$0xff]
      %v718 = vld [vmem:[%s219 + $0x2f] sm:$0xff]
      %v719 = vld [vmem:[%s219 + $0x37] sm:$0xff]
      %v720 = vld [vmem:[%s219 + $0x3f] sm:$0xff]
      %v721 = vld [vmem:[%s219 + $0x47] sm:$0xff]
      %v722 = vld [vmem:[%s219 + $0x4f] sm:$0xff]
      %v723 = vld [vmem:[%s219 + $0x57] sm:$0xff]
      %v724 = vld [vmem:[%s219 + $0x5f] sm:$0xff]
      %v725 = vld [vmem:[%s219 + $0x67] sm:$0xff]
      %v726 = vld [vmem:[%s219 + $0x6f] sm:$0xff]
      %v727 = vld [vmem:[%s219 + $0x77] sm:$0xff]
      %v728 = vld [vmem:[%s219 + $0x7f] sm:$0xff]
      %v729 = vld [vmem:[%s219 + $0x87] sm:$0xff]
      %v730 = vld [vmem:[%s219 + $0x8f] sm:$0xff]
      %v731 = vld [vmem:[%s219 + $0x97] sm:$0xff]
      %v732 = vld [vmem:[%s219 + $0x9f] sm:$0xff]
      %v733 = vld [vmem:[%s219 + $0xa7] sm:$0xff]
      %v734 = vld [vmem:[%s219 + $0xaf] sm:$0xff]
      %v735 = vld [vmem:[%s219 + $0xb7] sm:$0xff]
      %v736 = vld [vmem:[%s219 + $0xbf] sm:$0xff]
      %v737 = vld [vmem:[%s219 + $0xc7] sm:$0xff]
      %v738 = vld [vmem:[%s219 + $0xcf] sm:$0xff]
      %v739 = vld [vmem:[%s219 + $0xd7] sm:$0xff]
      %v740 = vld [vmem:[%s219 + $0xdf] sm:$0xff]
      %v741 = vld [vmem:[%s219 + $0xe7] sm:$0xff]
      %v742 = vld [vmem:[%s219 + $0xef] sm:$0xff]
      %v743 = vld [vmem:[%s219 + $0xf7] sm:$0xff]
      %v744 = vld [vmem:[%s219 + $0xff] sm:$0xff]
      %v745 = vsel %vm642, 1, 0
      %v746 = vsel %vm643, 1, 0
      %v747 = vsel %vm644, 1, 0
      %v748 = vsel %vm645, 1, 0
      %v749 = vsel %vm646, 1, 0
      %v750 = vsel %vm647, 1, 0
      %v751 = vsel %vm648, 1, 0
      %v752 = vsel %vm649, 1, 0
      %v753 = vsel %vm650, 1, 0
      %v754 = vsel %vm651, 1, 0
      %v755 = vsel %vm652, 1, 0
      %v756 = vsel %vm653, 1, 0
      %v757 = vsel %vm654, 1, 0
      %v758 = vsel %vm655, 1, 0
      %v759 = vsel %vm656, 1, 0
      %v760 = vsel %vm657, 1, 0
      %v761 = vsel %vm658, 1, 0
      %v762 = vsel %vm659, 1, 0
      %v763 = vsel %vm660, 1, 0
      %v764 = vsel %vm661, 1, 0
      %v765 = vsel %vm662, 1, 0
      %v766 = vsel %vm663, 1, 0
      %v767 = vsel %vm664, 1, 0
      %v768 = vsel %vm665, 1, 0
      %v769 = vsel %vm666, 1, 0
      %v770 = vsel %vm667, 1, 0
      %v771 = vsel %vm668, 1, 0
      %v772 = vsel %vm669, 1, 0
      %v773 = vsel %vm670, 1, 0
      %v774 = vsel %vm671, 1, 0
      %v775 = vsel %vm672, 1, 0
      %v776 = vsel %vm673, 1, 0
      %vm777 = vcmp.eq.s32.totalorder %v745, 1
      %vm778 = vcmp.eq.s32.totalorder %v746, 1
      %vm779 = vcmp.eq.s32.totalorder %v747, 1
      %vm780 = vcmp.eq.s32.totalorder %v748, 1
      %vm781 = vcmp.eq.s32.totalorder %v749, 1
      %vm782 = vcmp.eq.s32.totalorder %v750, 1
      %vm783 = vcmp.eq.s32.totalorder %v751, 1
      %vm784 = vcmp.eq.s32.totalorder %v752, 1
      %vm785 = vcmp.eq.s32.totalorder %v753, 1
      %vm786 = vcmp.eq.s32.totalorder %v754, 1
      %vm787 = vcmp.eq.s32.totalorder %v755, 1
      %vm788 = vcmp.eq.s32.totalorder %v756, 1
      %vm789 = vcmp.eq.s32.totalorder %v757, 1
      %vm790 = vcmp.eq.s32.totalorder %v758, 1
      %vm791 = vcmp.eq.s32.totalorder %v759, 1
      %vm792 = vcmp.eq.s32.totalorder %v760, 1
      %vm793 = vcmp.eq.s32.totalorder %v761, 1
      %vm794 = vcmp.eq.s32.totalorder %v762, 1
      %vm795 = vcmp.eq.s32.totalorder %v763, 1
      %vm796 = vcmp.eq.s32.totalorder %v764, 1
      %vm797 = vcmp.eq.s32.totalorder %v765, 1
      %vm798 = vcmp.eq.s32.totalorder %v766, 1
      %vm799 = vcmp.eq.s32.totalorder %v767, 1
      %vm800 = vcmp.eq.s32.totalorder %v768, 1
      %vm801 = vcmp.eq.s32.totalorder %v769, 1
      %vm802 = vcmp.eq.s32.totalorder %v770, 1
      %vm803 = vcmp.eq.s32.totalorder %v771, 1
      %vm804 = vcmp.eq.s32.totalorder %v772, 1
      %vm805 = vcmp.eq.s32.totalorder %v773, 1
      %vm806 = vcmp.eq.s32.totalorder %v774, 1
      %vm807 = vcmp.eq.s32.totalorder %v775, 1
      %vm808 = vcmp.eq.s32.totalorder %v776, 1
      %v809 = vsel %vm777, %v713, 0.0
      %v810 = vsel %vm778, %v714, 0.0
      %v811 = vsel %vm779, %v715, 0.0
      %v812 = vsel %vm780, %v716, 0.0
      %v813 = vsel %vm781, %v717, 0.0
      %v814 = vsel %vm782, %v718, 0.0
      %v815 = vsel %vm783, %v719, 0.0
      %v816 = vsel %vm784, %v720, 0.0
      %v817 = vsel %vm785, %v721, 0.0
      %v818 = vsel %vm786, %v722, 0.0
      %v819 = vsel %vm787, %v723, 0.0
      %v820 = vsel %vm788, %v724, 0.0
      %v821 = vsel %vm789, %v725, 0.0
      %v822 = vsel %vm790, %v726, 0.0
      %v823 = vsel %vm791, %v727, 0.0
      %v824 = vsel %vm792, %v728, 0.0
      %v825 = vsel %vm793, %v729, 0.0
      %v826 = vsel %vm794, %v730, 0.0
      %v827 = vsel %vm795, %v731, 0.0
      %v828 = vsel %vm796, %v732, 0.0
      %v829 = vsel %vm797, %v733, 0.0
      %v830 = vsel %vm798, %v734, 0.0
      %v831 = vsel %vm799, %v735, 0.0
      %v832 = vsel %vm800, %v736, 0.0
      %v833 = vsel %vm801, %v737, 0.0
      %v834 = vsel %vm802, %v738, 0.0
      %v835 = vsel %vm803, %v739, 0.0
      %v836 = vsel %vm804, %v740, 0.0
      %v837 = vsel %vm805, %v741, 0.0
      %v838 = vsel %vm806, %v742, 0.0
      %v839 = vsel %vm807, %v743, 0.0
      %v840 = vsel %vm808, %v744, 0.0
      %v841 = vld [vmem:[%s1] sm:$0xf]
      %v842 = vld [vmem:[%s219 + $0x8] sm:$0xff]
      %v843 = vld [vmem:[%s219 + $0x10] sm:$0xff]
      %v844 = vld [vmem:[%s219 + $0x18] sm:$0xff]
      %v845 = vld [vmem:[%s219 + $0x20] sm:$0xff]
      %v846 = vld [vmem:[%s219 + $0x28] sm:$0xff]
      %v847 = vld [vmem:[%s219 + $0x30] sm:$0xff]
      %v848 = vld [vmem:[%s219 + $0x38] sm:$0xff]
      %v849 = vld [vmem:[%s219 + $0x40] sm:$0xff]
      %v850 = vld [vmem:[%s219 + $0x48] sm:$0xff]
      %v851 = vld [vmem:[%s219 + $0x50] sm:$0xff]
      %v852 = vld [vmem:[%s219 + $0x58] sm:$0xff]
      %v853 = vld [vmem:[%s219 + $0x60] sm:$0xff]
      %v854 = vld [vmem:[%s219 + $0x68] sm:$0xff]
      %v855 = vld [vmem:[%s219 + $0x70] sm:$0xff]
      %v856 = vld [vmem:[%s219 + $0x78] sm:$0xff]
      %v857 = vld [vmem:[%s219 + $0x80] sm:$0xff]
      %v858 = vld [vmem:[%s219 + $0x88] sm:$0xff]
      %v859 = vld [vmem:[%s219 + $0x90] sm:$0xff]
      %v860 = vld [vmem:[%s219 + $0x98] sm:$0xff]
      %v861 = vld [vmem:[%s219 + $0xa0] sm:$0xff]
      %v862 = vld [vmem:[%s219 + $0xa8] sm:$0xff]
      %v863 = vld [vmem:[%s219 + $0xb0] sm:$0xff]
      %v864 = vld [vmem:[%s219 + $0xb8] sm:$0xff]
      %v865 = vld [vmem:[%s219 + $0xc0] sm:$0xff]
      %v866 = vld [vmem:[%s219 + $0xc8] sm:$0xff]
      %v867 = vld [vmem:[%s219 + $0xd0] sm:$0xff]
      %v868 = vld [vmem:[%s219 + $0xd8] sm:$0xff]
      %v869 = vld [vmem:[%s219 + $0xe0] sm:$0xff]
      %v870 = vld [vmem:[%s219 + $0xe8] sm:$0xff]
      %v871 = vld [vmem:[%s219 + $0xf0] sm:$0xff]
      %v872 = vld [vmem:[%s219 + $0xf8] sm:$0xff]
      %v873 = vld [vmem:[%s219 + $0x100] sm:$0xff]
      %s874 = scalar_lea.vmem %s1, 4
      %v875 = vld [vmem:[%s874] sm:$0xf]
      %vm876 = vcmask 31744
      %v878 = vsel %vm876, %v842, 0
      %v881 = vsel %vm876, %v843, 0
      %v884 = vsel %vm876, %v844, 0
      %v887 = vsel %vm876, %v845, 0
      %v890 = vsel %vm876, %v846, 0
      %v893 = vsel %vm876, %v847, 0
      %v896 = vsel %vm876, %v848, 0
      %v899 = vsel %vm876, %v849, 0
      %v902 = vsel %vm876, %v850, 0
      %v905 = vsel %vm876, %v851, 0
      %v908 = vsel %vm876, %v852, 0
      %v911 = vsel %vm876, %v853, 0
      %v914 = vsel %vm876, %v854, 0
      %v917 = vsel %vm876, %v855, 0
      %v920 = vsel %vm876, %v856, 0
      %v923 = vsel %vm876, %v857, 0
      %v926 = vsel %vm876, %v858, 0
      %v929 = vsel %vm876, %v859, 0
      %v932 = vsel %vm876, %v860, 0
      %v935 = vsel %vm876, %v861, 0
      %v938 = vsel %vm876, %v862, 0
      %v941 = vsel %vm876, %v863, 0
      %v944 = vsel %vm876, %v864, 0
      %v947 = vsel %vm876, %v865, 0
      %v950 = vsel %vm876, %v866, 0
      %v953 = vsel %vm876, %v867, 0
      %v956 = vsel %vm876, %v868, 0
      %v959 = vsel %vm876, %v869, 0
      %v962 = vsel %vm876, %v870, 0
      %v965 = vsel %vm876, %v871, 0
      %v968 = vsel %vm876, %v872, 0
      %v971 = vsel %vm876, %v873, 0
      %vm973 = vcmask 1043456
      %v975 = vsel %vm973, %v875, 0
      %977 = vmatpush.msra.mxu0 0.0
      %978 = vmatpush.msra.mxu0 0.0
      %979 = vmatpush.msra.mxu0 0.0
      %980 = vmatpush.msra.mxu0 0.0
      %981 = vmatpush.msra.mxu0 0.0
      %982 = vmatpush.msra.mxu0 0.0
      %983 = vmatpush.msra.mxu0 0.0
      %984 = vmatpush.msra.mxu0 0.0
      %985 = vmatpush.msra.mxu0 0.0
      %986 = vmatpush.msra.mxu0 0.0
      %987 = vmatpush.msra.mxu0 0.0
      %988 = vmatpush.msra.mxu0 0.0
      %989 = vmatpush.msra.mxu0 0.0
      %990 = vmatpush.msra.mxu0 0.0
      %991 = vmatpush.msra.mxu0 0.0
      %992 = vmatpush.msra.mxu0 %v975
      %993 = vmatmul.f32.gmra.mxu0 %v878
      %v994 = vpop.f32.mrf.mxu0
      %v995 = vadd.f32 0.0, %v994
      %996 = vmatmul.f32.gmra.mxu0 %v881
      %v997 = vpop.f32.mrf.mxu0
      %v998 = vadd.f32 0.0, %v997
      %999 = vmatmul.f32.gmra.mxu0 %v884
      %v1000 = vpop.f32.mrf.mxu0
      %v1001 = vadd.f32 0.0, %v1000
      %1002 = vmatmul.f32.gmra.mxu0 %v887
      %v1003 = vpop.f32.mrf.mxu0
      %v1004 = vadd.f32 0.0, %v1003
      %1005 = vmatmul.f32.gmra.mxu0 %v890
      %v1006 = vpop.f32.mrf.mxu0
      %v1007 = vadd.f32 0.0, %v1006
      %1008 = vmatmul.f32.gmra.mxu0 %v893
      %v1009 = vpop.f32.mrf.mxu0
      %v1010 = vadd.f32 0.0, %v1009
      %1011 = vmatmul.f32.gmra.mxu0 %v896
      %v1012 = vpop.f32.mrf.mxu0
      %v1013 = vadd.f32 0.0, %v1012
      %1014 = vmatmul.f32.gmra.mxu0 %v899
      %v1015 = vpop.f32.mrf.mxu0
      %v1016 = vadd.f32 0.0, %v1015
      %1017 = vmatmul.f32.gmra.mxu0 %v902
      %v1018 = vpop.f32.mrf.mxu0
      %v1019 = vadd.f32 0.0, %v1018
      %1020 = vmatmul.f32.gmra.mxu0 %v905
      %v1021 = vpop.f32.mrf.mxu0
      %v1022 = vadd.f32 0.0, %v1021
      %1023 = vmatmul.f32.gmra.mxu0 %v908
      %v1024 = vpop.f32.mrf.mxu0
      %v1025 = vadd.f32 0.0, %v1024
      %1026 = vmatmul.f32.gmra.mxu0 %v911
      %v1027 = vpop.f32.mrf.mxu0
      %v1028 = vadd.f32 0.0, %v1027
      %1029 = vmatmul.f32.gmra.mxu0 %v914
      %v1030 = vpop.f32.mrf.mxu0
      %v1031 = vadd.f32 0.0, %v1030
      %1032 = vmatmul.f32.gmra.mxu0 %v917
      %v1033 = vpop.f32.mrf.mxu0
      %v1034 = vadd.f32 0.0, %v1033
      %1035 = vmatmul.f32.gmra.mxu0 %v920
      %v1036 = vpop.f32.mrf.mxu0
      %v1037 = vadd.f32 0.0, %v1036
      %1038 = vmatmul.f32.gmra.mxu0 %v923
      %v1039 = vpop.f32.mrf.mxu0
      %v1040 = vadd.f32 0.0, %v1039
      %1041 = vmatmul.f32.gmra.mxu0 %v926
      %v1042 = vpop.f32.mrf.mxu0
      %v1043 = vadd.f32 0.0, %v1042
      %1044 = vmatmul.f32.gmra.mxu0 %v929
      %v1045 = vpop.f32.mrf.mxu0
      %v1046 = vadd.f32 0.0, %v1045
      %1047 = vmatmul.f32.gmra.mxu0 %v932
      %v1048 = vpop.f32.mrf.mxu0
      %v1049 = vadd.f32 0.0, %v1048
      %1050 = vmatmul.f32.gmra.mxu0 %v935
      %v1051 = vpop.f32.mrf.mxu0
      %v1052 = vadd.f32 0.0, %v1051
      %1053 = vmatmul.f32.gmra.mxu0 %v938
      %v1054 = vpop.f32.mrf.mxu0
      %v1055 = vadd.f32 0.0, %v1054
      %1056 = vmatmul.f32.gmra.mxu0 %v941
      %v1057 = vpop.f32.mrf.mxu0
      %v1058 = vadd.f32 0.0, %v1057
      %1059 = vmatmul.f32.gmra.mxu0 %v944
      %v1060 = vpop.f32.mrf.mxu0
      %v1061 = vadd.f32 0.0, %v1060
      %1062 = vmatmul.f32.gmra.mxu0 %v947
      %v1063 = vpop.f32.mrf.mxu0
      %v1064 = vadd.f32 0.0, %v1063
      %1065 = vmatmul.f32.gmra.mxu0 %v950
      %v1066 = vpop.f32.mrf.mxu0
      %v1067 = vadd.f32 0.0, %v1066
      %1068 = vmatmul.f32.gmra.mxu0 %v953
      %v1069 = vpop.f32.mrf.mxu0
      %v1070 = vadd.f32 0.0, %v1069
      %1071 = vmatmul.f32.gmra.mxu0 %v956
      %v1072 = vpop.f32.mrf.mxu0
      %v1073 = vadd.f32 0.0, %v1072
      %1074 = vmatmul.f32.gmra.mxu0 %v959
      %v1075 = vpop.f32.mrf.mxu0
      %v1076 = vadd.f32 0.0, %v1075
      %1077 = vmatmul.f32.gmra.mxu0 %v962
      %v1078 = vpop.f32.mrf.mxu0
      %v1079 = vadd.f32 0.0, %v1078
      %1080 = vmatmul.f32.gmra.mxu0 %v965
      %v1081 = vpop.f32.mrf.mxu0
      %v1082 = vadd.f32 0.0, %v1081
      %1083 = vmatmul.f32.gmra.mxu0 %v968
      %v1084 = vpop.f32.mrf.mxu0
      %v1085 = vadd.f32 0.0, %v1084
      %1086 = vmatmul.f32.gmra.mxu0 %v971
      %v1087 = vpop.f32.mrf.mxu0
      %v1088 = vadd.f32 0.0, %v1087
      %1089 = vdwg.mxu0
      %v1091 = vsel %vm876, %v809, 0
      %v1094 = vsel %vm876, %v810, 0
      %v1097 = vsel %vm876, %v811, 0
      %v1100 = vsel %vm876, %v812, 0
      %v1103 = vsel %vm876, %v813, 0
      %v1106 = vsel %vm876, %v814, 0
      %v1109 = vsel %vm876, %v815, 0
      %v1112 = vsel %vm876, %v816, 0
      %v1115 = vsel %vm876, %v817, 0
      %v1118 = vsel %vm876, %v818, 0
      %v1121 = vsel %vm876, %v819, 0
      %v1124 = vsel %vm876, %v820, 0
      %v1127 = vsel %vm876, %v821, 0
      %v1130 = vsel %vm876, %v822, 0
      %v1133 = vsel %vm876, %v823, 0
      %v1136 = vsel %vm876, %v824, 0
      %v1139 = vsel %vm876, %v825, 0
      %v1142 = vsel %vm876, %v826, 0
      %v1145 = vsel %vm876, %v827, 0
      %v1148 = vsel %vm876, %v828, 0
      %v1151 = vsel %vm876, %v829, 0
      %v1154 = vsel %vm876, %v830, 0
      %v1157 = vsel %vm876, %v831, 0
      %v1160 = vsel %vm876, %v832, 0
      %v1163 = vsel %vm876, %v833, 0
      %v1166 = vsel %vm876, %v834, 0
      %v1169 = vsel %vm876, %v835, 0
      %v1172 = vsel %vm876, %v836, 0
      %v1175 = vsel %vm876, %v837, 0
      %v1178 = vsel %vm876, %v838, 0
      %v1181 = vsel %vm876, %v839, 0
      %v1184 = vsel %vm876, %v840, 0
      %v1187 = vsel %vm973, %v841, 0
      %1189 = vmatpush.msra.mxu0 0.0
      %1190 = vmatpush.msra.mxu0 0.0
      %1191 = vmatpush.msra.mxu0 0.0
      %1192 = vmatpush.msra.mxu0 0.0
      %1193 = vmatpush.msra.mxu0 0.0
      %1194 = vmatpush.msra.mxu0 0.0
      %1195 = vmatpush.msra.mxu0 0.0
      %1196 = vmatpush.msra.mxu0 0.0
      %1197 = vmatpush.msra.mxu0 0.0
      %1198 = vmatpush.msra.mxu0 0.0
      %1199 = vmatpush.msra.mxu0 0.0
      %1200 = vmatpush.msra.mxu0 0.0
      %1201 = vmatpush.msra.mxu0 0.0
      %1202 = vmatpush.msra.mxu0 0.0
      %1203 = vmatpush.msra.mxu0 0.0
      %1204 = vmatpush.msra.mxu0 %v1187
      %1205 = vmatmul.f32.gmra.mxu0 %v1091
      %v1206 = vpop.f32.mrf.mxu0
      %v1207 = vadd.f32 %v995, %v1206
      %1208 = vmatmul.f32.gmra.mxu0 %v1094
      %v1209 = vpop.f32.mrf.mxu0
      %v1210 = vadd.f32 %v998, %v1209
      %1211 = vmatmul.f32.gmra.mxu0 %v1097
      %v1212 = vpop.f32.mrf.mxu0
      %v1213 = vadd.f32 %v1001, %v1212
      %1214 = vmatmul.f32.gmra.mxu0 %v1100
      %v1215 = vpop.f32.mrf.mxu0
      %v1216 = vadd.f32 %v1004, %v1215
      %1217 = vmatmul.f32.gmra.mxu0 %v1103
      %v1218 = vpop.f32.mrf.mxu0
      %v1219 = vadd.f32 %v1007, %v1218
      %1220 = vmatmul.f32.gmra.mxu0 %v1106
      %v1221 = vpop.f32.mrf.mxu0
      %v1222 = vadd.f32 %v1010, %v1221
      %1223 = vmatmul.f32.gmra.mxu0 %v1109
      %v1224 = vpop.f32.mrf.mxu0
      %v1225 = vadd.f32 %v1013, %v1224
      %1226 = vmatmul.f32.gmra.mxu0 %v1112
      %v1227 = vpop.f32.mrf.mxu0
      %v1228 = vadd.f32 %v1016, %v1227
      %1229 = vmatmul.f32.gmra.mxu0 %v1115
      %v1230 = vpop.f32.mrf.mxu0
      %v1231 = vadd.f32 %v1019, %v1230
      %1232 = vmatmul.f32.gmra.mxu0 %v1118
      %v1233 = vpop.f32.mrf.mxu0
      %v1234 = vadd.f32 %v1022, %v1233
      %1235 = vmatmul.f32.gmra.mxu0 %v1121
      %v1236 = vpop.f32.mrf.mxu0
      %v1237 = vadd.f32 %v1025, %v1236
      %1238 = vmatmul.f32.gmra.mxu0 %v1124
      %v1239 = vpop.f32.mrf.mxu0
      %v1240 = vadd.f32 %v1028, %v1239
      %1241 = vmatmul.f32.gmra.mxu0 %v1127
      %v1242 = vpop.f32.mrf.mxu0
      %v1243 = vadd.f32 %v1031, %v1242
      %1244 = vmatmul.f32.gmra.mxu0 %v1130
      %v1245 = vpop.f32.mrf.mxu0
      %v1246 = vadd.f32 %v1034, %v1245
      %1247 = vmatmul.f32.gmra.mxu0 %v1133
      %v1248 = vpop.f32.mrf.mxu0
      %v1249 = vadd.f32 %v1037, %v1248
      %1250 = vmatmul.f32.gmra.mxu0 %v1136
      %v1251 = vpop.f32.mrf.mxu0
      %v1252 = vadd.f32 %v1040, %v1251
      %1253 = vmatmul.f32.gmra.mxu0 %v1139
      %v1254 = vpop.f32.mrf.mxu0
      %v1255 = vadd.f32 %v1043, %v1254
      %1256 = vmatmul.f32.gmra.mxu0 %v1142
      %v1257 = vpop.f32.mrf.mxu0
      %v1258 = vadd.f32 %v1046, %v1257
      %1259 = vmatmul.f32.gmra.mxu0 %v1145
      %v1260 = vpop.f32.mrf.mxu0
      %v1261 = vadd.f32 %v1049, %v1260
      %1262 = vmatmul.f32.gmra.mxu0 %v1148
      %v1263 = vpop.f32.mrf.mxu0
      %v1264 = vadd.f32 %v1052, %v1263
      %1265 = vmatmul.f32.gmra.mxu0 %v1151
      %v1266 = vpop.f32.mrf.mxu0
      %v1267 = vadd.f32 %v1055, %v1266
      %1268 = vmatmul.f32.gmra.mxu0 %v1154
      %v1269 = vpop.f32.mrf.mxu0
      %v1270 = vadd.f32 %v1058, %v1269
      %1271 = vmatmul.f32.gmra.mxu0 %v1157
      %v1272 = vpop.f32.mrf.mxu0
      %v1273 = vadd.f32 %v1061, %v1272
      %1274 = vmatmul.f32.gmra.mxu0 %v1160
      %v1275 = vpop.f32.mrf.mxu0
      %v1276 = vadd.f32 %v1064, %v1275
      %1277 = vmatmul.f32.gmra.mxu0 %v1163
      %v1278 = vpop.f32.mrf.mxu0
      %v1279 = vadd.f32 %v1067, %v1278
      %1280 = vmatmul.f32.gmra.mxu0 %v1166
      %v1281 = vpop.f32.mrf.mxu0
      %v1282 = vadd.f32 %v1070, %v1281
      %1283 = vmatmul.f32.gmra.mxu0 %v1169
      %v1284 = vpop.f32.mrf.mxu0
      %v1285 = vadd.f32 %v1073, %v1284
      %1286 = vmatmul.f32.gmra.mxu0 %v1172
      %v1287 = vpop.f32.mrf.mxu0
      %v1288 = vadd.f32 %v1076, %v1287
      %1289 = vmatmul.f32.gmra.mxu0 %v1175
      %v1290 = vpop.f32.mrf.mxu0
      %v1291 = vadd.f32 %v1079, %v1290
      %1292 = vmatmul.f32.gmra.mxu0 %v1178
      %v1293 = vpop.f32.mrf.mxu0
      %v1294 = vadd.f32 %v1082, %v1293
      %1295 = vmatmul.f32.gmra.mxu0 %v1181
      %v1296 = vpop.f32.mrf.mxu0
      %v1297 = vadd.f32 %v1085, %v1296
      %1298 = vmatmul.f32.gmra.mxu0 %v1184
      %v1299 = vpop.f32.mrf.mxu0
      %v1300 = vadd.f32 %v1088, %v1299
      %1301 = vdwg.mxu0
      %v1302 = vld [vmem:[%s219 + $0x9] sm:$0xff]
      %v1303 = vld [vmem:[%s219 + $0x11] sm:$0xff]
      %v1304 = vld [vmem:[%s219 + $0x19] sm:$0xff]
      %v1305 = vld [vmem:[%s219 + $0x21] sm:$0xff]
      %v1306 = vld [vmem:[%s219 + $0x29] sm:$0xff]
      %v1307 = vld [vmem:[%s219 + $0x31] sm:$0xff]
      %v1308 = vld [vmem:[%s219 + $0x39] sm:$0xff]
      %v1309 = vld [vmem:[%s219 + $0x41] sm:$0xff]
      %v1310 = vld [vmem:[%s219 + $0x49] sm:$0xff]
      %v1311 = vld [vmem:[%s219 + $0x51] sm:$0xff]
      %v1312 = vld [vmem:[%s219 + $0x59] sm:$0xff]
      %v1313 = vld [vmem:[%s219 + $0x61] sm:$0xff]
      %v1314 = vld [vmem:[%s219 + $0x69] sm:$0xff]
      %v1315 = vld [vmem:[%s219 + $0x71] sm:$0xff]
      %v1316 = vld [vmem:[%s219 + $0x79] sm:$0xff]
      %v1317 = vld [vmem:[%s219 + $0x81] sm:$0xff]
      %v1318 = vld [vmem:[%s219 + $0x89] sm:$0xff]
      %v1319 = vld [vmem:[%s219 + $0x91] sm:$0xff]
      %v1320 = vld [vmem:[%s219 + $0x99] sm:$0xff]
      %v1321 = vld [vmem:[%s219 + $0xa1] sm:$0xff]
      %v1322 = vld [vmem:[%s219 + $0xa9] sm:$0xff]
      %v1323 = vld [vmem:[%s219 + $0xb1] sm:$0xff]
      %v1324 = vld [vmem:[%s219 + $0xb9] sm:$0xff]
      %v1325 = vld [vmem:[%s219 + $0xc1] sm:$0xff]
      %v1326 = vld [vmem:[%s219 + $0xc9] sm:$0xff]
      %v1327 = vld [vmem:[%s219 + $0xd1] sm:$0xff]
      %v1328 = vld [vmem:[%s219 + $0xd9] sm:$0xff]
      %v1329 = vld [vmem:[%s219 + $0xe1] sm:$0xff]
      %v1330 = vld [vmem:[%s219 + $0xe9] sm:$0xff]
      %v1331 = vld [vmem:[%s219 + $0xf1] sm:$0xff]
      %v1332 = vld [vmem:[%s219 + $0xf9] sm:$0xff]
      %v1333 = vld [vmem:[%s219 + $0x101] sm:$0xff]
      %v1334 = vsel %vm674, 1, 0
      %v1335 = vsel %vm675, 1, 0
      %v1336 = vsel %vm676, 1, 0
      %v1337 = vsel %vm677, 1, 0
      %v1338 = vsel %vm678, 1, 0
      %v1339 = vsel %vm679, 1, 0
      %v1340 = vsel %vm680, 1, 0
      %v1341 = vsel %vm681, 1, 0
      %v1342 = vsel %vm682, 1, 0
      %v1343 = vsel %vm683, 1, 0
      %v1344 = vsel %vm684, 1, 0
      %v1345 = vsel %vm685, 1, 0
      %v1346 = vsel %vm686, 1, 0
      %v1347 = vsel %vm687, 1, 0
      %v1348 = vsel %vm688, 1, 0
      %v1349 = vsel %vm689, 1, 0
      %v1350 = vsel %vm690, 1, 0
      %v1351 = vsel %vm691, 1, 0
      %v1352 = vsel %vm692, 1, 0
      %v1353 = vsel %vm693, 1, 0
      %v1354 = vsel %vm694, 1, 0
      %v1355 = vsel %vm695, 1, 0
      %v1356 = vsel %vm696, 1, 0
      %v1357 = vsel %vm697, 1, 0
      %v1358 = vsel %vm698, 1, 0
      %v1359 = vsel %vm699, 1, 0
      %v1360 = vsel %vm700, 1, 0
      %v1361 = vsel %vm701, 1, 0
      %v1362 = vsel %vm702, 1, 0
      %v1363 = vsel %vm703, 1, 0
      %v1364 = vsel %vm704, 1, 0
      %v1365 = vsel %vm705, 1, 0
      %vm1366 = vcmp.eq.s32.totalorder %v1334, 1
      %vm1367 = vcmp.eq.s32.totalorder %v1335, 1
      %vm1368 = vcmp.eq.s32.totalorder %v1336, 1
      %vm1369 = vcmp.eq.s32.totalorder %v1337, 1
      %vm1370 = vcmp.eq.s32.totalorder %v1338, 1
      %vm1371 = vcmp.eq.s32.totalorder %v1339, 1
      %vm1372 = vcmp.eq.s32.totalorder %v1340, 1
      %vm1373 = vcmp.eq.s32.totalorder %v1341, 1
      %vm1374 = vcmp.eq.s32.totalorder %v1342, 1
      %vm1375 = vcmp.eq.s32.totalorder %v1343, 1
      %vm1376 = vcmp.eq.s32.totalorder %v1344, 1
      %vm1377 = vcmp.eq.s32.totalorder %v1345, 1
      %vm1378 = vcmp.eq.s32.totalorder %v1346, 1
      %vm1379 = vcmp.eq.s32.totalorder %v1347, 1
      %vm1380 = vcmp.eq.s32.totalorder %v1348, 1
      %vm1381 = vcmp.eq.s32.totalorder %v1349, 1
      %vm1382 = vcmp.eq.s32.totalorder %v1350, 1
      %vm1383 = vcmp.eq.s32.totalorder %v1351, 1
      %vm1384 = vcmp.eq.s32.totalorder %v1352, 1
      %vm1385 = vcmp.eq.s32.totalorder %v1353, 1
      %vm1386 = vcmp.eq.s32.totalorder %v1354, 1
      %vm1387 = vcmp.eq.s32.totalorder %v1355, 1
      %vm1388 = vcmp.eq.s32.totalorder %v1356, 1
      %vm1389 = vcmp.eq.s32.totalorder %v1357, 1
      %vm1390 = vcmp.eq.s32.totalorder %v1358, 1
      %vm1391 = vcmp.eq.s32.totalorder %v1359, 1
      %vm1392 = vcmp.eq.s32.totalorder %v1360, 1
      %vm1393 = vcmp.eq.s32.totalorder %v1361, 1
      %vm1394 = vcmp.eq.s32.totalorder %v1362, 1
      %vm1395 = vcmp.eq.s32.totalorder %v1363, 1
      %vm1396 = vcmp.eq.s32.totalorder %v1364, 1
      %vm1397 = vcmp.eq.s32.totalorder %v1365, 1
      %v1398 = vsel %vm1366, %v1302, 0.0
      %v1399 = vsel %vm1367, %v1303, 0.0
      %v1400 = vsel %vm1368, %v1304, 0.0
      %v1401 = vsel %vm1369, %v1305, 0.0
      %v1402 = vsel %vm1370, %v1306, 0.0
      %v1403 = vsel %vm1371, %v1307, 0.0
      %v1404 = vsel %vm1372, %v1308, 0.0
      %v1405 = vsel %vm1373, %v1309, 0.0
      %v1406 = vsel %vm1374, %v1310, 0.0
      %v1407 = vsel %vm1375, %v1311, 0.0
      %v1408 = vsel %vm1376, %v1312, 0.0
      %v1409 = vsel %vm1377, %v1313, 0.0
      %v1410 = vsel %vm1378, %v1314, 0.0
      %v1411 = vsel %vm1379, %v1315, 0.0
      %v1412 = vsel %vm1380, %v1316, 0.0
      %v1413 = vsel %vm1381, %v1317, 0.0
      %v1414 = vsel %vm1382, %v1318, 0.0
      %v1415 = vsel %vm1383, %v1319, 0.0
      %v1416 = vsel %vm1384, %v1320, 0.0
      %v1417 = vsel %vm1385, %v1321, 0.0
      %v1418 = vsel %vm1386, %v1322, 0.0
      %v1419 = vsel %vm1387, %v1323, 0.0
      %v1420 = vsel %vm1388, %v1324, 0.0
      %v1421 = vsel %vm1389, %v1325, 0.0
      %v1422 = vsel %vm1390, %v1326, 0.0
      %v1423 = vsel %vm1391, %v1327, 0.0
      %v1424 = vsel %vm1392, %v1328, 0.0
      %v1425 = vsel %vm1393, %v1329, 0.0
      %v1426 = vsel %vm1394, %v1330, 0.0
      %v1427 = vsel %vm1395, %v1331, 0.0
      %v1428 = vsel %vm1396, %v1332, 0.0
      %v1429 = vsel %vm1397, %v1333, 0.0
      %s1430 = scalar_lea.vmem %s1, 8
      %v1431 = vld [vmem:[%s1430] sm:$0xf]
      %v1433 = vsel %vm876, %v1398, 0
      %v1436 = vsel %vm876, %v1399, 0
      %v1439 = vsel %vm876, %v1400, 0
      %v1442 = vsel %vm876, %v1401, 0
      %v1445 = vsel %vm876, %v1402, 0
      %v1448 = vsel %vm876, %v1403, 0
      %v1451 = vsel %vm876, %v1404, 0
      %v1454 = vsel %vm876, %v1405, 0
      %v1457 = vsel %vm876, %v1406, 0
      %v1460 = vsel %vm876, %v1407, 0
      %v1463 = vsel %vm876, %v1408, 0
      %v1466 = vsel %vm876, %v1409, 0
      %v1469 = vsel %vm876, %v1410, 0
      %v1472 = vsel %vm876, %v1411, 0
      %v1475 = vsel %vm876, %v1412, 0
      %v1478 = vsel %vm876, %v1413, 0
      %v1481 = vsel %vm876, %v1414, 0
      %v1484 = vsel %vm876, %v1415, 0
      %v1487 = vsel %vm876, %v1416, 0
      %v1490 = vsel %vm876, %v1417, 0
      %v1493 = vsel %vm876, %v1418, 0
      %v1496 = vsel %vm876, %v1419, 0
      %v1499 = vsel %vm876, %v1420, 0
      %v1502 = vsel %vm876, %v1421, 0
      %v1505 = vsel %vm876, %v1422, 0
      %v1508 = vsel %vm876, %v1423, 0
      %v1511 = vsel %vm876, %v1424, 0
      %v1514 = vsel %vm876, %v1425, 0
      %v1517 = vsel %vm876, %v1426, 0
      %v1520 = vsel %vm876, %v1427, 0
      %v1523 = vsel %vm876, %v1428, 0
      %v1526 = vsel %vm876, %v1429, 0
      %v1529 = vsel %vm973, %v1431, 0
      %1531 = vmatpush.msra.mxu0 0.0
      %1532 = vmatpush.msra.mxu0 0.0
      %1533 = vmatpush.msra.mxu0 0.0
      %1534 = vmatpush.msra.mxu0 0.0
      %1535 = vmatpush.msra.mxu0 0.0
      %1536 = vmatpush.msra.mxu0 0.0
      %1537 = vmatpush.msra.mxu0 0.0
      %1538 = vmatpush.msra.mxu0 0.0
      %1539 = vmatpush.msra.mxu0 0.0
      %1540 = vmatpush.msra.mxu0 0.0
      %1541 = vmatpush.msra.mxu0 0.0
      %1542 = vmatpush.msra.mxu0 0.0
      %1543 = vmatpush.msra.mxu0 0.0
      %1544 = vmatpush.msra.mxu0 0.0
      %1545 = vmatpush.msra.mxu0 0.0
      %1546 = vmatpush.msra.mxu0 %v1529
      %1547 = vmatmul.f32.gmra.mxu0 %v1433
      %v1548 = vpop.f32.mrf.mxu0
      %v1549 = vadd.f32 0.0, %v1548
      %1550 = vmatmul.f32.gmra.mxu0 %v1436
      %v1551 = vpop.f32.mrf.mxu0
      %v1552 = vadd.f32 0.0, %v1551
      %1553 = vmatmul.f32.gmra.mxu0 %v1439
      %v1554 = vpop.f32.mrf.mxu0
      %v1555 = vadd.f32 0.0, %v1554
      %1556 = vmatmul.f32.gmra.mxu0 %v1442
      %v1557 = vpop.f32.mrf.mxu0
      %v1558 = vadd.f32 0.0, %v1557
      %1559 = vmatmul.f32.gmra.mxu0 %v1445
      %v1560 = vpop.f32.mrf.mxu0
      %v1561 = vadd.f32 0.0, %v1560
      %1562 = vmatmul.f32.gmra.mxu0 %v1448
      %v1563 = vpop.f32.mrf.mxu0
      %v1564 = vadd.f32 0.0, %v1563
      %1565 = vmatmul.f32.gmra.mxu0 %v1451
      %v1566 = vpop.f32.mrf.mxu0
      %v1567 = vadd.f32 0.0, %v1566
      %1568 = vmatmul.f32.gmra.mxu0 %v1454
      %v1569 = vpop.f32.mrf.mxu0
      %v1570 = vadd.f32 0.0, %v1569
      %1571 = vmatmul.f32.gmra.mxu0 %v1457
      %v1572 = vpop.f32.mrf.mxu0
      %v1573 = vadd.f32 0.0, %v1572
      %1574 = vmatmul.f32.gmra.mxu0 %v1460
      %v1575 = vpop.f32.mrf.mxu0
      %v1576 = vadd.f32 0.0, %v1575
      %1577 = vmatmul.f32.gmra.mxu0 %v1463
      %v1578 = vpop.f32.mrf.mxu0
      %v1579 = vadd.f32 0.0, %v1578
      %1580 = vmatmul.f32.gmra.mxu0 %v1466
      %v1581 = vpop.f32.mrf.mxu0
      %v1582 = vadd.f32 0.0, %v1581
      %1583 = vmatmul.f32.gmra.mxu0 %v1469
      %v1584 = vpop.f32.mrf.mxu0
      %v1585 = vadd.f32 0.0, %v1584
      %1586 = vmatmul.f32.gmra.mxu0 %v1472
      %v1587 = vpop.f32.mrf.mxu0
      %v1588 = vadd.f32 0.0, %v1587
      %1589 = vmatmul.f32.gmra.mxu0 %v1475
      %v1590 = vpop.f32.mrf.mxu0
      %v1591 = vadd.f32 0.0, %v1590
      %1592 = vmatmul.f32.gmra.mxu0 %v1478
      %v1593 = vpop.f32.mrf.mxu0
      %v1594 = vadd.f32 0.0, %v1593
      %1595 = vmatmul.f32.gmra.mxu0 %v1481
      %v1596 = vpop.f32.mrf.mxu0
      %v1597 = vadd.f32 0.0, %v1596
      %1598 = vmatmul.f32.gmra.mxu0 %v1484
      %v1599 = vpop.f32.mrf.mxu0
      %v1600 = vadd.f32 0.0, %v1599
      %1601 = vmatmul.f32.gmra.mxu0 %v1487
      %v1602 = vpop.f32.mrf.mxu0
      %v1603 = vadd.f32 0.0, %v1602
      %1604 = vmatmul.f32.gmra.mxu0 %v1490
      %v1605 = vpop.f32.mrf.mxu0
      %v1606 = vadd.f32 0.0, %v1605
      %1607 = vmatmul.f32.gmra.mxu0 %v1493
      %v1608 = vpop.f32.mrf.mxu0
      %v1609 = vadd.f32 0.0, %v1608
      %1610 = vmatmul.f32.gmra.mxu0 %v1496
      %v1611 = vpop.f32.mrf.mxu0
      %v1612 = vadd.f32 0.0, %v1611
      %1613 = vmatmul.f32.gmra.mxu0 %v1499
      %v1614 = vpop.f32.mrf.mxu0
      %v1615 = vadd.f32 0.0, %v1614
      %1616 = vmatmul.f32.gmra.mxu0 %v1502
      %v1617 = vpop.f32.mrf.mxu0
      %v1618 = vadd.f32 0.0, %v1617
      %1619 = vmatmul.f32.gmra.mxu0 %v1505
      %v1620 = vpop.f32.mrf.mxu0
      %v1621 = vadd.f32 0.0, %v1620
      %1622 = vmatmul.f32.gmra.mxu0 %v1508
      %v1623 = vpop.f32.mrf.mxu0
      %v1624 = vadd.f32 0.0, %v1623
      %1625 = vmatmul.f32.gmra.mxu0 %v1511
      %v1626 = vpop.f32.mrf.mxu0
      %v1627 = vadd.f32 0.0, %v1626
      %1628 = vmatmul.f32.gmra.mxu0 %v1514
      %v1629 = vpop.f32.mrf.mxu0
      %v1630 = vadd.f32 0.0, %v1629
      %1631 = vmatmul.f32.gmra.mxu0 %v1517
      %v1632 = vpop.f32.mrf.mxu0
      %v1633 = vadd.f32 0.0, %v1632
      %1634 = vmatmul.f32.gmra.mxu0 %v1520
      %v1635 = vpop.f32.mrf.mxu0
      %v1636 = vadd.f32 0.0, %v1635
      %1637 = vmatmul.f32.gmra.mxu0 %v1523
      %v1638 = vpop.f32.mrf.mxu0
      %v1639 = vadd.f32 0.0, %v1638
      %1640 = vmatmul.f32.gmra.mxu0 %v1526
      %v1641 = vpop.f32.mrf.mxu0
      %v1642 = vadd.f32 0.0, %v1641
      %1643 = vdwg.mxu0
      %v1644 = vadd.f32 %v1207, %v1549
      %v1645 = vadd.f32 %v1210, %v1552
      %v1646 = vadd.f32 %v1213, %v1555
      %v1647 = vadd.f32 %v1216, %v1558
      %v1648 = vadd.f32 %v1219, %v1561
      %v1649 = vadd.f32 %v1222, %v1564
      %v1650 = vadd.f32 %v1225, %v1567
      %v1651 = vadd.f32 %v1228, %v1570
      %v1652 = vadd.f32 %v1231, %v1573
      %v1653 = vadd.f32 %v1234, %v1576
      %v1654 = vadd.f32 %v1237, %v1579
      %v1655 = vadd.f32 %v1240, %v1582
      %v1656 = vadd.f32 %v1243, %v1585
      %v1657 = vadd.f32 %v1246, %v1588
      %v1658 = vadd.f32 %v1249, %v1591
      %v1659 = vadd.f32 %v1252, %v1594
      %v1660 = vadd.f32 %v1255, %v1597
      %v1661 = vadd.f32 %v1258, %v1600
      %v1662 = vadd.f32 %v1261, %v1603
      %v1663 = vadd.f32 %v1264, %v1606
      %v1664 = vadd.f32 %v1267, %v1609
      %v1665 = vadd.f32 %v1270, %v1612
      %v1666 = vadd.f32 %v1273, %v1615
      %v1667 = vadd.f32 %v1276, %v1618
      %v1668 = vadd.f32 %v1279, %v1621
      %v1669 = vadd.f32 %v1282, %v1624
      %v1670 = vadd.f32 %v1285, %v1627
      %v1671 = vadd.f32 %v1288, %v1630
      %v1672 = vadd.f32 %v1291, %v1633
      %v1673 = vadd.f32 %v1294, %v1636
      %v1674 = vadd.f32 %v1297, %v1639
      %v1675 = vadd.f32 %v1300, %v1642
      %v1676 = vld [vmem:[%s219 + $0x17] sm:$0xff]
      %v1677 = vld [vmem:[%s219 + $0x1f] sm:$0xff]
      %v1678 = vld [vmem:[%s219 + $0x27] sm:$0xff]
      %v1679 = vld [vmem:[%s219 + $0x2f] sm:$0xff]
      %v1680 = vld [vmem:[%s219 + $0x37] sm:$0xff]
      %v1681 = vld [vmem:[%s219 + $0x3f] sm:$0xff]
      %v1682 = vld [vmem:[%s219 + $0x47] sm:$0xff]
      %v1683 = vld [vmem:[%s219 + $0x4f] sm:$0xff]
      %v1684 = vld [vmem:[%s219 + $0x57] sm:$0xff]
      %v1685 = vld [vmem:[%s219 + $0x5f] sm:$0xff]
      %v1686 = vld [vmem:[%s219 + $0x67] sm:$0xff]
      %v1687 = vld [vmem:[%s219 + $0x6f] sm:$0xff]
      %v1688 = vld [vmem:[%s219 + $0x77] sm:$0xff]
      %v1689 = vld [vmem:[%s219 + $0x7f] sm:$0xff]
      %v1690 = vld [vmem:[%s219 + $0x87] sm:$0xff]
      %v1691 = vld [vmem:[%s219 + $0x8f] sm:$0xff]
      %v1692 = vld [vmem:[%s219 + $0x97] sm:$0xff]
      %v1693 = vld [vmem:[%s219 + $0x9f] sm:$0xff]
      %v1694 = vld [vmem:[%s219 + $0xa7] sm:$0xff]
      %v1695 = vld [vmem:[%s219 + $0xaf] sm:$0xff]
      %v1696 = vld [vmem:[%s219 + $0xb7] sm:$0xff]
      %v1697 = vld [vmem:[%s219 + $0xbf] sm:$0xff]
      %v1698 = vld [vmem:[%s219 + $0xc7] sm:$0xff]
      %v1699 = vld [vmem:[%s219 + $0xcf] sm:$0xff]
      %v1700 = vld [vmem:[%s219 + $0xd7] sm:$0xff]
      %v1701 = vld [vmem:[%s219 + $0xdf] sm:$0xff]
      %v1702 = vld [vmem:[%s219 + $0xe7] sm:$0xff]
      %v1703 = vld [vmem:[%s219 + $0xef] sm:$0xff]
      %v1704 = vld [vmem:[%s219 + $0xf7] sm:$0xff]
      %v1705 = vld [vmem:[%s219 + $0xff] sm:$0xff]
      %v1706 = vld [vmem:[%s219 + $0x107] sm:$0xff]
      %v1707 = vld [vmem:[%s219 + $0x10f] sm:$0xff]
      %v1708 = vsel %vm777, %v1676, 0.0
      %v1709 = vsel %vm778, %v1677, 0.0
      %v1710 = vsel %vm779, %v1678, 0.0
      %v1711 = vsel %vm780, %v1679, 0.0
      %v1712 = vsel %vm781, %v1680, 0.0
      %v1713 = vsel %vm782, %v1681, 0.0
      %v1714 = vsel %vm783, %v1682, 0.0
      %v1715 = vsel %vm784, %v1683, 0.0
      %v1716 = vsel %vm785, %v1684, 0.0
      %v1717 = vsel %vm786, %v1685, 0.0
      %v1718 = vsel %vm787, %v1686, 0.0
      %v1719 = vsel %vm788, %v1687, 0.0
      %v1720 = vsel %vm789, %v1688, 0.0
      %v1721 = vsel %vm790, %v1689, 0.0
      %v1722 = vsel %vm791, %v1690, 0.0
      %v1723 = vsel %vm792, %v1691, 0.0
      %v1724 = vsel %vm793, %v1692, 0.0
      %v1725 = vsel %vm794, %v1693, 0.0
      %v1726 = vsel %vm795, %v1694, 0.0
      %v1727 = vsel %vm796, %v1695, 0.0
      %v1728 = vsel %vm797, %v1696, 0.0
      %v1729 = vsel %vm798, %v1697, 0.0
      %v1730 = vsel %vm799, %v1698, 0.0
      %v1731 = vsel %vm800, %v1699, 0.0
      %v1732 = vsel %vm801, %v1700, 0.0
      %v1733 = vsel %vm802, %v1701, 0.0
      %v1734 = vsel %vm803, %v1702, 0.0
      %v1735 = vsel %vm804, %v1703, 0.0
      %v1736 = vsel %vm805, %v1704, 0.0
      %v1737 = vsel %vm806, %v1705, 0.0
      %v1738 = vsel %vm807, %v1706, 0.0
      %v1739 = vsel %vm808, %v1707, 0.0
      %s1740 = scalar_lea.vmem %s1, 12
      %v1741 = vld [vmem:[%s1740] sm:$0xf]
      %v1743 = vsel %vm876, %v1708, 0
      %v1746 = vsel %vm876, %v1709, 0
      %v1749 = vsel %vm876, %v1710, 0
      %v1752 = vsel %vm876, %v1711, 0
      %v1755 = vsel %vm876, %v1712, 0
      %v1758 = vsel %vm876, %v1713, 0
      %v1761 = vsel %vm876, %v1714, 0
      %v1764 = vsel %vm876, %v1715, 0
      %v1767 = vsel %vm876, %v1716, 0
      %v1770 = vsel %vm876, %v1717, 0
      %v1773 = vsel %vm876, %v1718, 0
      %v1776 = vsel %vm876, %v1719, 0
      %v1779 = vsel %vm876, %v1720, 0
      %v1782 = vsel %vm876, %v1721, 0
      %v1785 = vsel %vm876, %v1722, 0
      %v1788 = vsel %vm876, %v1723, 0
      %v1791 = vsel %vm876, %v1724, 0
      %v1794 = vsel %vm876, %v1725, 0
      %v1797 = vsel %vm876, %v1726, 0
      %v1800 = vsel %vm876, %v1727, 0
      %v1803 = vsel %vm876, %v1728, 0
      %v1806 = vsel %vm876, %v1729, 0
      %v1809 = vsel %vm876, %v1730, 0
      %v1812 = vsel %vm876, %v1731, 0
      %v1815 = vsel %vm876, %v1732, 0
      %v1818 = vsel %vm876, %v1733, 0
      %v1821 = vsel %vm876, %v1734, 0
      %v1824 = vsel %vm876, %v1735, 0
      %v1827 = vsel %vm876, %v1736, 0
      %v1830 = vsel %vm876, %v1737, 0
      %v1833 = vsel %vm876, %v1738, 0
      %v1836 = vsel %vm876, %v1739, 0
      %v1839 = vsel %vm973, %v1741, 0
      %1841 = vmatpush.msra.mxu0 0.0
      %1842 = vmatpush.msra.mxu0 0.0
      %1843 = vmatpush.msra.mxu0 0.0
      %1844 = vmatpush.msra.mxu0 0.0
      %1845 = vmatpush.msra.mxu0 0.0
      %1846 = vmatpush.msra.mxu0 0.0
      %1847 = vmatpush.msra.mxu0 0.0
      %1848 = vmatpush.msra.mxu0 0.0
      %1849 = vmatpush.msra.mxu0 0.0
      %1850 = vmatpush.msra.mxu0 0.0
      %1851 = vmatpush.msra.mxu0 0.0
      %1852 = vmatpush.msra.mxu0 0.0
      %1853 = vmatpush.msra.mxu0 0.0
      %1854 = vmatpush.msra.mxu0 0.0
      %1855 = vmatpush.msra.mxu0 0.0
      %1856 = vmatpush.msra.mxu0 %v1839
      %1857 = vmatmul.f32.gmra.mxu0 %v1743
      %v1858 = vpop.f32.mrf.mxu0
      %v1859 = vadd.f32 0.0, %v1858
      %1860 = vmatmul.f32.gmra.mxu0 %v1746
      %v1861 = vpop.f32.mrf.mxu0
      %v1862 = vadd.f32 0.0, %v1861
      %1863 = vmatmul.f32.gmra.mxu0 %v1749
      %v1864 = vpop.f32.mrf.mxu0
      %v1865 = vadd.f32 0.0, %v1864
      %1866 = vmatmul.f32.gmra.mxu0 %v1752
      %v1867 = vpop.f32.mrf.mxu0
      %v1868 = vadd.f32 0.0, %v1867
      %1869 = vmatmul.f32.gmra.mxu0 %v1755
      %v1870 = vpop.f32.mrf.mxu0
      %v1871 = vadd.f32 0.0, %v1870
      %1872 = vmatmul.f32.gmra.mxu0 %v1758
      %v1873 = vpop.f32.mrf.mxu0
      %v1874 = vadd.f32 0.0, %v1873
      %1875 = vmatmul.f32.gmra.mxu0 %v1761
      %v1876 = vpop.f32.mrf.mxu0
      %v1877 = vadd.f32 0.0, %v1876
      %1878 = vmatmul.f32.gmra.mxu0 %v1764
      %v1879 = vpop.f32.mrf.mxu0
      %v1880 = vadd.f32 0.0, %v1879
      %1881 = vmatmul.f32.gmra.mxu0 %v1767
      %v1882 = vpop.f32.mrf.mxu0
      %v1883 = vadd.f32 0.0, %v1882
      %1884 = vmatmul.f32.gmra.mxu0 %v1770
      %v1885 = vpop.f32.mrf.mxu0
      %v1886 = vadd.f32 0.0, %v1885
      %1887 = vmatmul.f32.gmra.mxu0 %v1773
      %v1888 = vpop.f32.mrf.mxu0
      %v1889 = vadd.f32 0.0, %v1888
      %1890 = vmatmul.f32.gmra.mxu0 %v1776
      %v1891 = vpop.f32.mrf.mxu0
      %v1892 = vadd.f32 0.0, %v1891
      %1893 = vmatmul.f32.gmra.mxu0 %v1779
      %v1894 = vpop.f32.mrf.mxu0
      %v1895 = vadd.f32 0.0, %v1894
      %1896 = vmatmul.f32.gmra.mxu0 %v1782
      %v1897 = vpop.f32.mrf.mxu0
      %v1898 = vadd.f32 0.0, %v1897
      %1899 = vmatmul.f32.gmra.mxu0 %v1785
      %v1900 = vpop.f32.mrf.mxu0
      %v1901 = vadd.f32 0.0, %v1900
      %1902 = vmatmul.f32.gmra.mxu0 %v1788
      %v1903 = vpop.f32.mrf.mxu0
      %v1904 = vadd.f32 0.0, %v1903
      %1905 = vmatmul.f32.gmra.mxu0 %v1791
      %v1906 = vpop.f32.mrf.mxu0
      %v1907 = vadd.f32 0.0, %v1906
      %1908 = vmatmul.f32.gmra.mxu0 %v1794
      %v1909 = vpop.f32.mrf.mxu0
      %v1910 = vadd.f32 0.0, %v1909
      %1911 = vmatmul.f32.gmra.mxu0 %v1797
      %v1912 = vpop.f32.mrf.mxu0
      %v1913 = vadd.f32 0.0, %v1912
      %1914 = vmatmul.f32.gmra.mxu0 %v1800
      %v1915 = vpop.f32.mrf.mxu0
      %v1916 = vadd.f32 0.0, %v1915
      %1917 = vmatmul.f32.gmra.mxu0 %v1803
      %v1918 = vpop.f32.mrf.mxu0
      %v1919 = vadd.f32 0.0, %v1918
      %1920 = vmatmul.f32.gmra.mxu0 %v1806
      %v1921 = vpop.f32.mrf.mxu0
      %v1922 = vadd.f32 0.0, %v1921
      %1923 = vmatmul.f32.gmra.mxu0 %v1809
      %v1924 = vpop.f32.mrf.mxu0
      %v1925 = vadd.f32 0.0, %v1924
      %1926 = vmatmul.f32.gmra.mxu0 %v1812
      %v1927 = vpop.f32.mrf.mxu0
      %v1928 = vadd.f32 0.0, %v1927
      %1929 = vmatmul.f32.gmra.mxu0 %v1815
      %v1930 = vpop.f32.mrf.mxu0
      %v1931 = vadd.f32 0.0, %v1930
      %1932 = vmatmul.f32.gmra.mxu0 %v1818
      %v1933 = vpop.f32.mrf.mxu0
      %v1934 = vadd.f32 0.0, %v1933
      %1935 = vmatmul.f32.gmra.mxu0 %v1821
      %v1936 = vpop.f32.mrf.mxu0
      %v1937 = vadd.f32 0.0, %v1936
      %1938 = vmatmul.f32.gmra.mxu0 %v1824
      %v1939 = vpop.f32.mrf.mxu0
      %v1940 = vadd.f32 0.0, %v1939
      %1941 = vmatmul.f32.gmra.mxu0 %v1827
      %v1942 = vpop.f32.mrf.mxu0
      %v1943 = vadd.f32 0.0, %v1942
      %1944 = vmatmul.f32.gmra.mxu0 %v1830
      %v1945 = vpop.f32.mrf.mxu0
      %v1946 = vadd.f32 0.0, %v1945
      %1947 = vmatmul.f32.gmra.mxu0 %v1833
      %v1948 = vpop.f32.mrf.mxu0
      %v1949 = vadd.f32 0.0, %v1948
      %1950 = vmatmul.f32.gmra.mxu0 %v1836
      %v1951 = vpop.f32.mrf.mxu0
      %v1952 = vadd.f32 0.0, %v1951
      %1953 = vdwg.mxu0
      %v1954 = vadd.f32 %v1644, %v1859
      %v1955 = vadd.f32 %v1645, %v1862
      %v1956 = vadd.f32 %v1646, %v1865
      %v1957 = vadd.f32 %v1647, %v1868
      %v1958 = vadd.f32 %v1648, %v1871
      %v1959 = vadd.f32 %v1649, %v1874
      %v1960 = vadd.f32 %v1650, %v1877
      %v1961 = vadd.f32 %v1651, %v1880
      %v1962 = vadd.f32 %v1652, %v1883
      %v1963 = vadd.f32 %v1653, %v1886
      %v1964 = vadd.f32 %v1654, %v1889
      %v1965 = vadd.f32 %v1655, %v1892
      %v1966 = vadd.f32 %v1656, %v1895
      %v1967 = vadd.f32 %v1657, %v1898
      %v1968 = vadd.f32 %v1658, %v1901
      %v1969 = vadd.f32 %v1659, %v1904
      %v1970 = vadd.f32 %v1660, %v1907
      %v1971 = vadd.f32 %v1661, %v1910
      %v1972 = vadd.f32 %v1662, %v1913
      %v1973 = vadd.f32 %v1663, %v1916
      %v1974 = vadd.f32 %v1664, %v1919
      %v1975 = vadd.f32 %v1665, %v1922
      %v1976 = vadd.f32 %v1666, %v1925
      %v1977 = vadd.f32 %v1667, %v1928
      %v1978 = vadd.f32 %v1668, %v1931
      %v1979 = vadd.f32 %v1669, %v1934
      %v1980 = vadd.f32 %v1670, %v1937
      %v1981 = vadd.f32 %v1671, %v1940
      %v1982 = vadd.f32 %v1672, %v1943
      %v1983 = vadd.f32 %v1673, %v1946
      %v1984 = vadd.f32 %v1674, %v1949
      %v1985 = vadd.f32 %v1675, %v1952
      %v1986 = vld [vmem:[%s219 + $0x18] sm:$0xff]
      %v1987 = vld [vmem:[%s219 + $0x20] sm:$0xff]
      %v1988 = vld [vmem:[%s219 + $0x28] sm:$0xff]
      %v1989 = vld [vmem:[%s219 + $0x30] sm:$0xff]
      %v1990 = vld [vmem:[%s219 + $0x38] sm:$0xff]
      %v1991 = vld [vmem:[%s219 + $0x40] sm:$0xff]
      %v1992 = vld [vmem:[%s219 + $0x48] sm:$0xff]
      %v1993 = vld [vmem:[%s219 + $0x50] sm:$0xff]
      %v1994 = vld [vmem:[%s219 + $0x58] sm:$0xff]
      %v1995 = vld [vmem:[%s219 + $0x60] sm:$0xff]
      %v1996 = vld [vmem:[%s219 + $0x68] sm:$0xff]
      %v1997 = vld [vmem:[%s219 + $0x70] sm:$0xff]
      %v1998 = vld [vmem:[%s219 + $0x78] sm:$0xff]
      %v1999 = vld [vmem:[%s219 + $0x80] sm:$0xff]
      %v2000 = vld [vmem:[%s219 + $0x88] sm:$0xff]
      %v2001 = vld [vmem:[%s219 + $0x90] sm:$0xff]
      %v2002 = vld [vmem:[%s219 + $0x98] sm:$0xff]
      %v2003 = vld [vmem:[%s219 + $0xa0] sm:$0xff]
      %v2004 = vld [vmem:[%s219 + $0xa8] sm:$0xff]
      %v2005 = vld [vmem:[%s219 + $0xb0] sm:$0xff]
      %v2006 = vld [vmem:[%s219 + $0xb8] sm:$0xff]
      %v2007 = vld [vmem:[%s219 + $0xc0] sm:$0xff]
      %v2008 = vld [vmem:[%s219 + $0xc8] sm:$0xff]
      %v2009 = vld [vmem:[%s219 + $0xd0] sm:$0xff]
      %v2010 = vld [vmem:[%s219 + $0xd8] sm:$0xff]
      %v2011 = vld [vmem:[%s219 + $0xe0] sm:$0xff]
      %v2012 = vld [vmem:[%s219 + $0xe8] sm:$0xff]
      %v2013 = vld [vmem:[%s219 + $0xf0] sm:$0xff]
      %v2014 = vld [vmem:[%s219 + $0xf8] sm:$0xff]
      %v2015 = vld [vmem:[%s219 + $0x100] sm:$0xff]
      %v2016 = vld [vmem:[%s219 + $0x108] sm:$0xff]
      %v2017 = vld [vmem:[%s219 + $0x110] sm:$0xff]
      %s2018 = scalar_lea.vmem %s1, 16
      %v2019 = vld [vmem:[%s2018] sm:$0xf]
      %v2021 = vsel %vm876, %v1986, 0
      %v2024 = vsel %vm876, %v1987, 0
      %v2027 = vsel %vm876, %v1988, 0
      %v2030 = vsel %vm876, %v1989, 0
      %v2033 = vsel %vm876, %v1990, 0
      %v2036 = vsel %vm876, %v1991, 0
      %v2039 = vsel %vm876, %v1992, 0
      %v2042 = vsel %vm876, %v1993, 0
      %v2045 = vsel %vm876, %v1994, 0
      %v2048 = vsel %vm876, %v1995, 0
      %v2051 = vsel %vm876, %v1996, 0
      %v2054 = vsel %vm876, %v1997, 0
      %v2057 = vsel %vm876, %v1998, 0
      %v2060 = vsel %vm876, %v1999, 0
      %v2063 = vsel %vm876, %v2000, 0
      %v2066 = vsel %vm876, %v2001, 0
      %v2069 = vsel %vm876, %v2002, 0
      %v2072 = vsel %vm876, %v2003, 0
      %v2075 = vsel %vm876, %v2004, 0
      %v2078 = vsel %vm876, %v2005, 0
      %v2081 = vsel %vm876, %v2006, 0
      %v2084 = vsel %vm876, %v2007, 0
      %v2087 = vsel %vm876, %v2008, 0
      %v2090 = vsel %vm876, %v2009, 0
      %v2093 = vsel %vm876, %v2010, 0
      %v2096 = vsel %vm876, %v2011, 0
      %v2099 = vsel %vm876, %v2012, 0
      %v2102 = vsel %vm876, %v2013, 0
      %v2105 = vsel %vm876, %v2014, 0
      %v2108 = vsel %vm876, %v2015, 0
      %v2111 = vsel %vm876, %v2016, 0
      %v2114 = vsel %vm876, %v2017, 0
      %v2117 = vsel %vm973, %v2019, 0
      %2119 = vmatpush.msra.mxu0 0.0
      %2120 = vmatpush.msra.mxu0 0.0
      %2121 = vmatpush.msra.mxu0 0.0
      %2122 = vmatpush.msra.mxu0 0.0
      %2123 = vmatpush.msra.mxu0 0.0
      %2124 = vmatpush.msra.mxu0 0.0
      %2125 = vmatpush.msra.mxu0 0.0
      %2126 = vmatpush.msra.mxu0 0.0
      %2127 = vmatpush.msra.mxu0 0.0
      %2128 = vmatpush.msra.mxu0 0.0
      %2129 = vmatpush.msra.mxu0 0.0
      %2130 = vmatpush.msra.mxu0 0.0
      %2131 = vmatpush.msra.mxu0 0.0
      %2132 = vmatpush.msra.mxu0 0.0
      %2133 = vmatpush.msra.mxu0 0.0
      %2134 = vmatpush.msra.mxu0 %v2117
      %2135 = vmatmul.f32.gmra.mxu0 %v2021
      %v2136 = vpop.f32.mrf.mxu0
      %v2137 = vadd.f32 0.0, %v2136
      %2138 = vmatmul.f32.gmra.mxu0 %v2024
      %v2139 = vpop.f32.mrf.mxu0
      %v2140 = vadd.f32 0.0, %v2139
      %2141 = vmatmul.f32.gmra.mxu0 %v2027
      %v2142 = vpop.f32.mrf.mxu0
      %v2143 = vadd.f32 0.0, %v2142
      %2144 = vmatmul.f32.gmra.mxu0 %v2030
      %v2145 = vpop.f32.mrf.mxu0
      %v2146 = vadd.f32 0.0, %v2145
      %2147 = vmatmul.f32.gmra.mxu0 %v2033
      %v2148 = vpop.f32.mrf.mxu0
      %v2149 = vadd.f32 0.0, %v2148
      %2150 = vmatmul.f32.gmra.mxu0 %v2036
      %v2151 = vpop.f32.mrf.mxu0
      %v2152 = vadd.f32 0.0, %v2151
      %2153 = vmatmul.f32.gmra.mxu0 %v2039
      %v2154 = vpop.f32.mrf.mxu0
      %v2155 = vadd.f32 0.0, %v2154
      %2156 = vmatmul.f32.gmra.mxu0 %v2042
      %v2157 = vpop.f32.mrf.mxu0
      %v2158 = vadd.f32 0.0, %v2157
      %2159 = vmatmul.f32.gmra.mxu0 %v2045
      %v2160 = vpop.f32.mrf.mxu0
      %v2161 = vadd.f32 0.0, %v2160
      %2162 = vmatmul.f32.gmra.mxu0 %v2048
      %v2163 = vpop.f32.mrf.mxu0
      %v2164 = vadd.f32 0.0, %v2163
      %2165 = vmatmul.f32.gmra.mxu0 %v2051
      %v2166 = vpop.f32.mrf.mxu0
      %v2167 = vadd.f32 0.0, %v2166
      %2168 = vmatmul.f32.gmra.mxu0 %v2054
      %v2169 = vpop.f32.mrf.mxu0
      %v2170 = vadd.f32 0.0, %v2169
      %2171 = vmatmul.f32.gmra.mxu0 %v2057
      %v2172 = vpop.f32.mrf.mxu0
      %v2173 = vadd.f32 0.0, %v2172
      %2174 = vmatmul.f32.gmra.mxu0 %v2060
      %v2175 = vpop.f32.mrf.mxu0
      %v2176 = vadd.f32 0.0, %v2175
      %2177 = vmatmul.f32.gmra.mxu0 %v2063
      %v2178 = vpop.f32.mrf.mxu0
      %v2179 = vadd.f32 0.0, %v2178
      %2180 = vmatmul.f32.gmra.mxu0 %v2066
      %v2181 = vpop.f32.mrf.mxu0
      %v2182 = vadd.f32 0.0, %v2181
      %2183 = vmatmul.f32.gmra.mxu0 %v2069
      %v2184 = vpop.f32.mrf.mxu0
      %v2185 = vadd.f32 0.0, %v2184
      %2186 = vmatmul.f32.gmra.mxu0 %v2072
      %v2187 = vpop.f32.mrf.mxu0
      %v2188 = vadd.f32 0.0, %v2187
      %2189 = vmatmul.f32.gmra.mxu0 %v2075
      %v2190 = vpop.f32.mrf.mxu0
      %v2191 = vadd.f32 0.0, %v2190
      %2192 = vmatmul.f32.gmra.mxu0 %v2078
      %v2193 = vpop.f32.mrf.mxu0
      %v2194 = vadd.f32 0.0, %v2193
      %2195 = vmatmul.f32.gmra.mxu0 %v2081
      %v2196 = vpop.f32.mrf.mxu0
      %v2197 = vadd.f32 0.0, %v2196
      %2198 = vmatmul.f32.gmra.mxu0 %v2084
      %v2199 = vpop.f32.mrf.mxu0
      %v2200 = vadd.f32 0.0, %v2199
      %2201 = vmatmul.f32.gmra.mxu0 %v2087
      %v2202 = vpop.f32.mrf.mxu0
      %v2203 = vadd.f32 0.0, %v2202
      %2204 = vmatmul.f32.gmra.mxu0 %v2090
      %v2205 = vpop.f32.mrf.mxu0
      %v2206 = vadd.f32 0.0, %v2205
      %2207 = vmatmul.f32.gmra.mxu0 %v2093
      %v2208 = vpop.f32.mrf.mxu0
      %v2209 = vadd.f32 0.0, %v2208
      %2210 = vmatmul.f32.gmra.mxu0 %v2096
      %v2211 = vpop.f32.mrf.mxu0
      %v2212 = vadd.f32 0.0, %v2211
      %2213 = vmatmul.f32.gmra.mxu0 %v2099
      %v2214 = vpop.f32.mrf.mxu0
      %v2215 = vadd.f32 0.0, %v2214
      %2216 = vmatmul.f32.gmra.mxu0 %v2102
      %v2217 = vpop.f32.mrf.mxu0
      %v2218 = vadd.f32 0.0, %v2217
      %2219 = vmatmul.f32.gmra.mxu0 %v2105
      %v2220 = vpop.f32.mrf.mxu0
      %v2221 = vadd.f32 0.0, %v2220
      %2222 = vmatmul.f32.gmra.mxu0 %v2108
      %v2223 = vpop.f32.mrf.mxu0
      %v2224 = vadd.f32 0.0, %v2223
      %2225 = vmatmul.f32.gmra.mxu0 %v2111
      %v2226 = vpop.f32.mrf.mxu0
      %v2227 = vadd.f32 0.0, %v2226
      %2228 = vmatmul.f32.gmra.mxu0 %v2114
      %v2229 = vpop.f32.mrf.mxu0
      %v2230 = vadd.f32 0.0, %v2229
      %2231 = vdwg.mxu0
      %v2232 = vadd.f32 %v1954, %v2137
      %v2233 = vadd.f32 %v1955, %v2140
      %v2234 = vadd.f32 %v1956, %v2143
      %v2235 = vadd.f32 %v1957, %v2146
      %v2236 = vadd.f32 %v1958, %v2149
      %v2237 = vadd.f32 %v1959, %v2152
      %v2238 = vadd.f32 %v1960, %v2155
      %v2239 = vadd.f32 %v1961, %v2158
      %v2240 = vadd.f32 %v1962, %v2161
      %v2241 = vadd.f32 %v1963, %v2164
      %v2242 = vadd.f32 %v1964, %v2167
      %v2243 = vadd.f32 %v1965, %v2170
      %v2244 = vadd.f32 %v1966, %v2173
      %v2245 = vadd.f32 %v1967, %v2176
      %v2246 = vadd.f32 %v1968, %v2179
      %v2247 = vadd.f32 %v1969, %v2182
      %v2248 = vadd.f32 %v1970, %v2185
      %v2249 = vadd.f32 %v1971, %v2188
      %v2250 = vadd.f32 %v1972, %v2191
      %v2251 = vadd.f32 %v1973, %v2194
      %v2252 = vadd.f32 %v1974, %v2197
      %v2253 = vadd.f32 %v1975, %v2200
      %v2254 = vadd.f32 %v1976, %v2203
      %v2255 = vadd.f32 %v1977, %v2206
      %v2256 = vadd.f32 %v1978, %v2209
      %v2257 = vadd.f32 %v1979, %v2212
      %v2258 = vadd.f32 %v1980, %v2215
      %v2259 = vadd.f32 %v1981, %v2218
      %v2260 = vadd.f32 %v1982, %v2221
      %v2261 = vadd.f32 %v1983, %v2224
      %v2262 = vadd.f32 %v1984, %v2227
      %v2263 = vadd.f32 %v1985, %v2230
      %v2264 = vld [vmem:[%s219 + $0x19] sm:$0xff]
      %v2265 = vld [vmem:[%s219 + $0x21] sm:$0xff]
      %v2266 = vld [vmem:[%s219 + $0x29] sm:$0xff]
      %v2267 = vld [vmem:[%s219 + $0x31] sm:$0xff]
      %v2268 = vld [vmem:[%s219 + $0x39] sm:$0xff]
      %v2269 = vld [vmem:[%s219 + $0x41] sm:$0xff]
      %v2270 = vld [vmem:[%s219 + $0x49] sm:$0xff]
      %v2271 = vld [vmem:[%s219 + $0x51] sm:$0xff]
      %v2272 = vld [vmem:[%s219 + $0x59] sm:$0xff]
      %v2273 = vld [vmem:[%s219 + $0x61] sm:$0xff]
      %v2274 = vld [vmem:[%s219 + $0x69] sm:$0xff]
      %v2275 = vld [vmem:[%s219 + $0x71] sm:$0xff]
      %v2276 = vld [vmem:[%s219 + $0x79] sm:$0xff]
      %v2277 = vld [vmem:[%s219 + $0x81] sm:$0xff]
      %v2278 = vld [vmem:[%s219 + $0x89] sm:$0xff]
      %v2279 = vld [vmem:[%s219 + $0x91] sm:$0xff]
      %v2280 = vld [vmem:[%s219 + $0x99] sm:$0xff]
      %v2281 = vld [vmem:[%s219 + $0xa1] sm:$0xff]
      %v2282 = vld [vmem:[%s219 + $0xa9] sm:$0xff]
      %v2283 = vld [vmem:[%s219 + $0xb1] sm:$0xff]
      %v2284 = vld [vmem:[%s219 + $0xb9] sm:$0xff]
      %v2285 = vld [vmem:[%s219 + $0xc1] sm:$0xff]
      %v2286 = vld [vmem:[%s219 + $0xc9] sm:$0xff]
      %v2287 = vld [vmem:[%s219 + $0xd1] sm:$0xff]
      %v2288 = vld [vmem:[%s219 + $0xd9] sm:$0xff]
      %v2289 = vld [vmem:[%s219 + $0xe1] sm:$0xff]
      %v2290 = vld [vmem:[%s219 + $0xe9] sm:$0xff]
      %v2291 = vld [vmem:[%s219 + $0xf1] sm:$0xff]
      %v2292 = vld [vmem:[%s219 + $0xf9] sm:$0xff]
      %v2293 = vld [vmem:[%s219 + $0x101] sm:$0xff]
      %v2294 = vld [vmem:[%s219 + $0x109] sm:$0xff]
      %v2295 = vld [vmem:[%s219 + $0x111] sm:$0xff]
      %v2296 = vsel %vm1366, %v2264, 0.0
      %v2297 = vsel %vm1367, %v2265, 0.0
      %v2298 = vsel %vm1368, %v2266, 0.0
      %v2299 = vsel %vm1369, %v2267, 0.0
      %v2300 = vsel %vm1370, %v2268, 0.0
      %v2301 = vsel %vm1371, %v2269, 0.0
      %v2302 = vsel %vm1372, %v2270, 0.0
      %v2303 = vsel %vm1373, %v2271, 0.0
      %v2304 = vsel %vm1374, %v2272, 0.0
      %v2305 = vsel %vm1375, %v2273, 0.0
      %v2306 = vsel %vm1376, %v2274, 0.0
      %v2307 = vsel %vm1377, %v2275, 0.0
      %v2308 = vsel %vm1378, %v2276, 0.0
      %v2309 = vsel %vm1379, %v2277, 0.0
      %v2310 = vsel %vm1380, %v2278, 0.0
      %v2311 = vsel %vm1381, %v2279, 0.0
      %v2312 = vsel %vm1382, %v2280, 0.0
      %v2313 = vsel %vm1383, %v2281, 0.0
      %v2314 = vsel %vm1384, %v2282, 0.0
      %v2315 = vsel %vm1385, %v2283, 0.0
      %v2316 = vsel %vm1386, %v2284, 0.0
      %v2317 = vsel %vm1387, %v2285, 0.0
      %v2318 = vsel %vm1388, %v2286, 0.0
      %v2319 = vsel %vm1389, %v2287, 0.0
      %v2320 = vsel %vm1390, %v2288, 0.0
      %v2321 = vsel %vm1391, %v2289, 0.0
      %v2322 = vsel %vm1392, %v2290, 0.0
      %v2323 = vsel %vm1393, %v2291, 0.0
      %v2324 = vsel %vm1394, %v2292, 0.0
      %v2325 = vsel %vm1395, %v2293, 0.0
      %v2326 = vsel %vm1396, %v2294, 0.0
      %v2327 = vsel %vm1397, %v2295, 0.0
      %s2328 = scalar_lea.vmem %s1, 20
      %v2329 = vld [vmem:[%s2328] sm:$0xf]
      %v2331 = vsel %vm876, %v2296, 0
      %v2334 = vsel %vm876, %v2297, 0
      %v2337 = vsel %vm876, %v2298, 0
      %v2340 = vsel %vm876, %v2299, 0
      %v2343 = vsel %vm876, %v2300, 0
      %v2346 = vsel %vm876, %v2301, 0
      %v2349 = vsel %vm876, %v2302, 0
      %v2352 = vsel %vm876, %v2303, 0
      %v2355 = vsel %vm876, %v2304, 0
      %v2358 = vsel %vm876, %v2305, 0
      %v2361 = vsel %vm876, %v2306, 0
      %v2364 = vsel %vm876, %v2307, 0
      %v2367 = vsel %vm876, %v2308, 0
      %v2370 = vsel %vm876, %v2309, 0
      %v2373 = vsel %vm876, %v2310, 0
      %v2376 = vsel %vm876, %v2311, 0
      %v2379 = vsel %vm876, %v2312, 0
      %v2382 = vsel %vm876, %v2313, 0
      %v2385 = vsel %vm876, %v2314, 0
      %v2388 = vsel %vm876, %v2315, 0
      %v2391 = vsel %vm876, %v2316, 0
      %v2394 = vsel %vm876, %v2317, 0
      %v2397 = vsel %vm876, %v2318, 0
      %v2400 = vsel %vm876, %v2319, 0
      %v2403 = vsel %vm876, %v2320, 0
      %v2406 = vsel %vm876, %v2321, 0
      %v2409 = vsel %vm876, %v2322, 0
      %v2412 = vsel %vm876, %v2323, 0
      %v2415 = vsel %vm876, %v2324, 0
      %v2418 = vsel %vm876, %v2325, 0
      %v2421 = vsel %vm876, %v2326, 0
      %v2424 = vsel %vm876, %v2327, 0
      %v2427 = vsel %vm973, %v2329, 0
      %2429 = vmatpush.msra.mxu0 0.0
      %2430 = vmatpush.msra.mxu0 0.0
      %2431 = vmatpush.msra.mxu0 0.0
      %2432 = vmatpush.msra.mxu0 0.0
      %2433 = vmatpush.msra.mxu0 0.0
      %2434 = vmatpush.msra.mxu0 0.0
      %2435 = vmatpush.msra.mxu0 0.0
      %2436 = vmatpush.msra.mxu0 0.0
      %2437 = vmatpush.msra.mxu0 0.0
      %2438 = vmatpush.msra.mxu0 0.0
      %2439 = vmatpush.msra.mxu0 0.0
      %2440 = vmatpush.msra.mxu0 0.0
      %2441 = vmatpush.msra.mxu0 0.0
      %2442 = vmatpush.msra.mxu0 0.0
      %2443 = vmatpush.msra.mxu0 0.0
      %2444 = vmatpush.msra.mxu0 %v2427
      %2445 = vmatmul.f32.gmra.mxu0 %v2331
      %v2446 = vpop.f32.mrf.mxu0
      %v2447 = vadd.f32 0.0, %v2446
      %2448 = vmatmul.f32.gmra.mxu0 %v2334
      %v2449 = vpop.f32.mrf.mxu0
      %v2450 = vadd.f32 0.0, %v2449
      %2451 = vmatmul.f32.gmra.mxu0 %v2337
      %v2452 = vpop.f32.mrf.mxu0
      %v2453 = vadd.f32 0.0, %v2452
      %2454 = vmatmul.f32.gmra.mxu0 %v2340
      %v2455 = vpop.f32.mrf.mxu0
      %v2456 = vadd.f32 0.0, %v2455
      %2457 = vmatmul.f32.gmra.mxu0 %v2343
      %v2458 = vpop.f32.mrf.mxu0
      %v2459 = vadd.f32 0.0, %v2458
      %2460 = vmatmul.f32.gmra.mxu0 %v2346
      %v2461 = vpop.f32.mrf.mxu0
      %v2462 = vadd.f32 0.0, %v2461
      %2463 = vmatmul.f32.gmra.mxu0 %v2349
      %v2464 = vpop.f32.mrf.mxu0
      %v2465 = vadd.f32 0.0, %v2464
      %2466 = vmatmul.f32.gmra.mxu0 %v2352
      %v2467 = vpop.f32.mrf.mxu0
      %v2468 = vadd.f32 0.0, %v2467
      %2469 = vmatmul.f32.gmra.mxu0 %v2355
      %v2470 = vpop.f32.mrf.mxu0
      %v2471 = vadd.f32 0.0, %v2470
      %2472 = vmatmul.f32.gmra.mxu0 %v2358
      %v2473 = vpop.f32.mrf.mxu0
      %v2474 = vadd.f32 0.0, %v2473
      %2475 = vmatmul.f32.gmra.mxu0 %v2361
      %v2476 = vpop.f32.mrf.mxu0
      %v2477 = vadd.f32 0.0, %v2476
      %2478 = vmatmul.f32.gmra.mxu0 %v2364
      %v2479 = vpop.f32.mrf.mxu0
      %v2480 = vadd.f32 0.0, %v2479
      %2481 = vmatmul.f32.gmra.mxu0 %v2367
      %v2482 = vpop.f32.mrf.mxu0
      %v2483 = vadd.f32 0.0, %v2482
      %2484 = vmatmul.f32.gmra.mxu0 %v2370
      %v2485 = vpop.f32.mrf.mxu0
      %v2486 = vadd.f32 0.0, %v2485
      %2487 = vmatmul.f32.gmra.mxu0 %v2373
      %v2488 = vpop.f32.mrf.mxu0
      %v2489 = vadd.f32 0.0, %v2488
      %2490 = vmatmul.f32.gmra.mxu0 %v2376
      %v2491 = vpop.f32.mrf.mxu0
      %v2492 = vadd.f32 0.0, %v2491
      %2493 = vmatmul.f32.gmra.mxu0 %v2379
      %v2494 = vpop.f32.mrf.mxu0
      %v2495 = vadd.f32 0.0, %v2494
      %2496 = vmatmul.f32.gmra.mxu0 %v2382
      %v2497 = vpop.f32.mrf.mxu0
      %v2498 = vadd.f32 0.0, %v2497
      %2499 = vmatmul.f32.gmra.mxu0 %v2385
      %v2500 = vpop.f32.mrf.mxu0
      %v2501 = vadd.f32 0.0, %v2500
      %2502 = vmatmul.f32.gmra.mxu0 %v2388
      %v2503 = vpop.f32.mrf.mxu0
      %v2504 = vadd.f32 0.0, %v2503
      %2505 = vmatmul.f32.gmra.mxu0 %v2391
      %v2506 = vpop.f32.mrf.mxu0
      %v2507 = vadd.f32 0.0, %v2506
      %2508 = vmatmul.f32.gmra.mxu0 %v2394
      %v2509 = vpop.f32.mrf.mxu0
      %v2510 = vadd.f32 0.0, %v2509
      %2511 = vmatmul.f32.gmra.mxu0 %v2397
      %v2512 = vpop.f32.mrf.mxu0
      %v2513 = vadd.f32 0.0, %v2512
      %2514 = vmatmul.f32.gmra.mxu0 %v2400
      %v2515 = vpop.f32.mrf.mxu0
      %v2516 = vadd.f32 0.0, %v2515
      %2517 = vmatmul.f32.gmra.mxu0 %v2403
      %v2518 = vpop.f32.mrf.mxu0
      %v2519 = vadd.f32 0.0, %v2518
      %2520 = vmatmul.f32.gmra.mxu0 %v2406
      %v2521 = vpop.f32.mrf.mxu0
      %v2522 = vadd.f32 0.0, %v2521
      %2523 = vmatmul.f32.gmra.mxu0 %v2409
      %v2524 = vpop.f32.mrf.mxu0
      %v2525 = vadd.f32 0.0, %v2524
      %2526 = vmatmul.f32.gmra.mxu0 %v2412
      %v2527 = vpop.f32.mrf.mxu0
      %v2528 = vadd.f32 0.0, %v2527
      %2529 = vmatmul.f32.gmra.mxu0 %v2415
      %v2530 = vpop.f32.mrf.mxu0
      %v2531 = vadd.f32 0.0, %v2530
      %2532 = vmatmul.f32.gmra.mxu0 %v2418
      %v2533 = vpop.f32.mrf.mxu0
      %v2534 = vadd.f32 0.0, %v2533
      %2535 = vmatmul.f32.gmra.mxu0 %v2421
      %v2536 = vpop.f32.mrf.mxu0
      %v2537 = vadd.f32 0.0, %v2536
      %2538 = vmatmul.f32.gmra.mxu0 %v2424
      %v2539 = vpop.f32.mrf.mxu0
      %v2540 = vadd.f32 0.0, %v2539
      %2541 = vdwg.mxu0
      %v2542 = vadd.f32 %v2232, %v2447
      %v2543 = vadd.f32 %v2233, %v2450
      %v2544 = vadd.f32 %v2234, %v2453
      %v2545 = vadd.f32 %v2235, %v2456
      %v2546 = vadd.f32 %v2236, %v2459
      %v2547 = vadd.f32 %v2237, %v2462
      %v2548 = vadd.f32 %v2238, %v2465
      %v2549 = vadd.f32 %v2239, %v2468
      %v2550 = vadd.f32 %v2240, %v2471
      %v2551 = vadd.f32 %v2241, %v2474
      %v2552 = vadd.f32 %v2242, %v2477
      %v2553 = vadd.f32 %v2243, %v2480
      %v2554 = vadd.f32 %v2244, %v2483
      %v2555 = vadd.f32 %v2245, %v2486
      %v2556 = vadd.f32 %v2246, %v2489
      %v2557 = vadd.f32 %v2247, %v2492
      %v2558 = vadd.f32 %v2248, %v2495
      %v2559 = vadd.f32 %v2249, %v2498
      %v2560 = vadd.f32 %v2250, %v2501
      %v2561 = vadd.f32 %v2251, %v2504
      %v2562 = vadd.f32 %v2252, %v2507
      %v2563 = vadd.f32 %v2253, %v2510
      %v2564 = vadd.f32 %v2254, %v2513
      %v2565 = vadd.f32 %v2255, %v2516
      %v2566 = vadd.f32 %v2256, %v2519
      %v2567 = vadd.f32 %v2257, %v2522
      %v2568 = vadd.f32 %v2258, %v2525
      %v2569 = vadd.f32 %v2259, %v2528
      %v2570 = vadd.f32 %v2260, %v2531
      %v2571 = vadd.f32 %v2261, %v2534
      %v2572 = vadd.f32 %v2262, %v2537
      %v2573 = vadd.f32 %v2263, %v2540
      %v2574 = vld [vmem:[%s219 + $0x27] sm:$0xff]
      %v2575 = vld [vmem:[%s219 + $0x2f] sm:$0xff]
      %v2576 = vld [vmem:[%s219 + $0x37] sm:$0xff]
      %v2577 = vld [vmem:[%s219 + $0x3f] sm:$0xff]
      %v2578 = vld [vmem:[%s219 + $0x47] sm:$0xff]
      %v2579 = vld [vmem:[%s219 + $0x4f] sm:$0xff]
      %v2580 = vld [vmem:[%s219 + $0x57] sm:$0xff]
      %v2581 = vld [vmem:[%s219 + $0x5f] sm:$0xff]
      %v2582 = vld [vmem:[%s219 + $0x67] sm:$0xff]
      %v2583 = vld [vmem:[%s219 + $0x6f] sm:$0xff]
      %v2584 = vld [vmem:[%s219 + $0x77] sm:$0xff]
      %v2585 = vld [vmem:[%s219 + $0x7f] sm:$0xff]
      %v2586 = vld [vmem:[%s219 + $0x87] sm:$0xff]
      %v2587 = vld [vmem:[%s219 + $0x8f] sm:$0xff]
      %v2588 = vld [vmem:[%s219 + $0x97] sm:$0xff]
      %v2589 = vld [vmem:[%s219 + $0x9f] sm:$0xff]
      %v2590 = vld [vmem:[%s219 + $0xa7] sm:$0xff]
      %v2591 = vld [vmem:[%s219 + $0xaf] sm:$0xff]
      %v2592 = vld [vmem:[%s219 + $0xb7] sm:$0xff]
      %v2593 = vld [vmem:[%s219 + $0xbf] sm:$0xff]
      %v2594 = vld [vmem:[%s219 + $0xc7] sm:$0xff]
      %v2595 = vld [vmem:[%s219 + $0xcf] sm:$0xff]
      %v2596 = vld [vmem:[%s219 + $0xd7] sm:$0xff]
      %v2597 = vld [vmem:[%s219 + $0xdf] sm:$0xff]
      %v2598 = vld [vmem:[%s219 + $0xe7] sm:$0xff]
      %v2599 = vld [vmem:[%s219 + $0xef] sm:$0xff]
      %v2600 = vld [vmem:[%s219 + $0xf7] sm:$0xff]
      %v2601 = vld [vmem:[%s219 + $0xff] sm:$0xff]
      %v2602 = vld [vmem:[%s219 + $0x107] sm:$0xff]
      %v2603 = vld [vmem:[%s219 + $0x10f] sm:$0xff]
      %v2604 = vld [vmem:[%s219 + $0x117] sm:$0xff]
      %v2605 = vld [vmem:[%s219 + $0x11f] sm:$0xff]
      %v2606 = vsel %vm777, %v2574, 0.0
      %v2607 = vsel %vm778, %v2575, 0.0
      %v2608 = vsel %vm779, %v2576, 0.0
      %v2609 = vsel %vm780, %v2577, 0.0
      %v2610 = vsel %vm781, %v2578, 0.0
      %v2611 = vsel %vm782, %v2579, 0.0
      %v2612 = vsel %vm783, %v2580, 0.0
      %v2613 = vsel %vm784, %v2581, 0.0
      %v2614 = vsel %vm785, %v2582, 0.0
      %v2615 = vsel %vm786, %v2583, 0.0
      %v2616 = vsel %vm787, %v2584, 0.0
      %v2617 = vsel %vm788, %v2585, 0.0
      %v2618 = vsel %vm789, %v2586, 0.0
      %v2619 = vsel %vm790, %v2587, 0.0
      %v2620 = vsel %vm791, %v2588, 0.0
      %v2621 = vsel %vm792, %v2589, 0.0
      %v2622 = vsel %vm793, %v2590, 0.0
      %v2623 = vsel %vm794, %v2591, 0.0
      %v2624 = vsel %vm795, %v2592, 0.0
      %v2625 = vsel %vm796, %v2593, 0.0
      %v2626 = vsel %vm797, %v2594, 0.0
      %v2627 = vsel %vm798, %v2595, 0.0
      %v2628 = vsel %vm799, %v2596, 0.0
      %v2629 = vsel %vm800, %v2597, 0.0
      %v2630 = vsel %vm801, %v2598, 0.0
      %v2631 = vsel %vm802, %v2599, 0.0
      %v2632 = vsel %vm803, %v2600, 0.0
      %v2633 = vsel %vm804, %v2601, 0.0
      %v2634 = vsel %vm805, %v2602, 0.0
      %v2635 = vsel %vm806, %v2603, 0.0
      %v2636 = vsel %vm807, %v2604, 0.0
      %v2637 = vsel %vm808, %v2605, 0.0
      %s2638 = scalar_lea.vmem %s1, 24
      %v2639 = vld [vmem:[%s2638] sm:$0xf]
      %v2641 = vsel %vm876, %v2606, 0
      %v2644 = vsel %vm876, %v2607, 0
      %v2647 = vsel %vm876, %v2608, 0
      %v2650 = vsel %vm876, %v2609, 0
      %v2653 = vsel %vm876, %v2610, 0
      %v2656 = vsel %vm876, %v2611, 0
      %v2659 = vsel %vm876, %v2612, 0
      %v2662 = vsel %vm876, %v2613, 0
      %v2665 = vsel %vm876, %v2614, 0
      %v2668 = vsel %vm876, %v2615, 0
      %v2671 = vsel %vm876, %v2616, 0
      %v2674 = vsel %vm876, %v2617, 0
      %v2677 = vsel %vm876, %v2618, 0
      %v2680 = vsel %vm876, %v2619, 0
      %v2683 = vsel %vm876, %v2620, 0
      %v2686 = vsel %vm876, %v2621, 0
      %v2689 = vsel %vm876, %v2622, 0
      %v2692 = vsel %vm876, %v2623, 0
      %v2695 = vsel %vm876, %v2624, 0
      %v2698 = vsel %vm876, %v2625, 0
      %v2701 = vsel %vm876, %v2626, 0
      %v2704 = vsel %vm876, %v2627, 0
      %v2707 = vsel %vm876, %v2628, 0
      %v2710 = vsel %vm876, %v2629, 0
      %v2713 = vsel %vm876, %v2630, 0
      %v2716 = vsel %vm876, %v2631, 0
      %v2719 = vsel %vm876, %v2632, 0
      %v2722 = vsel %vm876, %v2633, 0
      %v2725 = vsel %vm876, %v2634, 0
      %v2728 = vsel %vm876, %v2635, 0
      %v2731 = vsel %vm876, %v2636, 0
      %v2734 = vsel %vm876, %v2637, 0
      %v2737 = vsel %vm973, %v2639, 0
      %2739 = vmatpush.msra.mxu0 0.0
      %2740 = vmatpush.msra.mxu0 0.0
      %2741 = vmatpush.msra.mxu0 0.0
      %2742 = vmatpush.msra.mxu0 0.0
      %2743 = vmatpush.msra.mxu0 0.0
      %2744 = vmatpush.msra.mxu0 0.0
      %2745 = vmatpush.msra.mxu0 0.0
      %2746 = vmatpush.msra.mxu0 0.0
      %2747 = vmatpush.msra.mxu0 0.0
      %2748 = vmatpush.msra.mxu0 0.0
      %2749 = vmatpush.msra.mxu0 0.0
      %2750 = vmatpush.msra.mxu0 0.0
      %2751 = vmatpush.msra.mxu0 0.0
      %2752 = vmatpush.msra.mxu0 0.0
      %2753 = vmatpush.msra.mxu0 0.0
      %2754 = vmatpush.msra.mxu0 %v2737
      %2755 = vmatmul.f32.gmra.mxu0 %v2641
      %v2756 = vpop.f32.mrf.mxu0
      %v2757 = vadd.f32 0.0, %v2756
      %2758 = vmatmul.f32.gmra.mxu0 %v2644
      %v2759 = vpop.f32.mrf.mxu0
      %v2760 = vadd.f32 0.0, %v2759
      %2761 = vmatmul.f32.gmra.mxu0 %v2647
      %v2762 = vpop.f32.mrf.mxu0
      %v2763 = vadd.f32 0.0, %v2762
      %2764 = vmatmul.f32.gmra.mxu0 %v2650
      %v2765 = vpop.f32.mrf.mxu0
      %v2766 = vadd.f32 0.0, %v2765
      %2767 = vmatmul.f32.gmra.mxu0 %v2653
      %v2768 = vpop.f32.mrf.mxu0
      %v2769 = vadd.f32 0.0, %v2768
      %2770 = vmatmul.f32.gmra.mxu0 %v2656
      %v2771 = vpop.f32.mrf.mxu0
      %v2772 = vadd.f32 0.0, %v2771
      %2773 = vmatmul.f32.gmra.mxu0 %v2659
      %v2774 = vpop.f32.mrf.mxu0
      %v2775 = vadd.f32 0.0, %v2774
      %2776 = vmatmul.f32.gmra.mxu0 %v2662
      %v2777 = vpop.f32.mrf.mxu0
      %v2778 = vadd.f32 0.0, %v2777
      %2779 = vmatmul.f32.gmra.mxu0 %v2665
      %v2780 = vpop.f32.mrf.mxu0
      %v2781 = vadd.f32 0.0, %v2780
      %2782 = vmatmul.f32.gmra.mxu0 %v2668
      %v2783 = vpop.f32.mrf.mxu0
      %v2784 = vadd.f32 0.0, %v2783
      %2785 = vmatmul.f32.gmra.mxu0 %v2671
      %v2786 = vpop.f32.mrf.mxu0
      %v2787 = vadd.f32 0.0, %v2786
      %2788 = vmatmul.f32.gmra.mxu0 %v2674
      %v2789 = vpop.f32.mrf.mxu0
      %v2790 = vadd.f32 0.0, %v2789
      %2791 = vmatmul.f32.gmra.mxu0 %v2677
      %v2792 = vpop.f32.mrf.mxu0
      %v2793 = vadd.f32 0.0, %v2792
      %2794 = vmatmul.f32.gmra.mxu0 %v2680
      %v2795 = vpop.f32.mrf.mxu0
      %v2796 = vadd.f32 0.0, %v2795
      %2797 = vmatmul.f32.gmra.mxu0 %v2683
      %v2798 = vpop.f32.mrf.mxu0
      %v2799 = vadd.f32 0.0, %v2798
      %2800 = vmatmul.f32.gmra.mxu0 %v2686
      %v2801 = vpop.f32.mrf.mxu0
      %v2802 = vadd.f32 0.0, %v2801
      %2803 = vmatmul.f32.gmra.mxu0 %v2689
      %v2804 = vpop.f32.mrf.mxu0
      %v2805 = vadd.f32 0.0, %v2804
      %2806 = vmatmul.f32.gmra.mxu0 %v2692
      %v2807 = vpop.f32.mrf.mxu0
      %v2808 = vadd.f32 0.0, %v2807
      %2809 = vmatmul.f32.gmra.mxu0 %v2695
      %v2810 = vpop.f32.mrf.mxu0
      %v2811 = vadd.f32 0.0, %v2810
      %2812 = vmatmul.f32.gmra.mxu0 %v2698
      %v2813 = vpop.f32.mrf.mxu0
      %v2814 = vadd.f32 0.0, %v2813
      %2815 = vmatmul.f32.gmra.mxu0 %v2701
      %v2816 = vpop.f32.mrf.mxu0
      %v2817 = vadd.f32 0.0, %v2816
      %2818 = vmatmul.f32.gmra.mxu0 %v2704
      %v2819 = vpop.f32.mrf.mxu0
      %v2820 = vadd.f32 0.0, %v2819
      %2821 = vmatmul.f32.gmra.mxu0 %v2707
      %v2822 = vpop.f32.mrf.mxu0
      %v2823 = vadd.f32 0.0, %v2822
      %2824 = vmatmul.f32.gmra.mxu0 %v2710
      %v2825 = vpop.f32.mrf.mxu0
      %v2826 = vadd.f32 0.0, %v2825
      %2827 = vmatmul.f32.gmra.mxu0 %v2713
      %v2828 = vpop.f32.mrf.mxu0
      %v2829 = vadd.f32 0.0, %v2828
      %2830 = vmatmul.f32.gmra.mxu0 %v2716
      %v2831 = vpop.f32.mrf.mxu0
      %v2832 = vadd.f32 0.0, %v2831
      %2833 = vmatmul.f32.gmra.mxu0 %v2719
      %v2834 = vpop.f32.mrf.mxu0
      %v2835 = vadd.f32 0.0, %v2834
      %2836 = vmatmul.f32.gmra.mxu0 %v2722
      %v2837 = vpop.f32.mrf.mxu0
      %v2838 = vadd.f32 0.0, %v2837
      %2839 = vmatmul.f32.gmra.mxu0 %v2725
      %v2840 = vpop.f32.mrf.mxu0
      %v2841 = vadd.f32 0.0, %v2840
      %2842 = vmatmul.f32.gmra.mxu0 %v2728
      %v2843 = vpop.f32.mrf.mxu0
      %v2844 = vadd.f32 0.0, %v2843
      %2845 = vmatmul.f32.gmra.mxu0 %v2731
      %v2846 = vpop.f32.mrf.mxu0
      %v2847 = vadd.f32 0.0, %v2846
      %2848 = vmatmul.f32.gmra.mxu0 %v2734
      %v2849 = vpop.f32.mrf.mxu0
      %v2850 = vadd.f32 0.0, %v2849
      %2851 = vdwg.mxu0
      %v2852 = vadd.f32 %v2542, %v2757
      %v2853 = vadd.f32 %v2543, %v2760
      %v2854 = vadd.f32 %v2544, %v2763
      %v2855 = vadd.f32 %v2545, %v2766
      %v2856 = vadd.f32 %v2546, %v2769
      %v2857 = vadd.f32 %v2547, %v2772
      %v2858 = vadd.f32 %v2548, %v2775
      %v2859 = vadd.f32 %v2549, %v2778
      %v2860 = vadd.f32 %v2550, %v2781
      %v2861 = vadd.f32 %v2551, %v2784
      %v2862 = vadd.f32 %v2552, %v2787
      %v2863 = vadd.f32 %v2553, %v2790
      %v2864 = vadd.f32 %v2554, %v2793
      %v2865 = vadd.f32 %v2555, %v2796
      %v2866 = vadd.f32 %v2556, %v2799
      %v2867 = vadd.f32 %v2557, %v2802
      %v2868 = vadd.f32 %v2558, %v2805
      %v2869 = vadd.f32 %v2559, %v2808
      %v2870 = vadd.f32 %v2560, %v2811
      %v2871 = vadd.f32 %v2561, %v2814
      %v2872 = vadd.f32 %v2562, %v2817
      %v2873 = vadd.f32 %v2563, %v2820
      %v2874 = vadd.f32 %v2564, %v2823
      %v2875 = vadd.f32 %v2565, %v2826
      %v2876 = vadd.f32 %v2566, %v2829
      %v2877 = vadd.f32 %v2567, %v2832
      %v2878 = vadd.f32 %v2568, %v2835
      %v2879 = vadd.f32 %v2569, %v2838
      %v2880 = vadd.f32 %v2570, %v2841
      %v2881 = vadd.f32 %v2571, %v2844
      %v2882 = vadd.f32 %v2572, %v2847
      %v2883 = vadd.f32 %v2573, %v2850
      %v2884 = vld [vmem:[%s219 + $0x28] sm:$0xff]
      %v2885 = vld [vmem:[%s219 + $0x30] sm:$0xff]
      %v2886 = vld [vmem:[%s219 + $0x38] sm:$0xff]
      %v2887 = vld [vmem:[%s219 + $0x40] sm:$0xff]
      %v2888 = vld [vmem:[%s219 + $0x48] sm:$0xff]
      %v2889 = vld [vmem:[%s219 + $0x50] sm:$0xff]
      %v2890 = vld [vmem:[%s219 + $0x58] sm:$0xff]
      %v2891 = vld [vmem:[%s219 + $0x60] sm:$0xff]
      %v2892 = vld [vmem:[%s219 + $0x68] sm:$0xff]
      %v2893 = vld [vmem:[%s219 + $0x70] sm:$0xff]
      %v2894 = vld [vmem:[%s219 + $0x78] sm:$0xff]
      %v2895 = vld [vmem:[%s219 + $0x80] sm:$0xff]
      %v2896 = vld [vmem:[%s219 + $0x88] sm:$0xff]
      %v2897 = vld [vmem:[%s219 + $0x90] sm:$0xff]
      %v2898 = vld [vmem:[%s219 + $0x98] sm:$0xff]
      %v2899 = vld [vmem:[%s219 + $0xa0] sm:$0xff]
      %v2900 = vld [vmem:[%s219 + $0xa8] sm:$0xff]
      %v2901 = vld [vmem:[%s219 + $0xb0] sm:$0xff]
      %v2902 = vld [vmem:[%s219 + $0xb8] sm:$0xff]
      %v2903 = vld [vmem:[%s219 + $0xc0] sm:$0xff]
      %v2904 = vld [vmem:[%s219 + $0xc8] sm:$0xff]
      %v2905 = vld [vmem:[%s219 + $0xd0] sm:$0xff]
      %v2906 = vld [vmem:[%s219 + $0xd8] sm:$0xff]
      %v2907 = vld [vmem:[%s219 + $0xe0] sm:$0xff]
      %v2908 = vld [vmem:[%s219 + $0xe8] sm:$0xff]
      %v2909 = vld [vmem:[%s219 + $0xf0] sm:$0xff]
      %v2910 = vld [vmem:[%s219 + $0xf8] sm:$0xff]
      %v2911 = vld [vmem:[%s219 + $0x100] sm:$0xff]
      %v2912 = vld [vmem:[%s219 + $0x108] sm:$0xff]
      %v2913 = vld [vmem:[%s219 + $0x110] sm:$0xff]
      %v2914 = vld [vmem:[%s219 + $0x118] sm:$0xff]
      %v2915 = vld [vmem:[%s219 + $0x120] sm:$0xff]
      %s2916 = scalar_lea.vmem %s1, 28
      %v2917 = vld [vmem:[%s2916] sm:$0xf]
      %v2919 = vsel %vm876, %v2884, 0
      %v2922 = vsel %vm876, %v2885, 0
      %v2925 = vsel %vm876, %v2886, 0
      %v2928 = vsel %vm876, %v2887, 0
      %v2931 = vsel %vm876, %v2888, 0
      %v2934 = vsel %vm876, %v2889, 0
      %v2937 = vsel %vm876, %v2890, 0
      %v2940 = vsel %vm876, %v2891, 0
      %v2943 = vsel %vm876, %v2892, 0
      %v2946 = vsel %vm876, %v2893, 0
      %v2949 = vsel %vm876, %v2894, 0
      %v2952 = vsel %vm876, %v2895, 0
      %v2955 = vsel %vm876, %v2896, 0
      %v2958 = vsel %vm876, %v2897, 0
      %v2961 = vsel %vm876, %v2898, 0
      %v2964 = vsel %vm876, %v2899, 0
      %v2967 = vsel %vm876, %v2900, 0
      %v2970 = vsel %vm876, %v2901, 0
      %v2973 = vsel %vm876, %v2902, 0
      %v2976 = vsel %vm876, %v2903, 0
      %v2979 = vsel %vm876, %v2904, 0
      %v2982 = vsel %vm876, %v2905, 0
      %v2985 = vsel %vm876, %v2906, 0
      %v2988 = vsel %vm876, %v2907, 0
      %v2991 = vsel %vm876, %v2908, 0
      %v2994 = vsel %vm876, %v2909, 0
      %v2997 = vsel %vm876, %v2910, 0
      %v3000 = vsel %vm876, %v2911, 0
      %v3003 = vsel %vm876, %v2912, 0
      %v3006 = vsel %vm876, %v2913, 0
      %v3009 = vsel %vm876, %v2914, 0
      %v3012 = vsel %vm876, %v2915, 0
      %v3015 = vsel %vm973, %v2917, 0
      %3017 = vmatpush.msra.mxu0 0.0
      %3018 = vmatpush.msra.mxu0 0.0
      %3019 = vmatpush.msra.mxu0 0.0
      %3020 = vmatpush.msra.mxu0 0.0
      %3021 = vmatpush.msra.mxu0 0.0
      %3022 = vmatpush.msra.mxu0 0.0
      %3023 = vmatpush.msra.mxu0 0.0
      %3024 = vmatpush.msra.mxu0 0.0
      %3025 = vmatpush.msra.mxu0 0.0
      %3026 = vmatpush.msra.mxu0 0.0
      %3027 = vmatpush.msra.mxu0 0.0
      %3028 = vmatpush.msra.mxu0 0.0
      %3029 = vmatpush.msra.mxu0 0.0
      %3030 = vmatpush.msra.mxu0 0.0
      %3031 = vmatpush.msra.mxu0 0.0
      %3032 = vmatpush.msra.mxu0 %v3015
      %3033 = vmatmul.f32.gmra.mxu0 %v2919
      %v3034 = vpop.f32.mrf.mxu0
      %v3035 = vadd.f32 0.0, %v3034
      %3036 = vmatmul.f32.gmra.mxu0 %v2922
      %v3037 = vpop.f32.mrf.mxu0
      %v3038 = vadd.f32 0.0, %v3037
      %3039 = vmatmul.f32.gmra.mxu0 %v2925
      %v3040 = vpop.f32.mrf.mxu0
      %v3041 = vadd.f32 0.0, %v3040
      %3042 = vmatmul.f32.gmra.mxu0 %v2928
      %v3043 = vpop.f32.mrf.mxu0
      %v3044 = vadd.f32 0.0, %v3043
      %3045 = vmatmul.f32.gmra.mxu0 %v2931
      %v3046 = vpop.f32.mrf.mxu0
      %v3047 = vadd.f32 0.0, %v3046
      %3048 = vmatmul.f32.gmra.mxu0 %v2934
      %v3049 = vpop.f32.mrf.mxu0
      %v3050 = vadd.f32 0.0, %v3049
      %3051 = vmatmul.f32.gmra.mxu0 %v2937
      %v3052 = vpop.f32.mrf.mxu0
      %v3053 = vadd.f32 0.0, %v3052
      %3054 = vmatmul.f32.gmra.mxu0 %v2940
      %v3055 = vpop.f32.mrf.mxu0
      %v3056 = vadd.f32 0.0, %v3055
      %3057 = vmatmul.f32.gmra.mxu0 %v2943
      %v3058 = vpop.f32.mrf.mxu0
      %v3059 = vadd.f32 0.0, %v3058
      %3060 = vmatmul.f32.gmra.mxu0 %v2946
      %v3061 = vpop.f32.mrf.mxu0
      %v3062 = vadd.f32 0.0, %v3061
      %3063 = vmatmul.f32.gmra.mxu0 %v2949
      %v3064 = vpop.f32.mrf.mxu0
      %v3065 = vadd.f32 0.0, %v3064
      %3066 = vmatmul.f32.gmra.mxu0 %v2952
      %v3067 = vpop.f32.mrf.mxu0
      %v3068 = vadd.f32 0.0, %v3067
      %3069 = vmatmul.f32.gmra.mxu0 %v2955
      %v3070 = vpop.f32.mrf.mxu0
      %v3071 = vadd.f32 0.0, %v3070
      %3072 = vmatmul.f32.gmra.mxu0 %v2958
      %v3073 = vpop.f32.mrf.mxu0
      %v3074 = vadd.f32 0.0, %v3073
      %3075 = vmatmul.f32.gmra.mxu0 %v2961
      %v3076 = vpop.f32.mrf.mxu0
      %v3077 = vadd.f32 0.0, %v3076
      %3078 = vmatmul.f32.gmra.mxu0 %v2964
      %v3079 = vpop.f32.mrf.mxu0
      %v3080 = vadd.f32 0.0, %v3079
      %3081 = vmatmul.f32.gmra.mxu0 %v2967
      %v3082 = vpop.f32.mrf.mxu0
      %v3083 = vadd.f32 0.0, %v3082
      %3084 = vmatmul.f32.gmra.mxu0 %v2970
      %v3085 = vpop.f32.mrf.mxu0
      %v3086 = vadd.f32 0.0, %v3085
      %3087 = vmatmul.f32.gmra.mxu0 %v2973
      %v3088 = vpop.f32.mrf.mxu0
      %v3089 = vadd.f32 0.0, %v3088
      %3090 = vmatmul.f32.gmra.mxu0 %v2976
      %v3091 = vpop.f32.mrf.mxu0
      %v3092 = vadd.f32 0.0, %v3091
      %3093 = vmatmul.f32.gmra.mxu0 %v2979
      %v3094 = vpop.f32.mrf.mxu0
      %v3095 = vadd.f32 0.0, %v3094
      %3096 = vmatmul.f32.gmra.mxu0 %v2982
      %v3097 = vpop.f32.mrf.mxu0
      %v3098 = vadd.f32 0.0, %v3097
      %3099 = vmatmul.f32.gmra.mxu0 %v2985
      %v3100 = vpop.f32.mrf.mxu0
      %v3101 = vadd.f32 0.0, %v3100
      %3102 = vmatmul.f32.gmra.mxu0 %v2988
      %v3103 = vpop.f32.mrf.mxu0
      %v3104 = vadd.f32 0.0, %v3103
      %3105 = vmatmul.f32.gmra.mxu0 %v2991
      %v3106 = vpop.f32.mrf.mxu0
      %v3107 = vadd.f32 0.0, %v3106
      %3108 = vmatmul.f32.gmra.mxu0 %v2994
      %v3109 = vpop.f32.mrf.mxu0
      %v3110 = vadd.f32 0.0, %v3109
      %3111 = vmatmul.f32.gmra.mxu0 %v2997
      %v3112 = vpop.f32.mrf.mxu0
      %v3113 = vadd.f32 0.0, %v3112
      %3114 = vmatmul.f32.gmra.mxu0 %v3000
      %v3115 = vpop.f32.mrf.mxu0
      %v3116 = vadd.f32 0.0, %v3115
      %3117 = vmatmul.f32.gmra.mxu0 %v3003
      %v3118 = vpop.f32.mrf.mxu0
      %v3119 = vadd.f32 0.0, %v3118
      %3120 = vmatmul.f32.gmra.mxu0 %v3006
      %v3121 = vpop.f32.mrf.mxu0
      %v3122 = vadd.f32 0.0, %v3121
      %3123 = vmatmul.f32.gmra.mxu0 %v3009
      %v3124 = vpop.f32.mrf.mxu0
      %v3125 = vadd.f32 0.0, %v3124
      %3126 = vmatmul.f32.gmra.mxu0 %v3012
      %v3127 = vpop.f32.mrf.mxu0
      %v3128 = vadd.f32 0.0, %v3127
      %3129 = vdwg.mxu0
      %v3130 = vadd.f32 %v2852, %v3035
      %v3131 = vadd.f32 %v2853, %v3038
      %v3132 = vadd.f32 %v2854, %v3041
      %v3133 = vadd.f32 %v2855, %v3044
      %v3134 = vadd.f32 %v2856, %v3047
      %v3135 = vadd.f32 %v2857, %v3050
      %v3136 = vadd.f32 %v2858, %v3053
      %v3137 = vadd.f32 %v2859, %v3056
      %v3138 = vadd.f32 %v2860, %v3059
      %v3139 = vadd.f32 %v2861, %v3062
      %v3140 = vadd.f32 %v2862, %v3065
      %v3141 = vadd.f32 %v2863, %v3068
      %v3142 = vadd.f32 %v2864, %v3071
      %v3143 = vadd.f32 %v2865, %v3074
      %v3144 = vadd.f32 %v2866, %v3077
      %v3145 = vadd.f32 %v2867, %v3080
      %v3146 = vadd.f32 %v2868, %v3083
      %v3147 = vadd.f32 %v2869, %v3086
      %v3148 = vadd.f32 %v2870, %v3089
      %v3149 = vadd.f32 %v2871, %v3092
      %v3150 = vadd.f32 %v2872, %v3095
      %v3151 = vadd.f32 %v2873, %v3098
      %v3152 = vadd.f32 %v2874, %v3101
      %v3153 = vadd.f32 %v2875, %v3104
      %v3154 = vadd.f32 %v2876, %v3107
      %v3155 = vadd.f32 %v2877, %v3110
      %v3156 = vadd.f32 %v2878, %v3113
      %v3157 = vadd.f32 %v2879, %v3116
      %v3158 = vadd.f32 %v2880, %v3119
      %v3159 = vadd.f32 %v2881, %v3122
      %v3160 = vadd.f32 %v2882, %v3125
      %v3161 = vadd.f32 %v2883, %v3128
      %v3162 = vld [vmem:[%s219 + $0x29] sm:$0xff]
      %v3163 = vld [vmem:[%s219 + $0x31] sm:$0xff]
      %v3164 = vld [vmem:[%s219 + $0x39] sm:$0xff]
      %v3165 = vld [vmem:[%s219 + $0x41] sm:$0xff]
      %v3166 = vld [vmem:[%s219 + $0x49] sm:$0xff]
      %v3167 = vld [vmem:[%s219 + $0x51] sm:$0xff]
      %v3168 = vld [vmem:[%s219 + $0x59] sm:$0xff]
      %v3169 = vld [vmem:[%s219 + $0x61] sm:$0xff]
      %v3170 = vld [vmem:[%s219 + $0x69] sm:$0xff]
      %v3171 = vld [vmem:[%s219 + $0x71] sm:$0xff]
      %v3172 = vld [vmem:[%s219 + $0x79] sm:$0xff]
      %v3173 = vld [vmem:[%s219 + $0x81] sm:$0xff]
      %v3174 = vld [vmem:[%s219 + $0x89] sm:$0xff]
      %v3175 = vld [vmem:[%s219 + $0x91] sm:$0xff]
      %v3176 = vld [vmem:[%s219 + $0x99] sm:$0xff]
      %v3177 = vld [vmem:[%s219 + $0xa1] sm:$0xff]
      %v3178 = vld [vmem:[%s219 + $0xa9] sm:$0xff]
      %v3179 = vld [vmem:[%s219 + $0xb1] sm:$0xff]
      %v3180 = vld [vmem:[%s219 + $0xb9] sm:$0xff]
      %v3181 = vld [vmem:[%s219 + $0xc1] sm:$0xff]
      %v3182 = vld [vmem:[%s219 + $0xc9] sm:$0xff]
      %v3183 = vld [vmem:[%s219 + $0xd1] sm:$0xff]
      %v3184 = vld [vmem:[%s219 + $0xd9] sm:$0xff]
      %v3185 = vld [vmem:[%s219 + $0xe1] sm:$0xff]
      %v3186 = vld [vmem:[%s219 + $0xe9] sm:$0xff]
      %v3187 = vld [vmem:[%s219 + $0xf1] sm:$0xff]
      %v3188 = vld [vmem:[%s219 + $0xf9] sm:$0xff]
      %v3189 = vld [vmem:[%s219 + $0x101] sm:$0xff]
      %v3190 = vld [vmem:[%s219 + $0x109] sm:$0xff]
      %v3191 = vld [vmem:[%s219 + $0x111] sm:$0xff]
      %v3192 = vld [vmem:[%s219 + $0x119] sm:$0xff]
      %v3193 = vld [vmem:[%s219 + $0x121] sm:$0xff]
      %v3194 = vsel %vm1366, %v3162, 0.0
      %v3195 = vsel %vm1367, %v3163, 0.0
      %v3196 = vsel %vm1368, %v3164, 0.0
      %v3197 = vsel %vm1369, %v3165, 0.0
      %v3198 = vsel %vm1370, %v3166, 0.0
      %v3199 = vsel %vm1371, %v3167, 0.0
      %v3200 = vsel %vm1372, %v3168, 0.0
      %v3201 = vsel %vm1373, %v3169, 0.0
      %v3202 = vsel %vm1374, %v3170, 0.0
      %v3203 = vsel %vm1375, %v3171, 0.0
      %v3204 = vsel %vm1376, %v3172, 0.0
      %v3205 = vsel %vm1377, %v3173, 0.0
      %v3206 = vsel %vm1378, %v3174, 0.0
      %v3207 = vsel %vm1379, %v3175, 0.0
      %v3208 = vsel %vm1380, %v3176, 0.0
      %v3209 = vsel %vm1381, %v3177, 0.0
      %v3210 = vsel %vm1382, %v3178, 0.0
      %v3211 = vsel %vm1383, %v3179, 0.0
      %v3212 = vsel %vm1384, %v3180, 0.0
      %v3213 = vsel %vm1385, %v3181, 0.0
      %v3214 = vsel %vm1386, %v3182, 0.0
      %v3215 = vsel %vm1387, %v3183, 0.0
      %v3216 = vsel %vm1388, %v3184, 0.0
      %v3217 = vsel %vm1389, %v3185, 0.0
      %v3218 = vsel %vm1390, %v3186, 0.0
      %v3219 = vsel %vm1391, %v3187, 0.0
      %v3220 = vsel %vm1392, %v3188, 0.0
      %v3221 = vsel %vm1393, %v3189, 0.0
      %v3222 = vsel %vm1394, %v3190, 0.0
      %v3223 = vsel %vm1395, %v3191, 0.0
      %v3224 = vsel %vm1396, %v3192, 0.0
      %v3225 = vsel %vm1397, %v3193, 0.0
      %s3226 = scalar_lea.vmem %s1, 32
      %v3227 = vld [vmem:[%s3226] sm:$0xf]
      %v3229 = vsel %vm876, %v3194, 0
      %v3232 = vsel %vm876, %v3195, 0
      %v3235 = vsel %vm876, %v3196, 0
      %v3238 = vsel %vm876, %v3197, 0
      %v3241 = vsel %vm876, %v3198, 0
      %v3244 = vsel %vm876, %v3199, 0
      %v3247 = vsel %vm876, %v3200, 0
      %v3250 = vsel %vm876, %v3201, 0
      %v3253 = vsel %vm876, %v3202, 0
      %v3256 = vsel %vm876, %v3203, 0
      %v3259 = vsel %vm876, %v3204, 0
      %v3262 = vsel %vm876, %v3205, 0
      %v3265 = vsel %vm876, %v3206, 0
      %v3268 = vsel %vm876, %v3207, 0
      %v3271 = vsel %vm876, %v3208, 0
      %v3274 = vsel %vm876, %v3209, 0
      %v3277 = vsel %vm876, %v3210, 0
      %v3280 = vsel %vm876, %v3211, 0
      %v3283 = vsel %vm876, %v3212, 0
      %v3286 = vsel %vm876, %v3213, 0
      %v3289 = vsel %vm876, %v3214, 0
      %v3292 = vsel %vm876, %v3215, 0
      %v3295 = vsel %vm876, %v3216, 0
      %v3298 = vsel %vm876, %v3217, 0
      %v3301 = vsel %vm876, %v3218, 0
      %v3304 = vsel %vm876, %v3219, 0
      %v3307 = vsel %vm876, %v3220, 0
      %v3310 = vsel %vm876, %v3221, 0
      %v3313 = vsel %vm876, %v3222, 0
      %v3316 = vsel %vm876, %v3223, 0
      %v3319 = vsel %vm876, %v3224, 0
      %v3322 = vsel %vm876, %v3225, 0
      %v3325 = vsel %vm973, %v3227, 0
      %3327 = vmatpush.msra.mxu0 0.0
      %3328 = vmatpush.msra.mxu0 0.0
      %3329 = vmatpush.msra.mxu0 0.0
      %3330 = vmatpush.msra.mxu0 0.0
      %3331 = vmatpush.msra.mxu0 0.0
      %3332 = vmatpush.msra.mxu0 0.0
      %3333 = vmatpush.msra.mxu0 0.0
      %3334 = vmatpush.msra.mxu0 0.0
      %3335 = vmatpush.msra.mxu0 0.0
      %3336 = vmatpush.msra.mxu0 0.0
      %3337 = vmatpush.msra.mxu0 0.0
      %3338 = vmatpush.msra.mxu0 0.0
      %3339 = vmatpush.msra.mxu0 0.0
      %3340 = vmatpush.msra.mxu0 0.0
      %3341 = vmatpush.msra.mxu0 0.0
      %3342 = vmatpush.msra.mxu0 %v3325
      %3343 = vmatmul.f32.gmra.mxu0 %v3229
      %v3344 = vpop.f32.mrf.mxu0
      %v3345 = vadd.f32 0.0, %v3344
      %3346 = vmatmul.f32.gmra.mxu0 %v3232
      %v3347 = vpop.f32.mrf.mxu0
      %v3348 = vadd.f32 0.0, %v3347
      %3349 = vmatmul.f32.gmra.mxu0 %v3235
      %v3350 = vpop.f32.mrf.mxu0
      %v3351 = vadd.f32 0.0, %v3350
      %3352 = vmatmul.f32.gmra.mxu0 %v3238
      %v3353 = vpop.f32.mrf.mxu0
      %v3354 = vadd.f32 0.0, %v3353
      %3355 = vmatmul.f32.gmra.mxu0 %v3241
      %v3356 = vpop.f32.mrf.mxu0
      %v3357 = vadd.f32 0.0, %v3356
      %3358 = vmatmul.f32.gmra.mxu0 %v3244
      %v3359 = vpop.f32.mrf.mxu0
      %v3360 = vadd.f32 0.0, %v3359
      %3361 = vmatmul.f32.gmra.mxu0 %v3247
      %v3362 = vpop.f32.mrf.mxu0
      %v3363 = vadd.f32 0.0, %v3362
      %3364 = vmatmul.f32.gmra.mxu0 %v3250
      %v3365 = vpop.f32.mrf.mxu0
      %v3366 = vadd.f32 0.0, %v3365
      %3367 = vmatmul.f32.gmra.mxu0 %v3253
      %v3368 = vpop.f32.mrf.mxu0
      %v3369 = vadd.f32 0.0, %v3368
      %3370 = vmatmul.f32.gmra.mxu0 %v3256
      %v3371 = vpop.f32.mrf.mxu0
      %v3372 = vadd.f32 0.0, %v3371
      %3373 = vmatmul.f32.gmra.mxu0 %v3259
      %v3374 = vpop.f32.mrf.mxu0
      %v3375 = vadd.f32 0.0, %v3374
      %3376 = vmatmul.f32.gmra.mxu0 %v3262
      %v3377 = vpop.f32.mrf.mxu0
      %v3378 = vadd.f32 0.0, %v3377
      %3379 = vmatmul.f32.gmra.mxu0 %v3265
      %v3380 = vpop.f32.mrf.mxu0
      %v3381 = vadd.f32 0.0, %v3380
      %3382 = vmatmul.f32.gmra.mxu0 %v3268
      %v3383 = vpop.f32.mrf.mxu0
      %v3384 = vadd.f32 0.0, %v3383
      %3385 = vmatmul.f32.gmra.mxu0 %v3271
      %v3386 = vpop.f32.mrf.mxu0
      %v3387 = vadd.f32 0.0, %v3386
      %3388 = vmatmul.f32.gmra.mxu0 %v3274
      %v3389 = vpop.f32.mrf.mxu0
      %v3390 = vadd.f32 0.0, %v3389
      %3391 = vmatmul.f32.gmra.mxu0 %v3277
      %v3392 = vpop.f32.mrf.mxu0
      %v3393 = vadd.f32 0.0, %v3392
      %3394 = vmatmul.f32.gmra.mxu0 %v3280
      %v3395 = vpop.f32.mrf.mxu0
      %v3396 = vadd.f32 0.0, %v3395
      %3397 = vmatmul.f32.gmra.mxu0 %v3283
      %v3398 = vpop.f32.mrf.mxu0
      %v3399 = vadd.f32 0.0, %v3398
      %3400 = vmatmul.f32.gmra.mxu0 %v3286
      %v3401 = vpop.f32.mrf.mxu0
      %v3402 = vadd.f32 0.0, %v3401
      %3403 = vmatmul.f32.gmra.mxu0 %v3289
      %v3404 = vpop.f32.mrf.mxu0
      %v3405 = vadd.f32 0.0, %v3404
      %3406 = vmatmul.f32.gmra.mxu0 %v3292
      %v3407 = vpop.f32.mrf.mxu0
      %v3408 = vadd.f32 0.0, %v3407
      %3409 = vmatmul.f32.gmra.mxu0 %v3295
      %v3410 = vpop.f32.mrf.mxu0
      %v3411 = vadd.f32 0.0, %v3410
      %3412 = vmatmul.f32.gmra.mxu0 %v3298
      %v3413 = vpop.f32.mrf.mxu0
      %v3414 = vadd.f32 0.0, %v3413
      %3415 = vmatmul.f32.gmra.mxu0 %v3301
      %v3416 = vpop.f32.mrf.mxu0
      %v3417 = vadd.f32 0.0, %v3416
      %3418 = vmatmul.f32.gmra.mxu0 %v3304
      %v3419 = vpop.f32.mrf.mxu0
      %v3420 = vadd.f32 0.0, %v3419
      %3421 = vmatmul.f32.gmra.mxu0 %v3307
      %v3422 = vpop.f32.mrf.mxu0
      %v3423 = vadd.f32 0.0, %v3422
      %3424 = vmatmul.f32.gmra.mxu0 %v3310
      %v3425 = vpop.f32.mrf.mxu0
      %v3426 = vadd.f32 0.0, %v3425
      %3427 = vmatmul.f32.gmra.mxu0 %v3313
      %v3428 = vpop.f32.mrf.mxu0
      %v3429 = vadd.f32 0.0, %v3428
      %3430 = vmatmul.f32.gmra.mxu0 %v3316
      %v3431 = vpop.f32.mrf.mxu0
      %v3432 = vadd.f32 0.0, %v3431
      %3433 = vmatmul.f32.gmra.mxu0 %v3319
      %v3434 = vpop.f32.mrf.mxu0
      %v3435 = vadd.f32 0.0, %v3434
      %3436 = vmatmul.f32.gmra.mxu0 %v3322
      %v3437 = vpop.f32.mrf.mxu0
      %v3438 = vadd.f32 0.0, %v3437
      %3439 = vdwg.mxu0
      %v3440 = vadd.f32 %v3130, %v3345
      %v3441 = vadd.f32 %v3131, %v3348
      %v3442 = vadd.f32 %v3132, %v3351
      %v3443 = vadd.f32 %v3133, %v3354
      %v3444 = vadd.f32 %v3134, %v3357
      %v3445 = vadd.f32 %v3135, %v3360
      %v3446 = vadd.f32 %v3136, %v3363
      %v3447 = vadd.f32 %v3137, %v3366
      %v3448 = vadd.f32 %v3138, %v3369
      %v3449 = vadd.f32 %v3139, %v3372
      %v3450 = vadd.f32 %v3140, %v3375
      %v3451 = vadd.f32 %v3141, %v3378
      %v3452 = vadd.f32 %v3142, %v3381
      %v3453 = vadd.f32 %v3143, %v3384
      %v3454 = vadd.f32 %v3144, %v3387
      %v3455 = vadd.f32 %v3145, %v3390
      %v3456 = vadd.f32 %v3146, %v3393
      %v3457 = vadd.f32 %v3147, %v3396
      %v3458 = vadd.f32 %v3148, %v3399
      %v3459 = vadd.f32 %v3149, %v3402
      %v3460 = vadd.f32 %v3150, %v3405
      %v3461 = vadd.f32 %v3151, %v3408
      %v3462 = vadd.f32 %v3152, %v3411
      %v3463 = vadd.f32 %v3153, %v3414
      %v3464 = vadd.f32 %v3154, %v3417
      %v3465 = vadd.f32 %v3155, %v3420
      %v3466 = vadd.f32 %v3156, %v3423
      %v3467 = vadd.f32 %v3157, %v3426
      %v3468 = vadd.f32 %v3158, %v3429
      %v3469 = vadd.f32 %v3159, %v3432
      %v3470 = vadd.f32 %v3160, %v3435
      %v3471 = vadd.f32 %v3161, %v3438
      %v3472 = vld [vmem:[%s2] sm:$0x1]
      %v3474 = vperm.slane %v3472, 0
      %v3476 = vadd.f32 %v3440, %v3474
      %v3477 = vadd.f32 %v3441, %v3474
      %v3478 = vadd.f32 %v3442, %v3474
      %v3479 = vadd.f32 %v3443, %v3474
      %v3480 = vadd.f32 %v3444, %v3474
      %v3481 = vadd.f32 %v3445, %v3474
      %v3482 = vadd.f32 %v3446, %v3474
      %v3483 = vadd.f32 %v3447, %v3474
      %v3484 = vadd.f32 %v3448, %v3474
      %v3485 = vadd.f32 %v3449, %v3474
      %v3486 = vadd.f32 %v3450, %v3474
      %v3487 = vadd.f32 %v3451, %v3474
      %v3488 = vadd.f32 %v3452, %v3474
      %v3489 = vadd.f32 %v3453, %v3474
      %v3490 = vadd.f32 %v3454, %v3474
      %v3491 = vadd.f32 %v3455, %v3474
      %v3492 = vadd.f32 %v3456, %v3474
      %v3493 = vadd.f32 %v3457, %v3474
      %v3494 = vadd.f32 %v3458, %v3474
      %v3495 = vadd.f32 %v3459, %v3474
      %v3496 = vadd.f32 %v3460, %v3474
      %v3497 = vadd.f32 %v3461, %v3474
      %v3498 = vadd.f32 %v3462, %v3474
      %v3499 = vadd.f32 %v3463, %v3474
      %v3500 = vadd.f32 %v3464, %v3474
      %v3501 = vadd.f32 %v3465, %v3474
      %v3502 = vadd.f32 %v3466, %v3474
      %v3503 = vadd.f32 %v3467, %v3474
      %v3504 = vadd.f32 %v3468, %v3474
      %v3505 = vadd.f32 %v3469, %v3474
      %v3506 = vadd.f32 %v3470, %v3474
      %v3507 = vadd.f32 %v3471, %v3474
      %v3508 = vmax.f32 %v3476, 0.0
      %v3509 = vmax.f32 %v3477, 0.0
      %v3510 = vmax.f32 %v3478, 0.0
      %v3511 = vmax.f32 %v3479, 0.0
      %v3512 = vmax.f32 %v3480, 0.0
      %v3513 = vmax.f32 %v3481, 0.0
      %v3514 = vmax.f32 %v3482, 0.0
      %v3515 = vmax.f32 %v3483, 0.0
      %v3516 = vmax.f32 %v3484, 0.0
      %v3517 = vmax.f32 %v3485, 0.0
      %v3518 = vmax.f32 %v3486, 0.0
      %v3519 = vmax.f32 %v3487, 0.0
      %v3520 = vmax.f32 %v3488, 0.0
      %v3521 = vmax.f32 %v3489, 0.0
      %v3522 = vmax.f32 %v3490, 0.0
      %v3523 = vmax.f32 %v3491, 0.0
      %v3524 = vmax.f32 %v3492, 0.0
      %v3525 = vmax.f32 %v3493, 0.0
      %v3526 = vmax.f32 %v3494, 0.0
      %v3527 = vmax.f32 %v3495, 0.0
      %v3528 = vmax.f32 %v3496, 0.0
      %v3529 = vmax.f32 %v3497, 0.0
      %v3530 = vmax.f32 %v3498, 0.0
      %v3531 = vmax.f32 %v3499, 0.0
      %v3532 = vmax.f32 %v3500, 0.0
      %v3533 = vmax.f32 %v3501, 0.0
      %v3534 = vmax.f32 %v3502, 0.0
      %v3535 = vmax.f32 %v3503, 0.0
      %v3536 = vmax.f32 %v3504, 0.0
      %v3537 = vmax.f32 %v3505, 0.0
      %v3538 = vmax.f32 %v3506, 0.0
      %v3539 = vmax.f32 %v3507, 0.0
      %3540 = vst.msk [vmem:[#allocation2 + $0x18] sm:$0xff] %vm706, %v3508
      %3541 = vst.msk [vmem:[#allocation2 + $0x20] sm:$0xff] %vm706, %v3509
      %3542 = vst.msk [vmem:[#allocation2 + $0x28] sm:$0xff] %vm706, %v3510
      %3543 = vst.msk [vmem:[#allocation2 + $0x30] sm:$0xff] %vm706, %v3511
      %3544 = vst.msk [vmem:[#allocation2 + $0x38] sm:$0xff] %vm706, %v3512
      %3545 = vst.msk [vmem:[#allocation2 + $0x40] sm:$0xff] %vm706, %v3513
      %3546 = vst.msk [vmem:[#allocation2 + $0x48] sm:$0xff] %vm706, %v3514
      %3547 = vst.msk [vmem:[#allocation2 + $0x50] sm:$0xff] %vm706, %v3515
      %3548 = vst.msk [vmem:[#allocation2 + $0x58] sm:$0xff] %vm706, %v3516
      %3549 = vst.msk [vmem:[#allocation2 + $0x60] sm:$0xff] %vm706, %v3517
      %3550 = vst.msk [vmem:[#allocation2 + $0x68] sm:$0xff] %vm706, %v3518
      %3551 = vst.msk [vmem:[#allocation2 + $0x70] sm:$0xff] %vm706, %v3519
      %3552 = vst.msk [vmem:[#allocation2 + $0x78] sm:$0xff] %vm706, %v3520
      %3553 = vst.msk [vmem:[#allocation2 + $0x80] sm:$0xff] %vm706, %v3521
      %3554 = vst.msk [vmem:[#allocation2 + $0x88] sm:$0xff] %vm706, %v3522
      %3555 = vst.msk [vmem:[#allocation2 + $0x90] sm:$0xff] %vm706, %v3523
      %3556 = vst.msk [vmem:[#allocation2 + $0x98] sm:$0xff] %vm706, %v3524
      %3557 = vst.msk [vmem:[#allocation2 + $0xa0] sm:$0xff] %vm706, %v3525
      %3558 = vst.msk [vmem:[#allocation2 + $0xa8] sm:$0xff] %vm706, %v3526
      %3559 = vst.msk [vmem:[#allocation2 + $0xb0] sm:$0xff] %vm706, %v3527
      %3560 = vst.msk [vmem:[#allocation2 + $0xb8] sm:$0xff] %vm706, %v3528
      %3561 = vst.msk [vmem:[#allocation2 + $0xc0] sm:$0xff] %vm706, %v3529
      %3562 = vst.msk [vmem:[#allocation2 + $0xc8] sm:$0xff] %vm706, %v3530
      %3563 = vst.msk [vmem:[#allocation2 + $0xd0] sm:$0xff] %vm706, %v3531
      %3564 = vst.msk [vmem:[#allocation2 + $0xd8] sm:$0xff] %vm706, %v3532
      %3565 = vst.msk [vmem:[#allocation2 + $0xe0] sm:$0xff] %vm706, %v3533
      %3566 = vst.msk [vmem:[#allocation2 + $0xe8] sm:$0xff] %vm706, %v3534
      %3567 = vst.msk [vmem:[#allocation2 + $0xf0] sm:$0xff] %vm706, %v3535
      %3568 = vst.msk [vmem:[#allocation2 + $0xf8] sm:$0xff] %vm706, %v3536
      %3569 = vst.msk [vmem:[#allocation2 + $0x100] sm:$0xff] %vm706, %v3537
      %3570 = vst.msk [vmem:[#allocation2 + $0x108] sm:$0xff] %vm706, %v3538
      %3571 = vst.msk [vmem:[#allocation2 + $0x110] sm:$0xff] %vm706, %v3539
      %v3572 = vld [vmem:[#allocation2 + $0x7] sm:$0xff]
      %v3573 = vld [vmem:[#allocation2 + $0xf] sm:$0xff]
      %v3574 = vld [vmem:[#allocation2 + $0x17] sm:$0xff]
      %v3575 = vld [vmem:[#allocation2 + $0x1f] sm:$0xff]
      %v3576 = vld [vmem:[#allocation2 + $0x27] sm:$0xff]
      %v3577 = vld [vmem:[#allocation2 + $0x2f] sm:$0xff]
      %v3578 = vld [vmem:[#allocation2 + $0x37] sm:$0xff]
      %v3579 = vld [vmem:[#allocation2 + $0x3f] sm:$0xff]
      %v3580 = vld [vmem:[#allocation2 + $0x47] sm:$0xff]
      %v3581 = vld [vmem:[#allocation2 + $0x4f] sm:$0xff]
      %v3582 = vld [vmem:[#allocation2 + $0x57] sm:$0xff]
      %v3583 = vld [vmem:[#allocation2 + $0x5f] sm:$0xff]
      %v3584 = vld [vmem:[#allocation2 + $0x67] sm:$0xff]
      %v3585 = vld [vmem:[#allocation2 + $0x6f] sm:$0xff]
      %v3586 = vld [vmem:[#allocation2 + $0x77] sm:$0xff]
      %v3587 = vld [vmem:[#allocation2 + $0x7f] sm:$0xff]
      %v3588 = vld [vmem:[#allocation2 + $0x87] sm:$0xff]
      %v3589 = vld [vmem:[#allocation2 + $0x8f] sm:$0xff]
      %v3590 = vld [vmem:[#allocation2 + $0x97] sm:$0xff]
      %v3591 = vld [vmem:[#allocation2 + $0x9f] sm:$0xff]
      %v3592 = vld [vmem:[#allocation2 + $0xa7] sm:$0xff]
      %v3593 = vld [vmem:[#allocation2 + $0xaf] sm:$0xff]
      %v3594 = vld [vmem:[#allocation2 + $0xb7] sm:$0xff]
      %v3595 = vld [vmem:[#allocation2 + $0xbf] sm:$0xff]
      %v3596 = vld [vmem:[#allocation2 + $0xc7] sm:$0xff]
      %v3597 = vld [vmem:[#allocation2 + $0xcf] sm:$0xff]
      %v3598 = vld [vmem:[#allocation2 + $0xd7] sm:$0xff]
      %v3599 = vld [vmem:[#allocation2 + $0xdf] sm:$0xff]
      %v3600 = vld [vmem:[#allocation2 + $0xe7] sm:$0xff]
      %v3601 = vld [vmem:[#allocation2 + $0xef] sm:$0xff]
      %v3602 = vld [vmem:[#allocation2 + $0xf7] sm:$0xff]
      %v3603 = vld [vmem:[#allocation2 + $0xff] sm:$0xff]
      %v3604 = vsel %vm777, %v3572, 0.0
      %v3605 = vsel %vm778, %v3573, 0.0
      %v3606 = vsel %vm779, %v3574, 0.0
      %v3607 = vsel %vm780, %v3575, 0.0
      %v3608 = vsel %vm781, %v3576, 0.0
      %v3609 = vsel %vm782, %v3577, 0.0
      %v3610 = vsel %vm783, %v3578, 0.0
      %v3611 = vsel %vm784, %v3579, 0.0
      %v3612 = vsel %vm785, %v3580, 0.0
      %v3613 = vsel %vm786, %v3581, 0.0
      %v3614 = vsel %vm787, %v3582, 0.0
      %v3615 = vsel %vm788, %v3583, 0.0
      %v3616 = vsel %vm789, %v3584, 0.0
      %v3617 = vsel %vm790, %v3585, 0.0
      %v3618 = vsel %vm791, %v3586, 0.0
      %v3619 = vsel %vm792, %v3587, 0.0
      %v3620 = vsel %vm793, %v3588, 0.0
      %v3621 = vsel %vm794, %v3589, 0.0
      %v3622 = vsel %vm795, %v3590, 0.0
      %v3623 = vsel %vm796, %v3591, 0.0
      %v3624 = vsel %vm797, %v3592, 0.0
      %v3625 = vsel %vm798, %v3593, 0.0
      %v3626 = vsel %vm799, %v3594, 0.0
      %v3627 = vsel %vm800, %v3595, 0.0
      %v3628 = vsel %vm801, %v3596, 0.0
      %v3629 = vsel %vm802, %v3597, 0.0
      %v3630 = vsel %vm803, %v3598, 0.0
      %v3631 = vsel %vm804, %v3599, 0.0
      %v3632 = vsel %vm805, %v3600, 0.0
      %v3633 = vsel %vm806, %v3601, 0.0
      %v3634 = vsel %vm807, %v3602, 0.0
      %v3635 = vsel %vm808, %v3603, 0.0
      %v3636 = vld [vmem:[%s3] sm:$0xff]
      %v3637 = vld [vmem:[#allocation2 + $0x8] sm:$0xff]
      %v3638 = vld [vmem:[#allocation2 + $0x10] sm:$0xff]
      %v3639 = vld [vmem:[#allocation2 + $0x18] sm:$0xff]
      %v3640 = vld [vmem:[#allocation2 + $0x20] sm:$0xff]
      %v3641 = vld [vmem:[#allocation2 + $0x28] sm:$0xff]
      %v3642 = vld [vmem:[#allocation2 + $0x30] sm:$0xff]
      %v3643 = vld [vmem:[#allocation2 + $0x38] sm:$0xff]
      %v3644 = vld [vmem:[#allocation2 + $0x40] sm:$0xff]
      %v3645 = vld [vmem:[#allocation2 + $0x48] sm:$0xff]
      %v3646 = vld [vmem:[#allocation2 + $0x50] sm:$0xff]
      %v3647 = vld [vmem:[#allocation2 + $0x58] sm:$0xff]
      %v3648 = vld [vmem:[#allocation2 + $0x60] sm:$0xff]
      %v3649 = vld [vmem:[#allocation2 + $0x68] sm:$0xff]
      %v3650 = vld [vmem:[#allocation2 + $0x70] sm:$0xff]
      %v3651 = vld [vmem:[#allocation2 + $0x78] sm:$0xff]
      %v3652 = vld [vmem:[#allocation2 + $0x80] sm:$0xff]
      %v3653 = vld [vmem:[#allocation2 + $0x88] sm:$0xff]
      %v3654 = vld [vmem:[#allocation2 + $0x90] sm:$0xff]
      %v3655 = vld [vmem:[#allocation2 + $0x98] sm:$0xff]
      %v3656 = vld [vmem:[#allocation2 + $0xa0] sm:$0xff]
      %v3657 = vld [vmem:[#allocation2 + $0xa8] sm:$0xff]
      %v3658 = vld [vmem:[#allocation2 + $0xb0] sm:$0xff]
      %v3659 = vld [vmem:[#allocation2 + $0xb8] sm:$0xff]
      %v3660 = vld [vmem:[#allocation2 + $0xc0] sm:$0xff]
      %v3661 = vld [vmem:[#allocation2 + $0xc8] sm:$0xff]
      %v3662 = vld [vmem:[#allocation2 + $0xd0] sm:$0xff]
      %v3663 = vld [vmem:[#allocation2 + $0xd8] sm:$0xff]
      %v3664 = vld [vmem:[#allocation2 + $0xe0] sm:$0xff]
      %v3665 = vld [vmem:[#allocation2 + $0xe8] sm:$0xff]
      %v3666 = vld [vmem:[#allocation2 + $0xf0] sm:$0xff]
      %v3667 = vld [vmem:[#allocation2 + $0xf8] sm:$0xff]
      %v3668 = vld [vmem:[#allocation2 + $0x100] sm:$0xff]
      %s3669 = scalar_lea.vmem %s3, 8
      %v3670 = vld [vmem:[%s3669] sm:$0xff]
      %v3672 = vsel %vm706, %v3637, 0
      %v3675 = vsel %vm706, %v3638, 0
      %v3678 = vsel %vm706, %v3639, 0
      %v3681 = vsel %vm706, %v3640, 0
      %v3684 = vsel %vm706, %v3641, 0
      %v3687 = vsel %vm706, %v3642, 0
      %v3690 = vsel %vm706, %v3643, 0
      %v3693 = vsel %vm706, %v3644, 0
      %v3696 = vsel %vm706, %v3645, 0
      %v3699 = vsel %vm706, %v3646, 0
      %v3702 = vsel %vm706, %v3647, 0
      %v3705 = vsel %vm706, %v3648, 0
      %v3708 = vsel %vm706, %v3649, 0
      %v3711 = vsel %vm706, %v3650, 0
      %v3714 = vsel %vm706, %v3651, 0
      %v3717 = vsel %vm706, %v3652, 0
      %v3720 = vsel %vm706, %v3653, 0
      %v3723 = vsel %vm706, %v3654, 0
      %v3726 = vsel %vm706, %v3655, 0
      %v3729 = vsel %vm706, %v3656, 0
      %v3732 = vsel %vm706, %v3657, 0
      %v3735 = vsel %vm706, %v3658, 0
      %v3738 = vsel %vm706, %v3659, 0
      %v3741 = vsel %vm706, %v3660, 0
      %v3744 = vsel %vm706, %v3661, 0
      %v3747 = vsel %vm706, %v3662, 0
      %v3750 = vsel %vm706, %v3663, 0
      %v3753 = vsel %vm706, %v3664, 0
      %v3756 = vsel %vm706, %v3665, 0
      %v3759 = vsel %vm706, %v3666, 0
      %v3762 = vsel %vm706, %v3667, 0
      %v3765 = vsel %vm706, %v3668, 0
      %3767 = vmatpush.msra.mxu0 0.0
      %3768 = vmatpush.msra.mxu0 0.0
      %3769 = vmatpush.msra.mxu0 0.0
      %3770 = vmatpush.msra.mxu0 0.0
      %3771 = vmatpush.msra.mxu0 0.0
      %3772 = vmatpush.msra.mxu0 0.0
      %3773 = vmatpush.msra.mxu0 0.0
      %3774 = vmatpush.msra.mxu0 0.0
      %3775 = vmatpush.msra.mxu0 0.0
      %3776 = vmatpush.msra.mxu0 0.0
      %3777 = vmatpush.msra.mxu0 0.0
      %3778 = vmatpush.msra.mxu0 0.0
      %3779 = vmatpush.msra.mxu0 0.0
      %3780 = vmatpush.msra.mxu0 0.0
      %3781 = vmatpush.msra.mxu0 0.0
      %3782 = vmatpush.msra.mxu0 %v3670
      %3783 = vmatmul.f32.gmra.mxu0 %v3672
      %v3784 = vpop.f32.mrf.mxu0
      %v3785 = vadd.f32 0.0, %v3784
      %3786 = vmatmul.f32.gmra.mxu0 %v3675
      %v3787 = vpop.f32.mrf.mxu0
      %v3788 = vadd.f32 0.0, %v3787
      %3789 = vmatmul.f32.gmra.mxu0 %v3678
      %v3790 = vpop.f32.mrf.mxu0
      %v3791 = vadd.f32 0.0, %v3790
      %3792 = vmatmul.f32.gmra.mxu0 %v3681
      %v3793 = vpop.f32.mrf.mxu0
      %v3794 = vadd.f32 0.0, %v3793
      %3795 = vmatmul.f32.gmra.mxu0 %v3684
      %v3796 = vpop.f32.mrf.mxu0
      %v3797 = vadd.f32 0.0, %v3796
      %3798 = vmatmul.f32.gmra.mxu0 %v3687
      %v3799 = vpop.f32.mrf.mxu0
      %v3800 = vadd.f32 0.0, %v3799
      %3801 = vmatmul.f32.gmra.mxu0 %v3690
      %v3802 = vpop.f32.mrf.mxu0
      %v3803 = vadd.f32 0.0, %v3802
      %3804 = vmatmul.f32.gmra.mxu0 %v3693
      %v3805 = vpop.f32.mrf.mxu0
      %v3806 = vadd.f32 0.0, %v3805
      %3807 = vmatmul.f32.gmra.mxu0 %v3696
      %v3808 = vpop.f32.mrf.mxu0
      %v3809 = vadd.f32 0.0, %v3808
      %3810 = vmatmul.f32.gmra.mxu0 %v3699
      %v3811 = vpop.f32.mrf.mxu0
      %v3812 = vadd.f32 0.0, %v3811
      %3813 = vmatmul.f32.gmra.mxu0 %v3702
      %v3814 = vpop.f32.mrf.mxu0
      %v3815 = vadd.f32 0.0, %v3814
      %3816 = vmatmul.f32.gmra.mxu0 %v3705
      %v3817 = vpop.f32.mrf.mxu0
      %v3818 = vadd.f32 0.0, %v3817
      %3819 = vmatmul.f32.gmra.mxu0 %v3708
      %v3820 = vpop.f32.mrf.mxu0
      %v3821 = vadd.f32 0.0, %v3820
      %3822 = vmatmul.f32.gmra.mxu0 %v3711
      %v3823 = vpop.f32.mrf.mxu0
      %v3824 = vadd.f32 0.0, %v3823
      %3825 = vmatmul.f32.gmra.mxu0 %v3714
      %v3826 = vpop.f32.mrf.mxu0
      %v3827 = vadd.f32 0.0, %v3826
      %3828 = vmatmul.f32.gmra.mxu0 %v3717
      %v3829 = vpop.f32.mrf.mxu0
      %v3830 = vadd.f32 0.0, %v3829
      %3831 = vmatmul.f32.gmra.mxu0 %v3720
      %v3832 = vpop.f32.mrf.mxu0
      %v3833 = vadd.f32 0.0, %v3832
      %3834 = vmatmul.f32.gmra.mxu0 %v3723
      %v3835 = vpop.f32.mrf.mxu0
      %v3836 = vadd.f32 0.0, %v3835
      %3837 = vmatmul.f32.gmra.mxu0 %v3726
      %v3838 = vpop.f32.mrf.mxu0
      %v3839 = vadd.f32 0.0, %v3838
      %3840 = vmatmul.f32.gmra.mxu0 %v3729
      %v3841 = vpop.f32.mrf.mxu0
      %v3842 = vadd.f32 0.0, %v3841
      %3843 = vmatmul.f32.gmra.mxu0 %v3732
      %v3844 = vpop.f32.mrf.mxu0
      %v3845 = vadd.f32 0.0, %v3844
      %3846 = vmatmul.f32.gmra.mxu0 %v3735
      %v3847 = vpop.f32.mrf.mxu0
      %v3848 = vadd.f32 0.0, %v3847
      %3849 = vmatmul.f32.gmra.mxu0 %v3738
      %v3850 = vpop.f32.mrf.mxu0
      %v3851 = vadd.f32 0.0, %v3850
      %3852 = vmatmul.f32.gmra.mxu0 %v3741
      %v3853 = vpop.f32.mrf.mxu0
      %v3854 = vadd.f32 0.0, %v3853
      %3855 = vmatmul.f32.gmra.mxu0 %v3744
      %v3856 = vpop.f32.mrf.mxu0
      %v3857 = vadd.f32 0.0, %v3856
      %3858 = vmatmul.f32.gmra.mxu0 %v3747
      %v3859 = vpop.f32.mrf.mxu0
      %v3860 = vadd.f32 0.0, %v3859
      %3861 = vmatmul.f32.gmra.mxu0 %v3750
      %v3862 = vpop.f32.mrf.mxu0
      %v3863 = vadd.f32 0.0, %v3862
      %3864 = vmatmul.f32.gmra.mxu0 %v3753
      %v3865 = vpop.f32.mrf.mxu0
      %v3866 = vadd.f32 0.0, %v3865
      %3867 = vmatmul.f32.gmra.mxu0 %v3756
      %v3868 = vpop.f32.mrf.mxu0
      %v3869 = vadd.f32 0.0, %v3868
      %3870 = vmatmul.f32.gmra.mxu0 %v3759
      %v3871 = vpop.f32.mrf.mxu0
      %v3872 = vadd.f32 0.0, %v3871
      %3873 = vmatmul.f32.gmra.mxu0 %v3762
      %v3874 = vpop.f32.mrf.mxu0
      %v3875 = vadd.f32 0.0, %v3874
      %3876 = vmatmul.f32.gmra.mxu0 %v3765
      %v3877 = vpop.f32.mrf.mxu0
      %v3878 = vadd.f32 0.0, %v3877
      %3879 = vdwg.mxu0
      %v3881 = vsel %vm706, %v3604, 0
      %v3884 = vsel %vm706, %v3605, 0
      %v3887 = vsel %vm706, %v3606, 0
      %v3890 = vsel %vm706, %v3607, 0
      %v3893 = vsel %vm706, %v3608, 0
      %v3896 = vsel %vm706, %v3609, 0
      %v3899 = vsel %vm706, %v3610, 0
      %v3902 = vsel %vm706, %v3611, 0
      %v3905 = vsel %vm706, %v3612, 0
      %v3908 = vsel %vm706, %v3613, 0
      %v3911 = vsel %vm706, %v3614, 0
      %v3914 = vsel %vm706, %v3615, 0
      %v3917 = vsel %vm706, %v3616, 0
      %v3920 = vsel %vm706, %v3617, 0
      %v3923 = vsel %vm706, %v3618, 0
      %v3926 = vsel %vm706, %v3619, 0
      %v3929 = vsel %vm706, %v3620, 0
      %v3932 = vsel %vm706, %v3621, 0
      %v3935 = vsel %vm706, %v3622, 0
      %v3938 = vsel %vm706, %v3623, 0
      %v3941 = vsel %vm706, %v3624, 0
      %v3944 = vsel %vm706, %v3625, 0
      %v3947 = vsel %vm706, %v3626, 0
      %v3950 = vsel %vm706, %v3627, 0
      %v3953 = vsel %vm706, %v3628, 0
      %v3956 = vsel %vm706, %v3629, 0
      %v3959 = vsel %vm706, %v3630, 0
      %v3962 = vsel %vm706, %v3631, 0
      %v3965 = vsel %vm706, %v3632, 0
      %v3968 = vsel %vm706, %v3633, 0
      %v3971 = vsel %vm706, %v3634, 0
      %v3974 = vsel %vm706, %v3635, 0
      %3976 = vmatpush.msra.mxu0 0.0
      %3977 = vmatpush.msra.mxu0 0.0
      %3978 = vmatpush.msra.mxu0 0.0
      %3979 = vmatpush.msra.mxu0 0.0
      %3980 = vmatpush.msra.mxu0 0.0
      %3981 = vmatpush.msra.mxu0 0.0
      %3982 = vmatpush.msra.mxu0 0.0
      %3983 = vmatpush.msra.mxu0 0.0
      %3984 = vmatpush.msra.mxu0 0.0
      %3985 = vmatpush.msra.mxu0 0.0
      %3986 = vmatpush.msra.mxu0 0.0
      %3987 = vmatpush.msra.mxu0 0.0
      %3988 = vmatpush.msra.mxu0 0.0
      %3989 = vmatpush.msra.mxu0 0.0
      %3990 = vmatpush.msra.mxu0 0.0
      %3991 = vmatpush.msra.mxu0 %v3636
      %3992 = vmatmul.f32.gmra.mxu0 %v3881
      %v3993 = vpop.f32.mrf.mxu0
      %v3994 = vadd.f32 %v3785, %v3993
      %3995 = vmatmul.f32.gmra.mxu0 %v3884
      %v3996 = vpop.f32.mrf.mxu0
      %v3997 = vadd.f32 %v3788, %v3996
      %3998 = vmatmul.f32.gmra.mxu0 %v3887
      %v3999 = vpop.f32.mrf.mxu0
      %v4000 = vadd.f32 %v3791, %v3999
      %4001 = vmatmul.f32.gmra.mxu0 %v3890
      %v4002 = vpop.f32.mrf.mxu0
      %v4003 = vadd.f32 %v3794, %v4002
      %4004 = vmatmul.f32.gmra.mxu0 %v3893
      %v4005 = vpop.f32.mrf.mxu0
      %v4006 = vadd.f32 %v3797, %v4005
      %4007 = vmatmul.f32.gmra.mxu0 %v3896
      %v4008 = vpop.f32.mrf.mxu0
      %v4009 = vadd.f32 %v3800, %v4008
      %4010 = vmatmul.f32.gmra.mxu0 %v3899
      %v4011 = vpop.f32.mrf.mxu0
      %v4012 = vadd.f32 %v3803, %v4011
      %4013 = vmatmul.f32.gmra.mxu0 %v3902
      %v4014 = vpop.f32.mrf.mxu0
      %v4015 = vadd.f32 %v3806, %v4014
      %4016 = vmatmul.f32.gmra.mxu0 %v3905
      %v4017 = vpop.f32.mrf.mxu0
      %v4018 = vadd.f32 %v3809, %v4017
      %4019 = vmatmul.f32.gmra.mxu0 %v3908
      %v4020 = vpop.f32.mrf.mxu0
      %v4021 = vadd.f32 %v3812, %v4020
      %4022 = vmatmul.f32.gmra.mxu0 %v3911
      %v4023 = vpop.f32.mrf.mxu0
      %v4024 = vadd.f32 %v3815, %v4023
      %4025 = vmatmul.f32.gmra.mxu0 %v3914
      %v4026 = vpop.f32.mrf.mxu0
      %v4027 = vadd.f32 %v3818, %v4026
      %4028 = vmatmul.f32.gmra.mxu0 %v3917
      %v4029 = vpop.f32.mrf.mxu0
      %v4030 = vadd.f32 %v3821, %v4029
      %4031 = vmatmul.f32.gmra.mxu0 %v3920
      %v4032 = vpop.f32.mrf.mxu0
      %v4033 = vadd.f32 %v3824, %v4032
      %4034 = vmatmul.f32.gmra.mxu0 %v3923
      %v4035 = vpop.f32.mrf.mxu0
      %v4036 = vadd.f32 %v3827, %v4035
      %4037 = vmatmul.f32.gmra.mxu0 %v3926
      %v4038 = vpop.f32.mrf.mxu0
      %v4039 = vadd.f32 %v3830, %v4038
      %4040 = vmatmul.f32.gmra.mxu0 %v3929
      %v4041 = vpop.f32.mrf.mxu0
      %v4042 = vadd.f32 %v3833, %v4041
      %4043 = vmatmul.f32.gmra.mxu0 %v3932
      %v4044 = vpop.f32.mrf.mxu0
      %v4045 = vadd.f32 %v3836, %v4044
      %4046 = vmatmul.f32.gmra.mxu0 %v3935
      %v4047 = vpop.f32.mrf.mxu0
      %v4048 = vadd.f32 %v3839, %v4047
      %4049 = vmatmul.f32.gmra.mxu0 %v3938
      %v4050 = vpop.f32.mrf.mxu0
      %v4051 = vadd.f32 %v3842, %v4050
      %4052 = vmatmul.f32.gmra.mxu0 %v3941
      %v4053 = vpop.f32.mrf.mxu0
      %v4054 = vadd.f32 %v3845, %v4053
      %4055 = vmatmul.f32.gmra.mxu0 %v3944
      %v4056 = vpop.f32.mrf.mxu0
      %v4057 = vadd.f32 %v3848, %v4056
      %4058 = vmatmul.f32.gmra.mxu0 %v3947
      %v4059 = vpop.f32.mrf.mxu0
      %v4060 = vadd.f32 %v3851, %v4059
      %4061 = vmatmul.f32.gmra.mxu0 %v3950
      %v4062 = vpop.f32.mrf.mxu0
      %v4063 = vadd.f32 %v3854, %v4062
      %4064 = vmatmul.f32.gmra.mxu0 %v3953
      %v4065 = vpop.f32.mrf.mxu0
      %v4066 = vadd.f32 %v3857, %v4065
      %4067 = vmatmul.f32.gmra.mxu0 %v3956
      %v4068 = vpop.f32.mrf.mxu0
      %v4069 = vadd.f32 %v3860, %v4068
      %4070 = vmatmul.f32.gmra.mxu0 %v3959
      %v4071 = vpop.f32.mrf.mxu0
      %v4072 = vadd.f32 %v3863, %v4071
      %4073 = vmatmul.f32.gmra.mxu0 %v3962
      %v4074 = vpop.f32.mrf.mxu0
      %v4075 = vadd.f32 %v3866, %v4074
      %4076 = vmatmul.f32.gmra.mxu0 %v3965
      %v4077 = vpop.f32.mrf.mxu0
      %v4078 = vadd.f32 %v3869, %v4077
      %4079 = vmatmul.f32.gmra.mxu0 %v3968
      %v4080 = vpop.f32.mrf.mxu0
      %v4081 = vadd.f32 %v3872, %v4080
      %4082 = vmatmul.f32.gmra.mxu0 %v3971
      %v4083 = vpop.f32.mrf.mxu0
      %v4084 = vadd.f32 %v3875, %v4083
      %4085 = vmatmul.f32.gmra.mxu0 %v3974
      %v4086 = vpop.f32.mrf.mxu0
      %v4087 = vadd.f32 %v3878, %v4086
      %4088 = vdwg.mxu0
      %v4089 = vld [vmem:[#allocation2 + $0x9] sm:$0xff]
      %v4090 = vld [vmem:[#allocation2 + $0x11] sm:$0xff]
      %v4091 = vld [vmem:[#allocation2 + $0x19] sm:$0xff]
      %v4092 = vld [vmem:[#allocation2 + $0x21] sm:$0xff]
      %v4093 = vld [vmem:[#allocation2 + $0x29] sm:$0xff]
      %v4094 = vld [vmem:[#allocation2 + $0x31] sm:$0xff]
      %v4095 = vld [vmem:[#allocation2 + $0x39] sm:$0xff]
      %v4096 = vld [vmem:[#allocation2 + $0x41] sm:$0xff]
      %v4097 = vld [vmem:[#allocation2 + $0x49] sm:$0xff]
      %v4098 = vld [vmem:[#allocation2 + $0x51] sm:$0xff]
      %v4099 = vld [vmem:[#allocation2 + $0x59] sm:$0xff]
      %v4100 = vld [vmem:[#allocation2 + $0x61] sm:$0xff]
      %v4101 = vld [vmem:[#allocation2 + $0x69] sm:$0xff]
      %v4102 = vld [vmem:[#allocation2 + $0x71] sm:$0xff]
      %v4103 = vld [vmem:[#allocation2 + $0x79] sm:$0xff]
      %v4104 = vld [vmem:[#allocation2 + $0x81] sm:$0xff]
      %v4105 = vld [vmem:[#allocation2 + $0x89] sm:$0xff]
      %v4106 = vld [vmem:[#allocation2 + $0x91] sm:$0xff]
      %v4107 = vld [vmem:[#allocation2 + $0x99] sm:$0xff]
      %v4108 = vld [vmem:[#allocation2 + $0xa1] sm:$0xff]
      %v4109 = vld [vmem:[#allocation2 + $0xa9] sm:$0xff]
      %v4110 = vld [vmem:[#allocation2 + $0xb1] sm:$0xff]
      %v4111 = vld [vmem:[#allocation2 + $0xb9] sm:$0xff]
      %v4112 = vld [vmem:[#allocation2 + $0xc1] sm:$0xff]
      %v4113 = vld [vmem:[#allocation2 + $0xc9] sm:$0xff]
      %v4114 = vld [vmem:[#allocation2 + $0xd1] sm:$0xff]
      %v4115 = vld [vmem:[#allocation2 + $0xd9] sm:$0xff]
      %v4116 = vld [vmem:[#allocation2 + $0xe1] sm:$0xff]
      %v4117 = vld [vmem:[#allocation2 + $0xe9] sm:$0xff]
      %v4118 = vld [vmem:[#allocation2 + $0xf1] sm:$0xff]
      %v4119 = vld [vmem:[#allocation2 + $0xf9] sm:$0xff]
      %v4120 = vld [vmem:[#allocation2 + $0x101] sm:$0xff]
      %v4121 = vsel %vm1366, %v4089, 0.0
      %v4122 = vsel %vm1367, %v4090, 0.0
      %v4123 = vsel %vm1368, %v4091, 0.0
      %v4124 = vsel %vm1369, %v4092, 0.0
      %v4125 = vsel %vm1370, %v4093, 0.0
      %v4126 = vsel %vm1371, %v4094, 0.0
      %v4127 = vsel %vm1372, %v4095, 0.0
      %v4128 = vsel %vm1373, %v4096, 0.0
      %v4129 = vsel %vm1374, %v4097, 0.0
      %v4130 = vsel %vm1375, %v4098, 0.0
      %v4131 = vsel %vm1376, %v4099, 0.0
      %v4132 = vsel %vm1377, %v4100, 0.0
      %v4133 = vsel %vm1378, %v4101, 0.0
      %v4134 = vsel %vm1379, %v4102, 0.0
      %v4135 = vsel %vm1380, %v4103, 0.0
      %v4136 = vsel %vm1381, %v4104, 0.0
      %v4137 = vsel %vm1382, %v4105, 0.0
      %v4138 = vsel %vm1383, %v4106, 0.0
      %v4139 = vsel %vm1384, %v4107, 0.0
      %v4140 = vsel %vm1385, %v4108, 0.0
      %v4141 = vsel %vm1386, %v4109, 0.0
      %v4142 = vsel %vm1387, %v4110, 0.0
      %v4143 = vsel %vm1388, %v4111, 0.0
      %v4144 = vsel %vm1389, %v4112, 0.0
      %v4145 = vsel %vm1390, %v4113, 0.0
      %v4146 = vsel %vm1391, %v4114, 0.0
      %v4147 = vsel %vm1392, %v4115, 0.0
      %v4148 = vsel %vm1393, %v4116, 0.0
      %v4149 = vsel %vm1394, %v4117, 0.0
      %v4150 = vsel %vm1395, %v4118, 0.0
      %v4151 = vsel %vm1396, %v4119, 0.0
      %v4152 = vsel %vm1397, %v4120, 0.0
      %s4153 = scalar_lea.vmem %s3, 16
      %v4154 = vld [vmem:[%s4153] sm:$0xff]
      %v4156 = vsel %vm706, %v4121, 0
      %v4159 = vsel %vm706, %v4122, 0
      %v4162 = vsel %vm706, %v4123, 0
      %v4165 = vsel %vm706, %v4124, 0
      %v4168 = vsel %vm706, %v4125, 0
      %v4171 = vsel %vm706, %v4126, 0
      %v4174 = vsel %vm706, %v4127, 0
      %v4177 = vsel %vm706, %v4128, 0
      %v4180 = vsel %vm706, %v4129, 0
      %v4183 = vsel %vm706, %v4130, 0
      %v4186 = vsel %vm706, %v4131, 0
      %v4189 = vsel %vm706, %v4132, 0
      %v4192 = vsel %vm706, %v4133, 0
      %v4195 = vsel %vm706, %v4134, 0
      %v4198 = vsel %vm706, %v4135, 0
      %v4201 = vsel %vm706, %v4136, 0
      %v4204 = vsel %vm706, %v4137, 0
      %v4207 = vsel %vm706, %v4138, 0
      %v4210 = vsel %vm706, %v4139, 0
      %v4213 = vsel %vm706, %v4140, 0
      %v4216 = vsel %vm706, %v4141, 0
      %v4219 = vsel %vm706, %v4142, 0
      %v4222 = vsel %vm706, %v4143, 0
      %v4225 = vsel %vm706, %v4144, 0
      %v4228 = vsel %vm706, %v4145, 0
      %v4231 = vsel %vm706, %v4146, 0
      %v4234 = vsel %vm706, %v4147, 0
      %v4237 = vsel %vm706, %v4148, 0
      %v4240 = vsel %vm706, %v4149, 0
      %v4243 = vsel %vm706, %v4150, 0
      %v4246 = vsel %vm706, %v4151, 0
      %v4249 = vsel %vm706, %v4152, 0
      %4251 = vmatpush.msra.mxu0 0.0
      %4252 = vmatpush.msra.mxu0 0.0
      %4253 = vmatpush.msra.mxu0 0.0
      %4254 = vmatpush.msra.mxu0 0.0
      %4255 = vmatpush.msra.mxu0 0.0
      %4256 = vmatpush.msra.mxu0 0.0
      %4257 = vmatpush.msra.mxu0 0.0
      %4258 = vmatpush.msra.mxu0 0.0
      %4259 = vmatpush.msra.mxu0 0.0
      %4260 = vmatpush.msra.mxu0 0.0
      %4261 = vmatpush.msra.mxu0 0.0
      %4262 = vmatpush.msra.mxu0 0.0
      %4263 = vmatpush.msra.mxu0 0.0
      %4264 = vmatpush.msra.mxu0 0.0
      %4265 = vmatpush.msra.mxu0 0.0
      %4266 = vmatpush.msra.mxu0 %v4154
      %4267 = vmatmul.f32.gmra.mxu0 %v4156
      %v4268 = vpop.f32.mrf.mxu0
      %v4269 = vadd.f32 0.0, %v4268
      %4270 = vmatmul.f32.gmra.mxu0 %v4159
      %v4271 = vpop.f32.mrf.mxu0
      %v4272 = vadd.f32 0.0, %v4271
      %4273 = vmatmul.f32.gmra.mxu0 %v4162
      %v4274 = vpop.f32.mrf.mxu0
      %v4275 = vadd.f32 0.0, %v4274
      %4276 = vmatmul.f32.gmra.mxu0 %v4165
      %v4277 = vpop.f32.mrf.mxu0
      %v4278 = vadd.f32 0.0, %v4277
      %4279 = vmatmul.f32.gmra.mxu0 %v4168
      %v4280 = vpop.f32.mrf.mxu0
      %v4281 = vadd.f32 0.0, %v4280
      %4282 = vmatmul.f32.gmra.mxu0 %v4171
      %v4283 = vpop.f32.mrf.mxu0
      %v4284 = vadd.f32 0.0, %v4283
      %4285 = vmatmul.f32.gmra.mxu0 %v4174
      %v4286 = vpop.f32.mrf.mxu0
      %v4287 = vadd.f32 0.0, %v4286
      %4288 = vmatmul.f32.gmra.mxu0 %v4177
      %v4289 = vpop.f32.mrf.mxu0
      %v4290 = vadd.f32 0.0, %v4289
      %4291 = vmatmul.f32.gmra.mxu0 %v4180
      %v4292 = vpop.f32.mrf.mxu0
      %v4293 = vadd.f32 0.0, %v4292
      %4294 = vmatmul.f32.gmra.mxu0 %v4183
      %v4295 = vpop.f32.mrf.mxu0
      %v4296 = vadd.f32 0.0, %v4295
      %4297 = vmatmul.f32.gmra.mxu0 %v4186
      %v4298 = vpop.f32.mrf.mxu0
      %v4299 = vadd.f32 0.0, %v4298
      %4300 = vmatmul.f32.gmra.mxu0 %v4189
      %v4301 = vpop.f32.mrf.mxu0
      %v4302 = vadd.f32 0.0, %v4301
      %4303 = vmatmul.f32.gmra.mxu0 %v4192
      %v4304 = vpop.f32.mrf.mxu0
      %v4305 = vadd.f32 0.0, %v4304
      %4306 = vmatmul.f32.gmra.mxu0 %v4195
      %v4307 = vpop.f32.mrf.mxu0
      %v4308 = vadd.f32 0.0, %v4307
      %4309 = vmatmul.f32.gmra.mxu0 %v4198
      %v4310 = vpop.f32.mrf.mxu0
      %v4311 = vadd.f32 0.0, %v4310
      %4312 = vmatmul.f32.gmra.mxu0 %v4201
      %v4313 = vpop.f32.mrf.mxu0
      %v4314 = vadd.f32 0.0, %v4313
      %4315 = vmatmul.f32.gmra.mxu0 %v4204
      %v4316 = vpop.f32.mrf.mxu0
      %v4317 = vadd.f32 0.0, %v4316
      %4318 = vmatmul.f32.gmra.mxu0 %v4207
      %v4319 = vpop.f32.mrf.mxu0
      %v4320 = vadd.f32 0.0, %v4319
      %4321 = vmatmul.f32.gmra.mxu0 %v4210
      %v4322 = vpop.f32.mrf.mxu0
      %v4323 = vadd.f32 0.0, %v4322
      %4324 = vmatmul.f32.gmra.mxu0 %v4213
      %v4325 = vpop.f32.mrf.mxu0
      %v4326 = vadd.f32 0.0, %v4325
      %4327 = vmatmul.f32.gmra.mxu0 %v4216
      %v4328 = vpop.f32.mrf.mxu0
      %v4329 = vadd.f32 0.0, %v4328
      %4330 = vmatmul.f32.gmra.mxu0 %v4219
      %v4331 = vpop.f32.mrf.mxu0
      %v4332 = vadd.f32 0.0, %v4331
      %4333 = vmatmul.f32.gmra.mxu0 %v4222
      %v4334 = vpop.f32.mrf.mxu0
      %v4335 = vadd.f32 0.0, %v4334
      %4336 = vmatmul.f32.gmra.mxu0 %v4225
      %v4337 = vpop.f32.mrf.mxu0
      %v4338 = vadd.f32 0.0, %v4337
      %4339 = vmatmul.f32.gmra.mxu0 %v4228
      %v4340 = vpop.f32.mrf.mxu0
      %v4341 = vadd.f32 0.0, %v4340
      %4342 = vmatmul.f32.gmra.mxu0 %v4231
      %v4343 = vpop.f32.mrf.mxu0
      %v4344 = vadd.f32 0.0, %v4343
      %4345 = vmatmul.f32.gmra.mxu0 %v4234
      %v4346 = vpop.f32.mrf.mxu0
      %v4347 = vadd.f32 0.0, %v4346
      %4348 = vmatmul.f32.gmra.mxu0 %v4237
      %v4349 = vpop.f32.mrf.mxu0
      %v4350 = vadd.f32 0.0, %v4349
      %4351 = vmatmul.f32.gmra.mxu0 %v4240
      %v4352 = vpop.f32.mrf.mxu0
      %v4353 = vadd.f32 0.0, %v4352
      %4354 = vmatmul.f32.gmra.mxu0 %v4243
      %v4355 = vpop.f32.mrf.mxu0
      %v4356 = vadd.f32 0.0, %v4355
      %4357 = vmatmul.f32.gmra.mxu0 %v4246
      %v4358 = vpop.f32.mrf.mxu0
      %v4359 = vadd.f32 0.0, %v4358
      %4360 = vmatmul.f32.gmra.mxu0 %v4249
      %v4361 = vpop.f32.mrf.mxu0
      %v4362 = vadd.f32 0.0, %v4361
      %4363 = vdwg.mxu0
      %v4364 = vadd.f32 %v3994, %v4269
      %v4365 = vadd.f32 %v3997, %v4272
      %v4366 = vadd.f32 %v4000, %v4275
      %v4367 = vadd.f32 %v4003, %v4278
      %v4368 = vadd.f32 %v4006, %v4281
      %v4369 = vadd.f32 %v4009, %v4284
      %v4370 = vadd.f32 %v4012, %v4287
      %v4371 = vadd.f32 %v4015, %v4290
      %v4372 = vadd.f32 %v4018, %v4293
      %v4373 = vadd.f32 %v4021, %v4296
      %v4374 = vadd.f32 %v4024, %v4299
      %v4375 = vadd.f32 %v4027, %v4302
      %v4376 = vadd.f32 %v4030, %v4305
      %v4377 = vadd.f32 %v4033, %v4308
      %v4378 = vadd.f32 %v4036, %v4311
      %v4379 = vadd.f32 %v4039, %v4314
      %v4380 = vadd.f32 %v4042, %v4317
      %v4381 = vadd.f32 %v4045, %v4320
      %v4382 = vadd.f32 %v4048, %v4323
      %v4383 = vadd.f32 %v4051, %v4326
      %v4384 = vadd.f32 %v4054, %v4329
      %v4385 = vadd.f32 %v4057, %v4332
      %v4386 = vadd.f32 %v4060, %v4335
      %v4387 = vadd.f32 %v4063, %v4338
      %v4388 = vadd.f32 %v4066, %v4341
      %v4389 = vadd.f32 %v4069, %v4344
      %v4390 = vadd.f32 %v4072, %v4347
      %v4391 = vadd.f32 %v4075, %v4350
      %v4392 = vadd.f32 %v4078, %v4353
      %v4393 = vadd.f32 %v4081, %v4356
      %v4394 = vadd.f32 %v4084, %v4359
      %v4395 = vadd.f32 %v4087, %v4362
      %v4396 = vld [vmem:[#allocation2 + $0x17] sm:$0xff]
      %v4397 = vld [vmem:[#allocation2 + $0x1f] sm:$0xff]
      %v4398 = vld [vmem:[#allocation2 + $0x27] sm:$0xff]
      %v4399 = vld [vmem:[#allocation2 + $0x2f] sm:$0xff]
      %v4400 = vld [vmem:[#allocation2 + $0x37] sm:$0xff]
      %v4401 = vld [vmem:[#allocation2 + $0x3f] sm:$0xff]
      %v4402 = vld [vmem:[#allocation2 + $0x47] sm:$0xff]
      %v4403 = vld [vmem:[#allocation2 + $0x4f] sm:$0xff]
      %v4404 = vld [vmem:[#allocation2 + $0x57] sm:$0xff]
      %v4405 = vld [vmem:[#allocation2 + $0x5f] sm:$0xff]
      %v4406 = vld [vmem:[#allocation2 + $0x67] sm:$0xff]
      %v4407 = vld [vmem:[#allocation2 + $0x6f] sm:$0xff]
      %v4408 = vld [vmem:[#allocation2 + $0x77] sm:$0xff]
      %v4409 = vld [vmem:[#allocation2 + $0x7f] sm:$0xff]
      %v4410 = vld [vmem:[#allocation2 + $0x87] sm:$0xff]
      %v4411 = vld [vmem:[#allocation2 + $0x8f] sm:$0xff]
      %v4412 = vld [vmem:[#allocation2 + $0x97] sm:$0xff]
      %v4413 = vld [vmem:[#allocation2 + $0x9f] sm:$0xff]
      %v4414 = vld [vmem:[#allocation2 + $0xa7] sm:$0xff]
      %v4415 = vld [vmem:[#allocation2 + $0xaf] sm:$0xff]
      %v4416 = vld [vmem:[#allocation2 + $0xb7] sm:$0xff]
      %v4417 = vld [vmem:[#allocation2 + $0xbf] sm:$0xff]
      %v4418 = vld [vmem:[#allocation2 + $0xc7] sm:$0xff]
      %v4419 = vld [vmem:[#allocation2 + $0xcf] sm:$0xff]
      %v4420 = vld [vmem:[#allocation2 + $0xd7] sm:$0xff]
      %v4421 = vld [vmem:[#allocation2 + $0xdf] sm:$0xff]
      %v4422 = vld [vmem:[#allocation2 + $0xe7] sm:$0xff]
      %v4423 = vld [vmem:[#allocation2 + $0xef] sm:$0xff]
      %v4424 = vld [vmem:[#allocation2 + $0xf7] sm:$0xff]
      %v4425 = vld [vmem:[#allocation2 + $0xff] sm:$0xff]
      %v4426 = vld [vmem:[#allocation2 + $0x107] sm:$0xff]
      %v4427 = vld [vmem:[#allocation2 + $0x10f] sm:$0xff]
      %v4428 = vsel %vm777, %v4396, 0.0
      %v4429 = vsel %vm778, %v4397, 0.0
      %v4430 = vsel %vm779, %v4398, 0.0
      %v4431 = vsel %vm780, %v4399, 0.0
      %v4432 = vsel %vm781, %v4400, 0.0
      %v4433 = vsel %vm782, %v4401, 0.0
      %v4434 = vsel %vm783, %v4402, 0.0
      %v4435 = vsel %vm784, %v4403, 0.0
      %v4436 = vsel %vm785, %v4404, 0.0
      %v4437 = vsel %vm786, %v4405, 0.0
      %v4438 = vsel %vm787, %v4406, 0.0
      %v4439 = vsel %vm788, %v4407, 0.0
      %v4440 = vsel %vm789, %v4408, 0.0
      %v4441 = vsel %vm790, %v4409, 0.0
      %v4442 = vsel %vm791, %v4410, 0.0
      %v4443 = vsel %vm792, %v4411, 0.0
      %v4444 = vsel %vm793, %v4412, 0.0
      %v4445 = vsel %vm794, %v4413, 0.0
      %v4446 = vsel %vm795, %v4414, 0.0
      %v4447 = vsel %vm796, %v4415, 0.0
      %v4448 = vsel %vm797, %v4416, 0.0
      %v4449 = vsel %vm798, %v4417, 0.0
      %v4450 = vsel %vm799, %v4418, 0.0
      %v4451 = vsel %vm800, %v4419, 0.0
      %v4452 = vsel %vm801, %v4420, 0.0
      %v4453 = vsel %vm802, %v4421, 0.0
      %v4454 = vsel %vm803, %v4422, 0.0
      %v4455 = vsel %vm804, %v4423, 0.0
      %v4456 = vsel %vm805, %v4424, 0.0
      %v4457 = vsel %vm806, %v4425, 0.0
      %v4458 = vsel %vm807, %v4426, 0.0
      %v4459 = vsel %vm808, %v4427, 0.0
      %s4460 = scalar_lea.vmem %s3, 24
      %v4461 = vld [vmem:[%s4460] sm:$0xff]
      %v4463 = vsel %vm706, %v4428, 0
      %v4466 = vsel %vm706, %v4429, 0
      %v4469 = vsel %vm706, %v4430, 0
      %v4472 = vsel %vm706, %v4431, 0
      %v4475 = vsel %vm706, %v4432, 0
      %v4478 = vsel %vm706, %v4433, 0
      %v4481 = vsel %vm706, %v4434, 0
      %v4484 = vsel %vm706, %v4435, 0
      %v4487 = vsel %vm706, %v4436, 0
      %v4490 = vsel %vm706, %v4437, 0
      %v4493 = vsel %vm706, %v4438, 0
      %v4496 = vsel %vm706, %v4439, 0
      %v4499 = vsel %vm706, %v4440, 0
      %v4502 = vsel %vm706, %v4441, 0
      %v4505 = vsel %vm706, %v4442, 0
      %v4508 = vsel %vm706, %v4443, 0
      %v4511 = vsel %vm706, %v4444, 0
      %v4514 = vsel %vm706, %v4445, 0
      %v4517 = vsel %vm706, %v4446, 0
      %v4520 = vsel %vm706, %v4447, 0
      %v4523 = vsel %vm706, %v4448, 0
      %v4526 = vsel %vm706, %v4449, 0
      %v4529 = vsel %vm706, %v4450, 0
      %v4532 = vsel %vm706, %v4451, 0
      %v4535 = vsel %vm706, %v4452, 0
      %v4538 = vsel %vm706, %v4453, 0
      %v4541 = vsel %vm706, %v4454, 0
      %v4544 = vsel %vm706, %v4455, 0
      %v4547 = vsel %vm706, %v4456, 0
      %v4550 = vsel %vm706, %v4457, 0
      %v4553 = vsel %vm706, %v4458, 0
      %v4556 = vsel %vm706, %v4459, 0
      %4558 = vmatpush.msra.mxu0 0.0
      %4559 = vmatpush.msra.mxu0 0.0
      %4560 = vmatpush.msra.mxu0 0.0
      %4561 = vmatpush.msra.mxu0 0.0
      %4562 = vmatpush.msra.mxu0 0.0
      %4563 = vmatpush.msra.mxu0 0.0
      %4564 = vmatpush.msra.mxu0 0.0
      %4565 = vmatpush.msra.mxu0 0.0
      %4566 = vmatpush.msra.mxu0 0.0
      %4567 = vmatpush.msra.mxu0 0.0
      %4568 = vmatpush.msra.mxu0 0.0
      %4569 = vmatpush.msra.mxu0 0.0
      %4570 = vmatpush.msra.mxu0 0.0
      %4571 = vmatpush.msra.mxu0 0.0
      %4572 = vmatpush.msra.mxu0 0.0
      %4573 = vmatpush.msra.mxu0 %v4461
      %4574 = vmatmul.f32.gmra.mxu0 %v4463
      %v4575 = vpop.f32.mrf.mxu0
      %v4576 = vadd.f32 0.0, %v4575
      %4577 = vmatmul.f32.gmra.mxu0 %v4466
      %v4578 = vpop.f32.mrf.mxu0
      %v4579 = vadd.f32 0.0, %v4578
      %4580 = vmatmul.f32.gmra.mxu0 %v4469
      %v4581 = vpop.f32.mrf.mxu0
      %v4582 = vadd.f32 0.0, %v4581
      %4583 = vmatmul.f32.gmra.mxu0 %v4472
      %v4584 = vpop.f32.mrf.mxu0
      %v4585 = vadd.f32 0.0, %v4584
      %4586 = vmatmul.f32.gmra.mxu0 %v4475
      %v4587 = vpop.f32.mrf.mxu0
      %v4588 = vadd.f32 0.0, %v4587
      %4589 = vmatmul.f32.gmra.mxu0 %v4478
      %v4590 = vpop.f32.mrf.mxu0
      %v4591 = vadd.f32 0.0, %v4590
      %4592 = vmatmul.f32.gmra.mxu0 %v4481
      %v4593 = vpop.f32.mrf.mxu0
      %v4594 = vadd.f32 0.0, %v4593
      %4595 = vmatmul.f32.gmra.mxu0 %v4484
      %v4596 = vpop.f32.mrf.mxu0
      %v4597 = vadd.f32 0.0, %v4596
      %4598 = vmatmul.f32.gmra.mxu0 %v4487
      %v4599 = vpop.f32.mrf.mxu0
      %v4600 = vadd.f32 0.0, %v4599
      %4601 = vmatmul.f32.gmra.mxu0 %v4490
      %v4602 = vpop.f32.mrf.mxu0
      %v4603 = vadd.f32 0.0, %v4602
      %4604 = vmatmul.f32.gmra.mxu0 %v4493
      %v4605 = vpop.f32.mrf.mxu0
      %v4606 = vadd.f32 0.0, %v4605
      %4607 = vmatmul.f32.gmra.mxu0 %v4496
      %v4608 = vpop.f32.mrf.mxu0
      %v4609 = vadd.f32 0.0, %v4608
      %4610 = vmatmul.f32.gmra.mxu0 %v4499
      %v4611 = vpop.f32.mrf.mxu0
      %v4612 = vadd.f32 0.0, %v4611
      %4613 = vmatmul.f32.gmra.mxu0 %v4502
      %v4614 = vpop.f32.mrf.mxu0
      %v4615 = vadd.f32 0.0, %v4614
      %4616 = vmatmul.f32.gmra.mxu0 %v4505
      %v4617 = vpop.f32.mrf.mxu0
      %v4618 = vadd.f32 0.0, %v4617
      %4619 = vmatmul.f32.gmra.mxu0 %v4508
      %v4620 = vpop.f32.mrf.mxu0
      %v4621 = vadd.f32 0.0, %v4620
      %4622 = vmatmul.f32.gmra.mxu0 %v4511
      %v4623 = vpop.f32.mrf.mxu0
      %v4624 = vadd.f32 0.0, %v4623
      %4625 = vmatmul.f32.gmra.mxu0 %v4514
      %v4626 = vpop.f32.mrf.mxu0
      %v4627 = vadd.f32 0.0, %v4626
      %4628 = vmatmul.f32.gmra.mxu0 %v4517
      %v4629 = vpop.f32.mrf.mxu0
      %v4630 = vadd.f32 0.0, %v4629
      %4631 = vmatmul.f32.gmra.mxu0 %v4520
      %v4632 = vpop.f32.mrf.mxu0
      %v4633 = vadd.f32 0.0, %v4632
      %4634 = vmatmul.f32.gmra.mxu0 %v4523
      %v4635 = vpop.f32.mrf.mxu0
      %v4636 = vadd.f32 0.0, %v4635
      %4637 = vmatmul.f32.gmra.mxu0 %v4526
      %v4638 = vpop.f32.mrf.mxu0
      %v4639 = vadd.f32 0.0, %v4638
      %4640 = vmatmul.f32.gmra.mxu0 %v4529
      %v4641 = vpop.f32.mrf.mxu0
      %v4642 = vadd.f32 0.0, %v4641
      %4643 = vmatmul.f32.gmra.mxu0 %v4532
      %v4644 = vpop.f32.mrf.mxu0
      %v4645 = vadd.f32 0.0, %v4644
      %4646 = vmatmul.f32.gmra.mxu0 %v4535
      %v4647 = vpop.f32.mrf.mxu0
      %v4648 = vadd.f32 0.0, %v4647
      %4649 = vmatmul.f32.gmra.mxu0 %v4538
      %v4650 = vpop.f32.mrf.mxu0
      %v4651 = vadd.f32 0.0, %v4650
      %4652 = vmatmul.f32.gmra.mxu0 %v4541
      %v4653 = vpop.f32.mrf.mxu0
      %v4654 = vadd.f32 0.0, %v4653
      %4655 = vmatmul.f32.gmra.mxu0 %v4544
      %v4656 = vpop.f32.mrf.mxu0
      %v4657 = vadd.f32 0.0, %v4656
      %4658 = vmatmul.f32.gmra.mxu0 %v4547
      %v4659 = vpop.f32.mrf.mxu0
      %v4660 = vadd.f32 0.0, %v4659
      %4661 = vmatmul.f32.gmra.mxu0 %v4550
      %v4662 = vpop.f32.mrf.mxu0
      %v4663 = vadd.f32 0.0, %v4662
      %4664 = vmatmul.f32.gmra.mxu0 %v4553
      %v4665 = vpop.f32.mrf.mxu0
      %v4666 = vadd.f32 0.0, %v4665
      %4667 = vmatmul.f32.gmra.mxu0 %v4556
      %v4668 = vpop.f32.mrf.mxu0
      %v4669 = vadd.f32 0.0, %v4668
      %4670 = vdwg.mxu0
      %v4671 = vadd.f32 %v4364, %v4576
      %v4672 = vadd.f32 %v4365, %v4579
      %v4673 = vadd.f32 %v4366, %v4582
      %v4674 = vadd.f32 %v4367, %v4585
      %v4675 = vadd.f32 %v4368, %v4588
      %v4676 = vadd.f32 %v4369, %v4591
      %v4677 = vadd.f32 %v4370, %v4594
      %v4678 = vadd.f32 %v4371, %v4597
      %v4679 = vadd.f32 %v4372, %v4600
      %v4680 = vadd.f32 %v4373, %v4603
      %v4681 = vadd.f32 %v4374, %v4606
      %v4682 = vadd.f32 %v4375, %v4609
      %v4683 = vadd.f32 %v4376, %v4612
      %v4684 = vadd.f32 %v4377, %v4615
      %v4685 = vadd.f32 %v4378, %v4618
      %v4686 = vadd.f32 %v4379, %v4621
      %v4687 = vadd.f32 %v4380, %v4624
      %v4688 = vadd.f32 %v4381, %v4627
      %v4689 = vadd.f32 %v4382, %v4630
      %v4690 = vadd.f32 %v4383, %v4633
      %v4691 = vadd.f32 %v4384, %v4636
      %v4692 = vadd.f32 %v4385, %v4639
      %v4693 = vadd.f32 %v4386, %v4642
      %v4694 = vadd.f32 %v4387, %v4645
      %v4695 = vadd.f32 %v4388, %v4648
      %v4696 = vadd.f32 %v4389, %v4651
      %v4697 = vadd.f32 %v4390, %v4654
      %v4698 = vadd.f32 %v4391, %v4657
      %v4699 = vadd.f32 %v4392, %v4660
      %v4700 = vadd.f32 %v4393, %v4663
      %v4701 = vadd.f32 %v4394, %v4666
      %v4702 = vadd.f32 %v4395, %v4669
      %v4703 = vld [vmem:[#allocation2 + $0x18] sm:$0xff]
      %v4704 = vld [vmem:[#allocation2 + $0x20] sm:$0xff]
      %v4705 = vld [vmem:[#allocation2 + $0x28] sm:$0xff]
      %v4706 = vld [vmem:[#allocation2 + $0x30] sm:$0xff]
      %v4707 = vld [vmem:[#allocation2 + $0x38] sm:$0xff]
      %v4708 = vld [vmem:[#allocation2 + $0x40] sm:$0xff]
      %v4709 = vld [vmem:[#allocation2 + $0x48] sm:$0xff]
      %v4710 = vld [vmem:[#allocation2 + $0x50] sm:$0xff]
      %v4711 = vld [vmem:[#allocation2 + $0x58] sm:$0xff]
      %v4712 = vld [vmem:[#allocation2 + $0x60] sm:$0xff]
      %v4713 = vld [vmem:[#allocation2 + $0x68] sm:$0xff]
      %v4714 = vld [vmem:[#allocation2 + $0x70] sm:$0xff]
      %v4715 = vld [vmem:[#allocation2 + $0x78] sm:$0xff]
      %v4716 = vld [vmem:[#allocation2 + $0x80] sm:$0xff]
      %v4717 = vld [vmem:[#allocation2 + $0x88] sm:$0xff]
      %v4718 = vld [vmem:[#allocation2 + $0x90] sm:$0xff]
      %v4719 = vld [vmem:[#allocation2 + $0x98] sm:$0xff]
      %v4720 = vld [vmem:[#allocation2 + $0xa0] sm:$0xff]
      %v4721 = vld [vmem:[#allocation2 + $0xa8] sm:$0xff]
      %v4722 = vld [vmem:[#allocation2 + $0xb0] sm:$0xff]
      %v4723 = vld [vmem:[#allocation2 + $0xb8] sm:$0xff]
      %v4724 = vld [vmem:[#allocation2 + $0xc0] sm:$0xff]
      %v4725 = vld [vmem:[#allocation2 + $0xc8] sm:$0xff]
      %v4726 = vld [vmem:[#allocation2 + $0xd0] sm:$0xff]
      %v4727 = vld [vmem:[#allocation2 + $0xd8] sm:$0xff]
      %v4728 = vld [vmem:[#allocation2 + $0xe0] sm:$0xff]
      %v4729 = vld [vmem:[#allocation2 + $0xe8] sm:$0xff]
      %v4730 = vld [vmem:[#allocation2 + $0xf0] sm:$0xff]
      %v4731 = vld [vmem:[#allocation2 + $0xf8] sm:$0xff]
      %v4732 = vld [vmem:[#allocation2 + $0x100] sm:$0xff]
      %v4733 = vld [vmem:[#allocation2 + $0x108] sm:$0xff]
      %v4734 = vld [vmem:[#allocation2 + $0x110] sm:$0xff]
      %s4735 = scalar_lea.vmem %s3, 32
      %v4736 = vld [vmem:[%s4735] sm:$0xff]
      %v4738 = vsel %vm706, %v4703, 0
      %v4741 = vsel %vm706, %v4704, 0
      %v4744 = vsel %vm706, %v4705, 0
      %v4747 = vsel %vm706, %v4706, 0
      %v4750 = vsel %vm706, %v4707, 0
      %v4753 = vsel %vm706, %v4708, 0
      %v4756 = vsel %vm706, %v4709, 0
      %v4759 = vsel %vm706, %v4710, 0
      %v4762 = vsel %vm706, %v4711, 0
      %v4765 = vsel %vm706, %v4712, 0
      %v4768 = vsel %vm706, %v4713, 0
      %v4771 = vsel %vm706, %v4714, 0
      %v4774 = vsel %vm706, %v4715, 0
      %v4777 = vsel %vm706, %v4716, 0
      %v4780 = vsel %vm706, %v4717, 0
      %v4783 = vsel %vm706, %v4718, 0
      %v4786 = vsel %vm706, %v4719, 0
      %v4789 = vsel %vm706, %v4720, 0
      %v4792 = vsel %vm706, %v4721, 0
      %v4795 = vsel %vm706, %v4722, 0
      %v4798 = vsel %vm706, %v4723, 0
      %v4801 = vsel %vm706, %v4724, 0
      %v4804 = vsel %vm706, %v4725, 0
      %v4807 = vsel %vm706, %v4726, 0
      %v4810 = vsel %vm706, %v4727, 0
      %v4813 = vsel %vm706, %v4728, 0
      %v4816 = vsel %vm706, %v4729, 0
      %v4819 = vsel %vm706, %v4730, 0
      %v4822 = vsel %vm706, %v4731, 0
      %v4825 = vsel %vm706, %v4732, 0
      %v4828 = vsel %vm706, %v4733, 0
      %v4831 = vsel %vm706, %v4734, 0
      %4833 = vmatpush.msra.mxu0 0.0
      %4834 = vmatpush.msra.mxu0 0.0
      %4835 = vmatpush.msra.mxu0 0.0
      %4836 = vmatpush.msra.mxu0 0.0
      %4837 = vmatpush.msra.mxu0 0.0
      %4838 = vmatpush.msra.mxu0 0.0
      %4839 = vmatpush.msra.mxu0 0.0
      %4840 = vmatpush.msra.mxu0 0.0
      %4841 = vmatpush.msra.mxu0 0.0
      %4842 = vmatpush.msra.mxu0 0.0
      %4843 = vmatpush.msra.mxu0 0.0
      %4844 = vmatpush.msra.mxu0 0.0
      %4845 = vmatpush.msra.mxu0 0.0
      %4846 = vmatpush.msra.mxu0 0.0
      %4847 = vmatpush.msra.mxu0 0.0
      %4848 = vmatpush.msra.mxu0 %v4736
      %4849 = vmatmul.f32.gmra.mxu0 %v4738
      %v4850 = vpop.f32.mrf.mxu0
      %v4851 = vadd.f32 0.0, %v4850
      %4852 = vmatmul.f32.gmra.mxu0 %v4741
      %v4853 = vpop.f32.mrf.mxu0
      %v4854 = vadd.f32 0.0, %v4853
      %4855 = vmatmul.f32.gmra.mxu0 %v4744
      %v4856 = vpop.f32.mrf.mxu0
      %v4857 = vadd.f32 0.0, %v4856
      %4858 = vmatmul.f32.gmra.mxu0 %v4747
      %v4859 = vpop.f32.mrf.mxu0
      %v4860 = vadd.f32 0.0, %v4859
      %4861 = vmatmul.f32.gmra.mxu0 %v4750
      %v4862 = vpop.f32.mrf.mxu0
      %v4863 = vadd.f32 0.0, %v4862
      %4864 = vmatmul.f32.gmra.mxu0 %v4753
      %v4865 = vpop.f32.mrf.mxu0
      %v4866 = vadd.f32 0.0, %v4865
      %4867 = vmatmul.f32.gmra.mxu0 %v4756
      %v4868 = vpop.f32.mrf.mxu0
      %v4869 = vadd.f32 0.0, %v4868
      %4870 = vmatmul.f32.gmra.mxu0 %v4759
      %v4871 = vpop.f32.mrf.mxu0
      %v4872 = vadd.f32 0.0, %v4871
      %4873 = vmatmul.f32.gmra.mxu0 %v4762
      %v4874 = vpop.f32.mrf.mxu0
      %v4875 = vadd.f32 0.0, %v4874
      %4876 = vmatmul.f32.gmra.mxu0 %v4765
      %v4877 = vpop.f32.mrf.mxu0
      %v4878 = vadd.f32 0.0, %v4877
      %4879 = vmatmul.f32.gmra.mxu0 %v4768
      %v4880 = vpop.f32.mrf.mxu0
      %v4881 = vadd.f32 0.0, %v4880
      %4882 = vmatmul.f32.gmra.mxu0 %v4771
      %v4883 = vpop.f32.mrf.mxu0
      %v4884 = vadd.f32 0.0, %v4883
      %4885 = vmatmul.f32.gmra.mxu0 %v4774
      %v4886 = vpop.f32.mrf.mxu0
      %v4887 = vadd.f32 0.0, %v4886
      %4888 = vmatmul.f32.gmra.mxu0 %v4777
      %v4889 = vpop.f32.mrf.mxu0
      %v4890 = vadd.f32 0.0, %v4889
      %4891 = vmatmul.f32.gmra.mxu0 %v4780
      %v4892 = vpop.f32.mrf.mxu0
      %v4893 = vadd.f32 0.0, %v4892
      %4894 = vmatmul.f32.gmra.mxu0 %v4783
      %v4895 = vpop.f32.mrf.mxu0
      %v4896 = vadd.f32 0.0, %v4895
      %4897 = vmatmul.f32.gmra.mxu0 %v4786
      %v4898 = vpop.f32.mrf.mxu0
      %v4899 = vadd.f32 0.0, %v4898
      %4900 = vmatmul.f32.gmra.mxu0 %v4789
      %v4901 = vpop.f32.mrf.mxu0
      %v4902 = vadd.f32 0.0, %v4901
      %4903 = vmatmul.f32.gmra.mxu0 %v4792
      %v4904 = vpop.f32.mrf.mxu0
      %v4905 = vadd.f32 0.0, %v4904
      %4906 = vmatmul.f32.gmra.mxu0 %v4795
      %v4907 = vpop.f32.mrf.mxu0
      %v4908 = vadd.f32 0.0, %v4907
      %4909 = vmatmul.f32.gmra.mxu0 %v4798
      %v4910 = vpop.f32.mrf.mxu0
      %v4911 = vadd.f32 0.0, %v4910
      %4912 = vmatmul.f32.gmra.mxu0 %v4801
      %v4913 = vpop.f32.mrf.mxu0
      %v4914 = vadd.f32 0.0, %v4913
      %4915 = vmatmul.f32.gmra.mxu0 %v4804
      %v4916 = vpop.f32.mrf.mxu0
      %v4917 = vadd.f32 0.0, %v4916
      %4918 = vmatmul.f32.gmra.mxu0 %v4807
      %v4919 = vpop.f32.mrf.mxu0
      %v4920 = vadd.f32 0.0, %v4919
      %4921 = vmatmul.f32.gmra.mxu0 %v4810
      %v4922 = vpop.f32.mrf.mxu0
      %v4923 = vadd.f32 0.0, %v4922
      %4924 = vmatmul.f32.gmra.mxu0 %v4813
      %v4925 = vpop.f32.mrf.mxu0
      %v4926 = vadd.f32 0.0, %v4925
      %4927 = vmatmul.f32.gmra.mxu0 %v4816
      %v4928 = vpop.f32.mrf.mxu0
      %v4929 = vadd.f32 0.0, %v4928
      %4930 = vmatmul.f32.gmra.mxu0 %v4819
      %v4931 = vpop.f32.mrf.mxu0
      %v4932 = vadd.f32 0.0, %v4931
      %4933 = vmatmul.f32.gmra.mxu0 %v4822
      %v4934 = vpop.f32.mrf.mxu0
      %v4935 = vadd.f32 0.0, %v4934
      %4936 = vmatmul.f32.gmra.mxu0 %v4825
      %v4937 = vpop.f32.mrf.mxu0
      %v4938 = vadd.f32 0.0, %v4937
      %4939 = vmatmul.f32.gmra.mxu0 %v4828
      %v4940 = vpop.f32.mrf.mxu0
      %v4941 = vadd.f32 0.0, %v4940
      %4942 = vmatmul.f32.gmra.mxu0 %v4831
      %v4943 = vpop.f32.mrf.mxu0
      %v4944 = vadd.f32 0.0, %v4943
      %4945 = vdwg.mxu0
      %v4946 = vadd.f32 %v4671, %v4851
      %v4947 = vadd.f32 %v4672, %v4854
      %v4948 = vadd.f32 %v4673, %v4857
      %v4949 = vadd.f32 %v4674, %v4860
      %v4950 = vadd.f32 %v4675, %v4863
      %v4951 = vadd.f32 %v4676, %v4866
      %v4952 = vadd.f32 %v4677, %v4869
      %v4953 = vadd.f32 %v4678, %v4872
      %v4954 = vadd.f32 %v4679, %v4875
      %v4955 = vadd.f32 %v4680, %v4878
      %v4956 = vadd.f32 %v4681, %v4881
      %v4957 = vadd.f32 %v4682, %v4884
      %v4958 = vadd.f32 %v4683, %v4887
      %v4959 = vadd.f32 %v4684, %v4890
      %v4960 = vadd.f32 %v4685, %v4893
      %v4961 = vadd.f32 %v4686, %v4896
      %v4962 = vadd.f32 %v4687, %v4899
      %v4963 = vadd.f32 %v4688, %v4902
      %v4964 = vadd.f32 %v4689, %v4905
      %v4965 = vadd.f32 %v4690, %v4908
      %v4966 = vadd.f32 %v4691, %v4911
      %v4967 = vadd.f32 %v4692, %v4914
      %v4968 = vadd.f32 %v4693, %v4917
      %v4969 = vadd.f32 %v4694, %v4920
      %v4970 = vadd.f32 %v4695, %v4923
      %v4971 = vadd.f32 %v4696, %v4926
      %v4972 = vadd.f32 %v4697, %v4929
      %v4973 = vadd.f32 %v4698, %v4932
      %v4974 = vadd.f32 %v4699, %v4935
      %v4975 = vadd.f32 %v4700, %v4938
      %v4976 = vadd.f32 %v4701, %v4941
      %v4977 = vadd.f32 %v4702, %v4944
      %v4978 = vld [vmem:[#allocation2 + $0x19] sm:$0xff]
      %v4979 = vld [vmem:[#allocation2 + $0x21] sm:$0xff]
      %v4980 = vld [vmem:[#allocation2 + $0x29] sm:$0xff]
      %v4981 = vld [vmem:[#allocation2 + $0x31] sm:$0xff]
      %v4982 = vld [vmem:[#allocation2 + $0x39] sm:$0xff]
      %v4983 = vld [vmem:[#allocation2 + $0x41] sm:$0xff]
      %v4984 = vld [vmem:[#allocation2 + $0x49] sm:$0xff]
      %v4985 = vld [vmem:[#allocation2 + $0x51] sm:$0xff]
      %v4986 = vld [vmem:[#allocation2 + $0x59] sm:$0xff]
      %v4987 = vld [vmem:[#allocation2 + $0x61] sm:$0xff]
      %v4988 = vld [vmem:[#allocation2 + $0x69] sm:$0xff]
      %v4989 = vld [vmem:[#allocation2 + $0x71] sm:$0xff]
      %v4990 = vld [vmem:[#allocation2 + $0x79] sm:$0xff]
      %v4991 = vld [vmem:[#allocation2 + $0x81] sm:$0xff]
      %v4992 = vld [vmem:[#allocation2 + $0x89] sm:$0xff]
      %v4993 = vld [vmem:[#allocation2 + $0x91] sm:$0xff]
      %v4994 = vld [vmem:[#allocation2 + $0x99] sm:$0xff]
      %v4995 = vld [vmem:[#allocation2 + $0xa1] sm:$0xff]
      %v4996 = vld [vmem:[#allocation2 + $0xa9] sm:$0xff]
      %v4997 = vld [vmem:[#allocation2 + $0xb1] sm:$0xff]
      %v4998 = vld [vmem:[#allocation2 + $0xb9] sm:$0xff]
      %v4999 = vld [vmem:[#allocation2 + $0xc1] sm:$0xff]
      %v5000 = vld [vmem:[#allocation2 + $0xc9] sm:$0xff]
      %v5001 = vld [vmem:[#allocation2 + $0xd1] sm:$0xff]
      %v5002 = vld [vmem:[#allocation2 + $0xd9] sm:$0xff]
      %v5003 = vld [vmem:[#allocation2 + $0xe1] sm:$0xff]
      %v5004 = vld [vmem:[#allocation2 + $0xe9] sm:$0xff]
      %v5005 = vld [vmem:[#allocation2 + $0xf1] sm:$0xff]
      %v5006 = vld [vmem:[#allocation2 + $0xf9] sm:$0xff]
      %v5007 = vld [vmem:[#allocation2 + $0x101] sm:$0xff]
      %v5008 = vld [vmem:[#allocation2 + $0x109] sm:$0xff]
      %v5009 = vld [vmem:[#allocation2 + $0x111] sm:$0xff]
      %v5010 = vsel %vm1366, %v4978, 0.0
      %v5011 = vsel %vm1367, %v4979, 0.0
      %v5012 = vsel %vm1368, %v4980, 0.0
      %v5013 = vsel %vm1369, %v4981, 0.0
      %v5014 = vsel %vm1370, %v4982, 0.0
      %v5015 = vsel %vm1371, %v4983, 0.0
      %v5016 = vsel %vm1372, %v4984, 0.0
      %v5017 = vsel %vm1373, %v4985, 0.0
      %v5018 = vsel %vm1374, %v4986, 0.0
      %v5019 = vsel %vm1375, %v4987, 0.0
      %v5020 = vsel %vm1376, %v4988, 0.0
      %v5021 = vsel %vm1377, %v4989, 0.0
      %v5022 = vsel %vm1378, %v4990, 0.0
      %v5023 = vsel %vm1379, %v4991, 0.0
      %v5024 = vsel %vm1380, %v4992, 0.0
      %v5025 = vsel %vm1381, %v4993, 0.0
      %v5026 = vsel %vm1382, %v4994, 0.0
      %v5027 = vsel %vm1383, %v4995, 0.0
      %v5028 = vsel %vm1384, %v4996, 0.0
      %v5029 = vsel %vm1385, %v4997, 0.0
      %v5030 = vsel %vm1386, %v4998, 0.0
      %v5031 = vsel %vm1387, %v4999, 0.0
      %v5032 = vsel %vm1388, %v5000, 0.0
      %v5033 = vsel %vm1389, %v5001, 0.0
      %v5034 = vsel %vm1390, %v5002, 0.0
      %v5035 = vsel %vm1391, %v5003, 0.0
      %v5036 = vsel %vm1392, %v5004, 0.0
      %v5037 = vsel %vm1393, %v5005, 0.0
      %v5038 = vsel %vm1394, %v5006, 0.0
      %v5039 = vsel %vm1395, %v5007, 0.0
      %v5040 = vsel %vm1396, %v5008, 0.0
      %v5041 = vsel %vm1397, %v5009, 0.0
      %s5042 = scalar_lea.vmem %s3, 40
      %v5043 = vld [vmem:[%s5042] sm:$0xff]
      %v5045 = vsel %vm706, %v5010, 0
      %v5048 = vsel %vm706, %v5011, 0
      %v5051 = vsel %vm706, %v5012, 0
      %v5054 = vsel %vm706, %v5013, 0
      %v5057 = vsel %vm706, %v5014, 0
      %v5060 = vsel %vm706, %v5015, 0
      %v5063 = vsel %vm706, %v5016, 0
      %v5066 = vsel %vm706, %v5017, 0
      %v5069 = vsel %vm706, %v5018, 0
      %v5072 = vsel %vm706, %v5019, 0
      %v5075 = vsel %vm706, %v5020, 0
      %v5078 = vsel %vm706, %v5021, 0
      %v5081 = vsel %vm706, %v5022, 0
      %v5084 = vsel %vm706, %v5023, 0
      %v5087 = vsel %vm706, %v5024, 0
      %v5090 = vsel %vm706, %v5025, 0
      %v5093 = vsel %vm706, %v5026, 0
      %v5096 = vsel %vm706, %v5027, 0
      %v5099 = vsel %vm706, %v5028, 0
      %v5102 = vsel %vm706, %v5029, 0
      %v5105 = vsel %vm706, %v5030, 0
      %v5108 = vsel %vm706, %v5031, 0
      %v5111 = vsel %vm706, %v5032, 0
      %v5114 = vsel %vm706, %v5033, 0
      %v5117 = vsel %vm706, %v5034, 0
      %v5120 = vsel %vm706, %v5035, 0
      %v5123 = vsel %vm706, %v5036, 0
      %v5126 = vsel %vm706, %v5037, 0
      %v5129 = vsel %vm706, %v5038, 0
      %v5132 = vsel %vm706, %v5039, 0
      %v5135 = vsel %vm706, %v5040, 0
      %v5138 = vsel %vm706, %v5041, 0
      %5140 = vmatpush.msra.mxu0 0.0
      %5141 = vmatpush.msra.mxu0 0.0
      %5142 = vmatpush.msra.mxu0 0.0
      %5143 = vmatpush.msra.mxu0 0.0
      %5144 = vmatpush.msra.mxu0 0.0
      %5145 = vmatpush.msra.mxu0 0.0
      %5146 = vmatpush.msra.mxu0 0.0
      %5147 = vmatpush.msra.mxu0 0.0
      %5148 = vmatpush.msra.mxu0 0.0
      %5149 = vmatpush.msra.mxu0 0.0
      %5150 = vmatpush.msra.mxu0 0.0
      %5151 = vmatpush.msra.mxu0 0.0
      %5152 = vmatpush.msra.mxu0 0.0
      %5153 = vmatpush.msra.mxu0 0.0
      %5154 = vmatpush.msra.mxu0 0.0
      %5155 = vmatpush.msra.mxu0 %v5043
      %5156 = vmatmul.f32.gmra.mxu0 %v5045
      %v5157 = vpop.f32.mrf.mxu0
      %v5158 = vadd.f32 0.0, %v5157
      %5159 = vmatmul.f32.gmra.mxu0 %v5048
      %v5160 = vpop.f32.mrf.mxu0
      %v5161 = vadd.f32 0.0, %v5160
      %5162 = vmatmul.f32.gmra.mxu0 %v5051
      %v5163 = vpop.f32.mrf.mxu0
      %v5164 = vadd.f32 0.0, %v5163
      %5165 = vmatmul.f32.gmra.mxu0 %v5054
      %v5166 = vpop.f32.mrf.mxu0
      %v5167 = vadd.f32 0.0, %v5166
      %5168 = vmatmul.f32.gmra.mxu0 %v5057
      %v5169 = vpop.f32.mrf.mxu0
      %v5170 = vadd.f32 0.0, %v5169
      %5171 = vmatmul.f32.gmra.mxu0 %v5060
      %v5172 = vpop.f32.mrf.mxu0
      %v5173 = vadd.f32 0.0, %v5172
      %5174 = vmatmul.f32.gmra.mxu0 %v5063
      %v5175 = vpop.f32.mrf.mxu0
      %v5176 = vadd.f32 0.0, %v5175
      %5177 = vmatmul.f32.gmra.mxu0 %v5066
      %v5178 = vpop.f32.mrf.mxu0
      %v5179 = vadd.f32 0.0, %v5178
      %5180 = vmatmul.f32.gmra.mxu0 %v5069
      %v5181 = vpop.f32.mrf.mxu0
      %v5182 = vadd.f32 0.0, %v5181
      %5183 = vmatmul.f32.gmra.mxu0 %v5072
      %v5184 = vpop.f32.mrf.mxu0
      %v5185 = vadd.f32 0.0, %v5184
      %5186 = vmatmul.f32.gmra.mxu0 %v5075
      %v5187 = vpop.f32.mrf.mxu0
      %v5188 = vadd.f32 0.0, %v5187
      %5189 = vmatmul.f32.gmra.mxu0 %v5078
      %v5190 = vpop.f32.mrf.mxu0
      %v5191 = vadd.f32 0.0, %v5190
      %5192 = vmatmul.f32.gmra.mxu0 %v5081
      %v5193 = vpop.f32.mrf.mxu0
      %v5194 = vadd.f32 0.0, %v5193
      %5195 = vmatmul.f32.gmra.mxu0 %v5084
      %v5196 = vpop.f32.mrf.mxu0
      %v5197 = vadd.f32 0.0, %v5196
      %5198 = vmatmul.f32.gmra.mxu0 %v5087
      %v5199 = vpop.f32.mrf.mxu0
      %v5200 = vadd.f32 0.0, %v5199
      %5201 = vmatmul.f32.gmra.mxu0 %v5090
      %v5202 = vpop.f32.mrf.mxu0
      %v5203 = vadd.f32 0.0, %v5202
      %5204 = vmatmul.f32.gmra.mxu0 %v5093
      %v5205 = vpop.f32.mrf.mxu0
      %v5206 = vadd.f32 0.0, %v5205
      %5207 = vmatmul.f32.gmra.mxu0 %v5096
      %v5208 = vpop.f32.mrf.mxu0
      %v5209 = vadd.f32 0.0, %v5208
      %5210 = vmatmul.f32.gmra.mxu0 %v5099
      %v5211 = vpop.f32.mrf.mxu0
      %v5212 = vadd.f32 0.0, %v5211
      %5213 = vmatmul.f32.gmra.mxu0 %v5102
      %v5214 = vpop.f32.mrf.mxu0
      %v5215 = vadd.f32 0.0, %v5214
      %5216 = vmatmul.f32.gmra.mxu0 %v5105
      %v5217 = vpop.f32.mrf.mxu0
      %v5218 = vadd.f32 0.0, %v5217
      %5219 = vmatmul.f32.gmra.mxu0 %v5108
      %v5220 = vpop.f32.mrf.mxu0
      %v5221 = vadd.f32 0.0, %v5220
      %5222 = vmatmul.f32.gmra.mxu0 %v5111
      %v5223 = vpop.f32.mrf.mxu0
      %v5224 = vadd.f32 0.0, %v5223
      %5225 = vmatmul.f32.gmra.mxu0 %v5114
      %v5226 = vpop.f32.mrf.mxu0
      %v5227 = vadd.f32 0.0, %v5226
      %5228 = vmatmul.f32.gmra.mxu0 %v5117
      %v5229 = vpop.f32.mrf.mxu0
      %v5230 = vadd.f32 0.0, %v5229
      %5231 = vmatmul.f32.gmra.mxu0 %v5120
      %v5232 = vpop.f32.mrf.mxu0
      %v5233 = vadd.f32 0.0, %v5232
      %5234 = vmatmul.f32.gmra.mxu0 %v5123
      %v5235 = vpop.f32.mrf.mxu0
      %v5236 = vadd.f32 0.0, %v5235
      %5237 = vmatmul.f32.gmra.mxu0 %v5126
      %v5238 = vpop.f32.mrf.mxu0
      %v5239 = vadd.f32 0.0, %v5238
      %5240 = vmatmul.f32.gmra.mxu0 %v5129
      %v5241 = vpop.f32.mrf.mxu0
      %v5242 = vadd.f32 0.0, %v5241
      %5243 = vmatmul.f32.gmra.mxu0 %v5132
      %v5244 = vpop.f32.mrf.mxu0
      %v5245 = vadd.f32 0.0, %v5244
      %5246 = vmatmul.f32.gmra.mxu0 %v5135
      %v5247 = vpop.f32.mrf.mxu0
      %v5248 = vadd.f32 0.0, %v5247
      %5249 = vmatmul.f32.gmra.mxu0 %v5138
      %v5250 = vpop.f32.mrf.mxu0
      %v5251 = vadd.f32 0.0, %v5250
      %5252 = vdwg.mxu0
      %v5253 = vadd.f32 %v4946, %v5158
      %v5254 = vadd.f32 %v4947, %v5161
      %v5255 = vadd.f32 %v4948, %v5164
      %v5256 = vadd.f32 %v4949, %v5167
      %v5257 = vadd.f32 %v4950, %v5170
      %v5258 = vadd.f32 %v4951, %v5173
      %v5259 = vadd.f32 %v4952, %v5176
      %v5260 = vadd.f32 %v4953, %v5179
      %v5261 = vadd.f32 %v4954, %v5182
      %v5262 = vadd.f32 %v4955, %v5185
      %v5263 = vadd.f32 %v4956, %v5188
      %v5264 = vadd.f32 %v4957, %v5191
      %v5265 = vadd.f32 %v4958, %v5194
      %v5266 = vadd.f32 %v4959, %v5197
      %v5267 = vadd.f32 %v4960, %v5200
      %v5268 = vadd.f32 %v4961, %v5203
      %v5269 = vadd.f32 %v4962, %v5206
      %v5270 = vadd.f32 %v4963, %v5209
      %v5271 = vadd.f32 %v4964, %v5212
      %v5272 = vadd.f32 %v4965, %v5215
      %v5273 = vadd.f32 %v4966, %v5218
      %v5274 = vadd.f32 %v4967, %v5221
      %v5275 = vadd.f32 %v4968, %v5224
      %v5276 = vadd.f32 %v4969, %v5227
      %v5277 = vadd.f32 %v4970, %v5230
      %v5278 = vadd.f32 %v4971, %v5233
      %v5279 = vadd.f32 %v4972, %v5236
      %v5280 = vadd.f32 %v4973, %v5239
      %v5281 = vadd.f32 %v4974, %v5242
      %v5282 = vadd.f32 %v4975, %v5245
      %v5283 = vadd.f32 %v4976, %v5248
      %v5284 = vadd.f32 %v4977, %v5251
      %v5285 = vld [vmem:[#allocation2 + $0x27] sm:$0xff]
      %v5286 = vld [vmem:[#allocation2 + $0x2f] sm:$0xff]
      %v5287 = vld [vmem:[#allocation2 + $0x37] sm:$0xff]
      %v5288 = vld [vmem:[#allocation2 + $0x3f] sm:$0xff]
      %v5289 = vld [vmem:[#allocation2 + $0x47] sm:$0xff]
      %v5290 = vld [vmem:[#allocation2 + $0x4f] sm:$0xff]
      %v5291 = vld [vmem:[#allocation2 + $0x57] sm:$0xff]
      %v5292 = vld [vmem:[#allocation2 + $0x5f] sm:$0xff]
      %v5293 = vld [vmem:[#allocation2 + $0x67] sm:$0xff]
      %v5294 = vld [vmem:[#allocation2 + $0x6f] sm:$0xff]
      %v5295 = vld [vmem:[#allocation2 + $0x77] sm:$0xff]
      %v5296 = vld [vmem:[#allocation2 + $0x7f] sm:$0xff]
      %v5297 = vld [vmem:[#allocation2 + $0x87] sm:$0xff]
      %v5298 = vld [vmem:[#allocation2 + $0x8f] sm:$0xff]
      %v5299 = vld [vmem:[#allocation2 + $0x97] sm:$0xff]
      %v5300 = vld [vmem:[#allocation2 + $0x9f] sm:$0xff]
      %v5301 = vld [vmem:[#allocation2 + $0xa7] sm:$0xff]
      %v5302 = vld [vmem:[#allocation2 + $0xaf] sm:$0xff]
      %v5303 = vld [vmem:[#allocation2 + $0xb7] sm:$0xff]
      %v5304 = vld [vmem:[#allocation2 + $0xbf] sm:$0xff]
      %v5305 = vld [vmem:[#allocation2 + $0xc7] sm:$0xff]
      %v5306 = vld [vmem:[#allocation2 + $0xcf] sm:$0xff]
      %v5307 = vld [vmem:[#allocation2 + $0xd7] sm:$0xff]
      %v5308 = vld [vmem:[#allocation2 + $0xdf] sm:$0xff]
      %v5309 = vld [vmem:[#allocation2 + $0xe7] sm:$0xff]
      %v5310 = vld [vmem:[#allocation2 + $0xef] sm:$0xff]
      %v5311 = vld [vmem:[#allocation2 + $0xf7] sm:$0xff]
      %v5312 = vld [vmem:[#allocation2 + $0xff] sm:$0xff]
      %v5313 = vld [vmem:[#allocation2 + $0x107] sm:$0xff]
      %v5314 = vld [vmem:[#allocation2 + $0x10f] sm:$0xff]
      %v5315 = vld [vmem:[#allocation2 + $0x117] sm:$0xff]
      %v5316 = vld [vmem:[#allocation2 + $0x11f] sm:$0xff]
      %v5317 = vsel %vm777, %v5285, 0.0
      %v5318 = vsel %vm778, %v5286, 0.0
      %v5319 = vsel %vm779, %v5287, 0.0
      %v5320 = vsel %vm780, %v5288, 0.0
      %v5321 = vsel %vm781, %v5289, 0.0
      %v5322 = vsel %vm782, %v5290, 0.0
      %v5323 = vsel %vm783, %v5291, 0.0
      %v5324 = vsel %vm784, %v5292, 0.0
      %v5325 = vsel %vm785, %v5293, 0.0
      %v5326 = vsel %vm786, %v5294, 0.0
      %v5327 = vsel %vm787, %v5295, 0.0
      %v5328 = vsel %vm788, %v5296, 0.0
      %v5329 = vsel %vm789, %v5297, 0.0
      %v5330 = vsel %vm790, %v5298, 0.0
      %v5331 = vsel %vm791, %v5299, 0.0
      %v5332 = vsel %vm792, %v5300, 0.0
      %v5333 = vsel %vm793, %v5301, 0.0
      %v5334 = vsel %vm794, %v5302, 0.0
      %v5335 = vsel %vm795, %v5303, 0.0
      %v5336 = vsel %vm796, %v5304, 0.0
      %v5337 = vsel %vm797, %v5305, 0.0
      %v5338 = vsel %vm798, %v5306, 0.0
      %v5339 = vsel %vm799, %v5307, 0.0
      %v5340 = vsel %vm800, %v5308, 0.0
      %v5341 = vsel %vm801, %v5309, 0.0
      %v5342 = vsel %vm802, %v5310, 0.0
      %v5343 = vsel %vm803, %v5311, 0.0
      %v5344 = vsel %vm804, %v5312, 0.0
      %v5345 = vsel %vm805, %v5313, 0.0
      %v5346 = vsel %vm806, %v5314, 0.0
      %v5347 = vsel %vm807, %v5315, 0.0
      %v5348 = vsel %vm808, %v5316, 0.0
      %s5349 = scalar_lea.vmem %s3, 48
      %v5350 = vld [vmem:[%s5349] sm:$0xff]
      %v5352 = vsel %vm706, %v5317, 0
      %v5355 = vsel %vm706, %v5318, 0
      %v5358 = vsel %vm706, %v5319, 0
      %v5361 = vsel %vm706, %v5320, 0
      %v5364 = vsel %vm706, %v5321, 0
      %v5367 = vsel %vm706, %v5322, 0
      %v5370 = vsel %vm706, %v5323, 0
      %v5373 = vsel %vm706, %v5324, 0
      %v5376 = vsel %vm706, %v5325, 0
      %v5379 = vsel %vm706, %v5326, 0
      %v5382 = vsel %vm706, %v5327, 0
      %v5385 = vsel %vm706, %v5328, 0
      %v5388 = vsel %vm706, %v5329, 0
      %v5391 = vsel %vm706, %v5330, 0
      %v5394 = vsel %vm706, %v5331, 0
      %v5397 = vsel %vm706, %v5332, 0
      %v5400 = vsel %vm706, %v5333, 0
      %v5403 = vsel %vm706, %v5334, 0
      %v5406 = vsel %vm706, %v5335, 0
      %v5409 = vsel %vm706, %v5336, 0
      %v5412 = vsel %vm706, %v5337, 0
      %v5415 = vsel %vm706, %v5338, 0
      %v5418 = vsel %vm706, %v5339, 0
      %v5421 = vsel %vm706, %v5340, 0
      %v5424 = vsel %vm706, %v5341, 0
      %v5427 = vsel %vm706, %v5342, 0
      %v5430 = vsel %vm706, %v5343, 0
      %v5433 = vsel %vm706, %v5344, 0
      %v5436 = vsel %vm706, %v5345, 0
      %v5439 = vsel %vm706, %v5346, 0
      %v5442 = vsel %vm706, %v5347, 0
      %v5445 = vsel %vm706, %v5348, 0
      %5447 = vmatpush.msra.mxu0 0.0
      %5448 = vmatpush.msra.mxu0 0.0
      %5449 = vmatpush.msra.mxu0 0.0
      %5450 = vmatpush.msra.mxu0 0.0
      %5451 = vmatpush.msra.mxu0 0.0
      %5452 = vmatpush.msra.mxu0 0.0
      %5453 = vmatpush.msra.mxu0 0.0
      %5454 = vmatpush.msra.mxu0 0.0
      %5455 = vmatpush.msra.mxu0 0.0
      %5456 = vmatpush.msra.mxu0 0.0
      %5457 = vmatpush.msra.mxu0 0.0
      %5458 = vmatpush.msra.mxu0 0.0
      %5459 = vmatpush.msra.mxu0 0.0
      %5460 = vmatpush.msra.mxu0 0.0
      %5461 = vmatpush.msra.mxu0 0.0
      %5462 = vmatpush.msra.mxu0 %v5350
      %5463 = vmatmul.f32.gmra.mxu0 %v5352
      %v5464 = vpop.f32.mrf.mxu0
      %v5465 = vadd.f32 0.0, %v5464
      %5466 = vmatmul.f32.gmra.mxu0 %v5355
      %v5467 = vpop.f32.mrf.mxu0
      %v5468 = vadd.f32 0.0, %v5467
      %5469 = vmatmul.f32.gmra.mxu0 %v5358
      %v5470 = vpop.f32.mrf.mxu0
      %v5471 = vadd.f32 0.0, %v5470
      %5472 = vmatmul.f32.gmra.mxu0 %v5361
      %v5473 = vpop.f32.mrf.mxu0
      %v5474 = vadd.f32 0.0, %v5473
      %5475 = vmatmul.f32.gmra.mxu0 %v5364
      %v5476 = vpop.f32.mrf.mxu0
      %v5477 = vadd.f32 0.0, %v5476
      %5478 = vmatmul.f32.gmra.mxu0 %v5367
      %v5479 = vpop.f32.mrf.mxu0
      %v5480 = vadd.f32 0.0, %v5479
      %5481 = vmatmul.f32.gmra.mxu0 %v5370
      %v5482 = vpop.f32.mrf.mxu0
      %v5483 = vadd.f32 0.0, %v5482
      %5484 = vmatmul.f32.gmra.mxu0 %v5373
      %v5485 = vpop.f32.mrf.mxu0
      %v5486 = vadd.f32 0.0, %v5485
      %5487 = vmatmul.f32.gmra.mxu0 %v5376
      %v5488 = vpop.f32.mrf.mxu0
      %v5489 = vadd.f32 0.0, %v5488
      %5490 = vmatmul.f32.gmra.mxu0 %v5379
      %v5491 = vpop.f32.mrf.mxu0
      %v5492 = vadd.f32 0.0, %v5491
      %5493 = vmatmul.f32.gmra.mxu0 %v5382
      %v5494 = vpop.f32.mrf.mxu0
      %v5495 = vadd.f32 0.0, %v5494
      %5496 = vmatmul.f32.gmra.mxu0 %v5385
      %v5497 = vpop.f32.mrf.mxu0
      %v5498 = vadd.f32 0.0, %v5497
      %5499 = vmatmul.f32.gmra.mxu0 %v5388
      %v5500 = vpop.f32.mrf.mxu0
      %v5501 = vadd.f32 0.0, %v5500
      %5502 = vmatmul.f32.gmra.mxu0 %v5391
      %v5503 = vpop.f32.mrf.mxu0
      %v5504 = vadd.f32 0.0, %v5503
      %5505 = vmatmul.f32.gmra.mxu0 %v5394
      %v5506 = vpop.f32.mrf.mxu0
      %v5507 = vadd.f32 0.0, %v5506
      %5508 = vmatmul.f32.gmra.mxu0 %v5397
      %v5509 = vpop.f32.mrf.mxu0
      %v5510 = vadd.f32 0.0, %v5509
      %5511 = vmatmul.f32.gmra.mxu0 %v5400
      %v5512 = vpop.f32.mrf.mxu0
      %v5513 = vadd.f32 0.0, %v5512
      %5514 = vmatmul.f32.gmra.mxu0 %v5403
      %v5515 = vpop.f32.mrf.mxu0
      %v5516 = vadd.f32 0.0, %v5515
      %5517 = vmatmul.f32.gmra.mxu0 %v5406
      %v5518 = vpop.f32.mrf.mxu0
      %v5519 = vadd.f32 0.0, %v5518
      %5520 = vmatmul.f32.gmra.mxu0 %v5409
      %v5521 = vpop.f32.mrf.mxu0
      %v5522 = vadd.f32 0.0, %v5521
      %5523 = vmatmul.f32.gmra.mxu0 %v5412
      %v5524 = vpop.f32.mrf.mxu0
      %v5525 = vadd.f32 0.0, %v5524
      %5526 = vmatmul.f32.gmra.mxu0 %v5415
      %v5527 = vpop.f32.mrf.mxu0
      %v5528 = vadd.f32 0.0, %v5527
      %5529 = vmatmul.f32.gmra.mxu0 %v5418
      %v5530 = vpop.f32.mrf.mxu0
      %v5531 = vadd.f32 0.0, %v5530
      %5532 = vmatmul.f32.gmra.mxu0 %v5421
      %v5533 = vpop.f32.mrf.mxu0
      %v5534 = vadd.f32 0.0, %v5533
      %5535 = vmatmul.f32.gmra.mxu0 %v5424
      %v5536 = vpop.f32.mrf.mxu0
      %v5537 = vadd.f32 0.0, %v5536
      %5538 = vmatmul.f32.gmra.mxu0 %v5427
      %v5539 = vpop.f32.mrf.mxu0
      %v5540 = vadd.f32 0.0, %v5539
      %5541 = vmatmul.f32.gmra.mxu0 %v5430
      %v5542 = vpop.f32.mrf.mxu0
      %v5543 = vadd.f32 0.0, %v5542
      %5544 = vmatmul.f32.gmra.mxu0 %v5433
      %v5545 = vpop.f32.mrf.mxu0
      %v5546 = vadd.f32 0.0, %v5545
      %5547 = vmatmul.f32.gmra.mxu0 %v5436
      %v5548 = vpop.f32.mrf.mxu0
      %v5549 = vadd.f32 0.0, %v5548
      %5550 = vmatmul.f32.gmra.mxu0 %v5439
      %v5551 = vpop.f32.mrf.mxu0
      %v5552 = vadd.f32 0.0, %v5551
      %5553 = vmatmul.f32.gmra.mxu0 %v5442
      %v5554 = vpop.f32.mrf.mxu0
      %v5555 = vadd.f32 0.0, %v5554
      %5556 = vmatmul.f32.gmra.mxu0 %v5445
      %v5557 = vpop.f32.mrf.mxu0
      %v5558 = vadd.f32 0.0, %v5557
      %5559 = vdwg.mxu0
      %v5560 = vadd.f32 %v5253, %v5465
      %v5561 = vadd.f32 %v5254, %v5468
      %v5562 = vadd.f32 %v5255, %v5471
      %v5563 = vadd.f32 %v5256, %v5474
      %v5564 = vadd.f32 %v5257, %v5477
      %v5565 = vadd.f32 %v5258, %v5480
      %v5566 = vadd.f32 %v5259, %v5483
      %v5567 = vadd.f32 %v5260, %v5486
      %v5568 = vadd.f32 %v5261, %v5489
      %v5569 = vadd.f32 %v5262, %v5492
      %v5570 = vadd.f32 %v5263, %v5495
      %v5571 = vadd.f32 %v5264, %v5498
      %v5572 = vadd.f32 %v5265, %v5501
      %v5573 = vadd.f32 %v5266, %v5504
      %v5574 = vadd.f32 %v5267, %v5507
      %v5575 = vadd.f32 %v5268, %v5510
      %v5576 = vadd.f32 %v5269, %v5513
      %v5577 = vadd.f32 %v5270, %v5516
      %v5578 = vadd.f32 %v5271, %v5519
      %v5579 = vadd.f32 %v5272, %v5522
      %v5580 = vadd.f32 %v5273, %v5525
      %v5581 = vadd.f32 %v5274, %v5528
      %v5582 = vadd.f32 %v5275, %v5531
      %v5583 = vadd.f32 %v5276, %v5534
      %v5584 = vadd.f32 %v5277, %v5537
      %v5585 = vadd.f32 %v5278, %v5540
      %v5586 = vadd.f32 %v5279, %v5543
      %v5587 = vadd.f32 %v5280, %v5546
      %v5588 = vadd.f32 %v5281, %v5549
      %v5589 = vadd.f32 %v5282, %v5552
      %v5590 = vadd.f32 %v5283, %v5555
      %v5591 = vadd.f32 %v5284, %v5558
      %v5592 = vld [vmem:[#allocation2 + $0x28] sm:$0xff]
      %v5593 = vld [vmem:[#allocation2 + $0x30] sm:$0xff]
      %v5594 = vld [vmem:[#allocation2 + $0x38] sm:$0xff]
      %v5595 = vld [vmem:[#allocation2 + $0x40] sm:$0xff]
      %v5596 = vld [vmem:[#allocation2 + $0x48] sm:$0xff]
      %v5597 = vld [vmem:[#allocation2 + $0x50] sm:$0xff]
      %v5598 = vld [vmem:[#allocation2 + $0x58] sm:$0xff]
      %v5599 = vld [vmem:[#allocation2 + $0x60] sm:$0xff]
      %v5600 = vld [vmem:[#allocation2 + $0x68] sm:$0xff]
      %v5601 = vld [vmem:[#allocation2 + $0x70] sm:$0xff]
      %v5602 = vld [vmem:[#allocation2 + $0x78] sm:$0xff]
      %v5603 = vld [vmem:[#allocation2 + $0x80] sm:$0xff]
      %v5604 = vld [vmem:[#allocation2 + $0x88] sm:$0xff]
      %v5605 = vld [vmem:[#allocation2 + $0x90] sm:$0xff]
      %v5606 = vld [vmem:[#allocation2 + $0x98] sm:$0xff]
      %v5607 = vld [vmem:[#allocation2 + $0xa0] sm:$0xff]
      %v5608 = vld [vmem:[#allocation2 + $0xa8] sm:$0xff]
      %v5609 = vld [vmem:[#allocation2 + $0xb0] sm:$0xff]
      %v5610 = vld [vmem:[#allocation2 + $0xb8] sm:$0xff]
      %v5611 = vld [vmem:[#allocation2 + $0xc0] sm:$0xff]
      %v5612 = vld [vmem:[#allocation2 + $0xc8] sm:$0xff]
      %v5613 = vld [vmem:[#allocation2 + $0xd0] sm:$0xff]
      %v5614 = vld [vmem:[#allocation2 + $0xd8] sm:$0xff]
      %v5615 = vld [vmem:[#allocation2 + $0xe0] sm:$0xff]
      %v5616 = vld [vmem:[#allocation2 + $0xe8] sm:$0xff]
      %v5617 = vld [vmem:[#allocation2 + $0xf0] sm:$0xff]
      %v5618 = vld [vmem:[#allocation2 + $0xf8] sm:$0xff]
      %v5619 = vld [vmem:[#allocation2 + $0x100] sm:$0xff]
      %v5620 = vld [vmem:[#allocation2 + $0x108] sm:$0xff]
      %v5621 = vld [vmem:[#allocation2 + $0x110] sm:$0xff]
      %v5622 = vld [vmem:[#allocation2 + $0x118] sm:$0xff]
      %v5623 = vld [vmem:[#allocation2 + $0x120] sm:$0xff]
      %s5624 = scalar_lea.vmem %s3, 56
      %v5625 = vld [vmem:[%s5624] sm:$0xff]
      %v5627 = vsel %vm706, %v5592, 0
      %v5630 = vsel %vm706, %v5593, 0
      %v5633 = vsel %vm706, %v5594, 0
      %v5636 = vsel %vm706, %v5595, 0
      %v5639 = vsel %vm706, %v5596, 0
      %v5642 = vsel %vm706, %v5597, 0
      %v5645 = vsel %vm706, %v5598, 0
      %v5648 = vsel %vm706, %v5599, 0
      %v5651 = vsel %vm706, %v5600, 0
      %v5654 = vsel %vm706, %v5601, 0
      %v5657 = vsel %vm706, %v5602, 0
      %v5660 = vsel %vm706, %v5603, 0
      %v5663 = vsel %vm706, %v5604, 0
      %v5666 = vsel %vm706, %v5605, 0
      %v5669 = vsel %vm706, %v5606, 0
      %v5672 = vsel %vm706, %v5607, 0
      %v5675 = vsel %vm706, %v5608, 0
      %v5678 = vsel %vm706, %v5609, 0
      %v5681 = vsel %vm706, %v5610, 0
      %v5684 = vsel %vm706, %v5611, 0
      %v5687 = vsel %vm706, %v5612, 0
      %v5690 = vsel %vm706, %v5613, 0
      %v5693 = vsel %vm706, %v5614, 0
      %v5696 = vsel %vm706, %v5615, 0
      %v5699 = vsel %vm706, %v5616, 0
      %v5702 = vsel %vm706, %v5617, 0
      %v5705 = vsel %vm706, %v5618, 0
      %v5708 = vsel %vm706, %v5619, 0
      %v5711 = vsel %vm706, %v5620, 0
      %v5714 = vsel %vm706, %v5621, 0
      %v5717 = vsel %vm706, %v5622, 0
      %v5720 = vsel %vm706, %v5623, 0
      %5722 = vmatpush.msra.mxu0 0.0
      %5723 = vmatpush.msra.mxu0 0.0
      %5724 = vmatpush.msra.mxu0 0.0
      %5725 = vmatpush.msra.mxu0 0.0
      %5726 = vmatpush.msra.mxu0 0.0
      %5727 = vmatpush.msra.mxu0 0.0
      %5728 = vmatpush.msra.mxu0 0.0
      %5729 = vmatpush.msra.mxu0 0.0
      %5730 = vmatpush.msra.mxu0 0.0
      %5731 = vmatpush.msra.mxu0 0.0
      %5732 = vmatpush.msra.mxu0 0.0
      %5733 = vmatpush.msra.mxu0 0.0
      %5734 = vmatpush.msra.mxu0 0.0
      %5735 = vmatpush.msra.mxu0 0.0
      %5736 = vmatpush.msra.mxu0 0.0
      %5737 = vmatpush.msra.mxu0 %v5625
      %5738 = vmatmul.f32.gmra.mxu0 %v5627
      %v5739 = vpop.f32.mrf.mxu0
      %v5740 = vadd.f32 0.0, %v5739
      %5741 = vmatmul.f32.gmra.mxu0 %v5630
      %v5742 = vpop.f32.mrf.mxu0
      %v5743 = vadd.f32 0.0, %v5742
      %5744 = vmatmul.f32.gmra.mxu0 %v5633
      %v5745 = vpop.f32.mrf.mxu0
      %v5746 = vadd.f32 0.0, %v5745
      %5747 = vmatmul.f32.gmra.mxu0 %v5636
      %v5748 = vpop.f32.mrf.mxu0
      %v5749 = vadd.f32 0.0, %v5748
      %5750 = vmatmul.f32.gmra.mxu0 %v5639
      %v5751 = vpop.f32.mrf.mxu0
      %v5752 = vadd.f32 0.0, %v5751
      %5753 = vmatmul.f32.gmra.mxu0 %v5642
      %v5754 = vpop.f32.mrf.mxu0
      %v5755 = vadd.f32 0.0, %v5754
      %5756 = vmatmul.f32.gmra.mxu0 %v5645
      %v5757 = vpop.f32.mrf.mxu0
      %v5758 = vadd.f32 0.0, %v5757
      %5759 = vmatmul.f32.gmra.mxu0 %v5648
      %v5760 = vpop.f32.mrf.mxu0
      %v5761 = vadd.f32 0.0, %v5760
      %5762 = vmatmul.f32.gmra.mxu0 %v5651
      %v5763 = vpop.f32.mrf.mxu0
      %v5764 = vadd.f32 0.0, %v5763
      %5765 = vmatmul.f32.gmra.mxu0 %v5654
      %v5766 = vpop.f32.mrf.mxu0
      %v5767 = vadd.f32 0.0, %v5766
      %5768 = vmatmul.f32.gmra.mxu0 %v5657
      %v5769 = vpop.f32.mrf.mxu0
      %v5770 = vadd.f32 0.0, %v5769
      %5771 = vmatmul.f32.gmra.mxu0 %v5660
      %v5772 = vpop.f32.mrf.mxu0
      %v5773 = vadd.f32 0.0, %v5772
      %5774 = vmatmul.f32.gmra.mxu0 %v5663
      %v5775 = vpop.f32.mrf.mxu0
      %v5776 = vadd.f32 0.0, %v5775
      %5777 = vmatmul.f32.gmra.mxu0 %v5666
      %v5778 = vpop.f32.mrf.mxu0
      %v5779 = vadd.f32 0.0, %v5778
      %5780 = vmatmul.f32.gmra.mxu0 %v5669
      %v5781 = vpop.f32.mrf.mxu0
      %v5782 = vadd.f32 0.0, %v5781
      %5783 = vmatmul.f32.gmra.mxu0 %v5672
      %v5784 = vpop.f32.mrf.mxu0
      %v5785 = vadd.f32 0.0, %v5784
      %5786 = vmatmul.f32.gmra.mxu0 %v5675
      %v5787 = vpop.f32.mrf.mxu0
      %v5788 = vadd.f32 0.0, %v5787
      %5789 = vmatmul.f32.gmra.mxu0 %v5678
      %v5790 = vpop.f32.mrf.mxu0
      %v5791 = vadd.f32 0.0, %v5790
      %5792 = vmatmul.f32.gmra.mxu0 %v5681
      %v5793 = vpop.f32.mrf.mxu0
      %v5794 = vadd.f32 0.0, %v5793
      %5795 = vmatmul.f32.gmra.mxu0 %v5684
      %v5796 = vpop.f32.mrf.mxu0
      %v5797 = vadd.f32 0.0, %v5796
      %5798 = vmatmul.f32.gmra.mxu0 %v5687
      %v5799 = vpop.f32.mrf.mxu0
      %v5800 = vadd.f32 0.0, %v5799
      %5801 = vmatmul.f32.gmra.mxu0 %v5690
      %v5802 = vpop.f32.mrf.mxu0
      %v5803 = vadd.f32 0.0, %v5802
      %5804 = vmatmul.f32.gmra.mxu0 %v5693
      %v5805 = vpop.f32.mrf.mxu0
      %v5806 = vadd.f32 0.0, %v5805
      %5807 = vmatmul.f32.gmra.mxu0 %v5696
      %v5808 = vpop.f32.mrf.mxu0
      %v5809 = vadd.f32 0.0, %v5808
      %5810 = vmatmul.f32.gmra.mxu0 %v5699
      %v5811 = vpop.f32.mrf.mxu0
      %v5812 = vadd.f32 0.0, %v5811
      %5813 = vmatmul.f32.gmra.mxu0 %v5702
      %v5814 = vpop.f32.mrf.mxu0
      %v5815 = vadd.f32 0.0, %v5814
      %5816 = vmatmul.f32.gmra.mxu0 %v5705
      %v5817 = vpop.f32.mrf.mxu0
      %v5818 = vadd.f32 0.0, %v5817
      %5819 = vmatmul.f32.gmra.mxu0 %v5708
      %v5820 = vpop.f32.mrf.mxu0
      %v5821 = vadd.f32 0.0, %v5820
      %5822 = vmatmul.f32.gmra.mxu0 %v5711
      %v5823 = vpop.f32.mrf.mxu0
      %v5824 = vadd.f32 0.0, %v5823
      %5825 = vmatmul.f32.gmra.mxu0 %v5714
      %v5826 = vpop.f32.mrf.mxu0
      %v5827 = vadd.f32 0.0, %v5826
      %5828 = vmatmul.f32.gmra.mxu0 %v5717
      %v5829 = vpop.f32.mrf.mxu0
      %v5830 = vadd.f32 0.0, %v5829
      %5831 = vmatmul.f32.gmra.mxu0 %v5720
      %v5832 = vpop.f32.mrf.mxu0
      %v5833 = vadd.f32 0.0, %v5832
      %5834 = vdwg.mxu0
      %v5835 = vadd.f32 %v5560, %v5740
      %v5836 = vadd.f32 %v5561, %v5743
      %v5837 = vadd.f32 %v5562, %v5746
      %v5838 = vadd.f32 %v5563, %v5749
      %v5839 = vadd.f32 %v5564, %v5752
      %v5840 = vadd.f32 %v5565, %v5755
      %v5841 = vadd.f32 %v5566, %v5758
      %v5842 = vadd.f32 %v5567, %v5761
      %v5843 = vadd.f32 %v5568, %v5764
      %v5844 = vadd.f32 %v5569, %v5767
      %v5845 = vadd.f32 %v5570, %v5770
      %v5846 = vadd.f32 %v5571, %v5773
      %v5847 = vadd.f32 %v5572, %v5776
      %v5848 = vadd.f32 %v5573, %v5779
      %v5849 = vadd.f32 %v5574, %v5782
      %v5850 = vadd.f32 %v5575, %v5785
      %v5851 = vadd.f32 %v5576, %v5788
      %v5852 = vadd.f32 %v5577, %v5791
      %v5853 = vadd.f32 %v5578, %v5794
      %v5854 = vadd.f32 %v5579, %v5797
      %v5855 = vadd.f32 %v5580, %v5800
      %v5856 = vadd.f32 %v5581, %v5803
      %v5857 = vadd.f32 %v5582, %v5806
      %v5858 = vadd.f32 %v5583, %v5809
      %v5859 = vadd.f32 %v5584, %v5812
      %v5860 = vadd.f32 %v5585, %v5815
      %v5861 = vadd.f32 %v5586, %v5818
      %v5862 = vadd.f32 %v5587, %v5821
      %v5863 = vadd.f32 %v5588, %v5824
      %v5864 = vadd.f32 %v5589, %v5827
      %v5865 = vadd.f32 %v5590, %v5830
      %v5866 = vadd.f32 %v5591, %v5833
      %v5867 = vld [vmem:[#allocation2 + $0x29] sm:$0xff]
      %v5868 = vld [vmem:[#allocation2 + $0x31] sm:$0xff]
      %v5869 = vld [vmem:[#allocation2 + $0x39] sm:$0xff]
      %v5870 = vld [vmem:[#allocation2 + $0x41] sm:$0xff]
      %v5871 = vld [vmem:[#allocation2 + $0x49] sm:$0xff]
      %v5872 = vld [vmem:[#allocation2 + $0x51] sm:$0xff]
      %v5873 = vld [vmem:[#allocation2 + $0x59] sm:$0xff]
      %v5874 = vld [vmem:[#allocation2 + $0x61] sm:$0xff]
      %v5875 = vld [vmem:[#allocation2 + $0x69] sm:$0xff]
      %v5876 = vld [vmem:[#allocation2 + $0x71] sm:$0xff]
      %v5877 = vld [vmem:[#allocation2 + $0x79] sm:$0xff]
      %v5878 = vld [vmem:[#allocation2 + $0x81] sm:$0xff]
      %v5879 = vld [vmem:[#allocation2 + $0x89] sm:$0xff]
      %v5880 = vld [vmem:[#allocation2 + $0x91] sm:$0xff]
      %v5881 = vld [vmem:[#allocation2 + $0x99] sm:$0xff]
      %v5882 = vld [vmem:[#allocation2 + $0xa1] sm:$0xff]
      %v5883 = vld [vmem:[#allocation2 + $0xa9] sm:$0xff]
      %v5884 = vld [vmem:[#allocation2 + $0xb1] sm:$0xff]
      %v5885 = vld [vmem:[#allocation2 + $0xb9] sm:$0xff]
      %v5886 = vld [vmem:[#allocation2 + $0xc1] sm:$0xff]
      %v5887 = vld [vmem:[#allocation2 + $0xc9] sm:$0xff]
      %v5888 = vld [vmem:[#allocation2 + $0xd1] sm:$0xff]
      %v5889 = vld [vmem:[#allocation2 + $0xd9] sm:$0xff]
      %v5890 = vld [vmem:[#allocation2 + $0xe1] sm:$0xff]
      %v5891 = vld [vmem:[#allocation2 + $0xe9] sm:$0xff]
      %v5892 = vld [vmem:[#allocation2 + $0xf1] sm:$0xff]
      %v5893 = vld [vmem:[#allocation2 + $0xf9] sm:$0xff]
      %v5894 = vld [vmem:[#allocation2 + $0x101] sm:$0xff]
      %v5895 = vld [vmem:[#allocation2 + $0x109] sm:$0xff]
      %v5896 = vld [vmem:[#allocation2 + $0x111] sm:$0xff]
      %v5897 = vld [vmem:[#allocation2 + $0x119] sm:$0xff]
      %v5898 = vld [vmem:[#allocation2 + $0x121] sm:$0xff]
      %v5899 = vsel %vm1366, %v5867, 0.0
      %v5900 = vsel %vm1367, %v5868, 0.0
      %v5901 = vsel %vm1368, %v5869, 0.0
      %v5902 = vsel %vm1369, %v5870, 0.0
      %v5903 = vsel %vm1370, %v5871, 0.0
      %v5904 = vsel %vm1371, %v5872, 0.0
      %v5905 = vsel %vm1372, %v5873, 0.0
      %v5906 = vsel %vm1373, %v5874, 0.0
      %v5907 = vsel %vm1374, %v5875, 0.0
      %v5908 = vsel %vm1375, %v5876, 0.0
      %v5909 = vsel %vm1376, %v5877, 0.0
      %v5910 = vsel %vm1377, %v5878, 0.0
      %v5911 = vsel %vm1378, %v5879, 0.0
      %v5912 = vsel %vm1379, %v5880, 0.0
      %v5913 = vsel %vm1380, %v5881, 0.0
      %v5914 = vsel %vm1381, %v5882, 0.0
      %v5915 = vsel %vm1382, %v5883, 0.0
      %v5916 = vsel %vm1383, %v5884, 0.0
      %v5917 = vsel %vm1384, %v5885, 0.0
      %v5918 = vsel %vm1385, %v5886, 0.0
      %v5919 = vsel %vm1386, %v5887, 0.0
      %v5920 = vsel %vm1387, %v5888, 0.0
      %v5921 = vsel %vm1388, %v5889, 0.0
      %v5922 = vsel %vm1389, %v5890, 0.0
      %v5923 = vsel %vm1390, %v5891, 0.0
      %v5924 = vsel %vm1391, %v5892, 0.0
      %v5925 = vsel %vm1392, %v5893, 0.0
      %v5926 = vsel %vm1393, %v5894, 0.0
      %v5927 = vsel %vm1394, %v5895, 0.0
      %v5928 = vsel %vm1395, %v5896, 0.0
      %v5929 = vsel %vm1396, %v5897, 0.0
      %v5930 = vsel %vm1397, %v5898, 0.0
      %s5931 = scalar_lea.vmem %s3, 64
      %v5932 = vld [vmem:[%s5931] sm:$0xff]
      %v5934 = vsel %vm706, %v5899, 0
      %v5937 = vsel %vm706, %v5900, 0
      %v5940 = vsel %vm706, %v5901, 0
      %v5943 = vsel %vm706, %v5902, 0
      %v5946 = vsel %vm706, %v5903, 0
      %v5949 = vsel %vm706, %v5904, 0
      %v5952 = vsel %vm706, %v5905, 0
      %v5955 = vsel %vm706, %v5906, 0
      %v5958 = vsel %vm706, %v5907, 0
      %v5961 = vsel %vm706, %v5908, 0
      %v5964 = vsel %vm706, %v5909, 0
      %v5967 = vsel %vm706, %v5910, 0
      %v5970 = vsel %vm706, %v5911, 0
      %v5973 = vsel %vm706, %v5912, 0
      %v5976 = vsel %vm706, %v5913, 0
      %v5979 = vsel %vm706, %v5914, 0
      %v5982 = vsel %vm706, %v5915, 0
      %v5985 = vsel %vm706, %v5916, 0
      %v5988 = vsel %vm706, %v5917, 0
      %v5991 = vsel %vm706, %v5918, 0
      %v5994 = vsel %vm706, %v5919, 0
      %v5997 = vsel %vm706, %v5920, 0
      %v6000 = vsel %vm706, %v5921, 0
      %v6003 = vsel %vm706, %v5922, 0
      %v6006 = vsel %vm706, %v5923, 0
      %v6009 = vsel %vm706, %v5924, 0
      %v6012 = vsel %vm706, %v5925, 0
      %v6015 = vsel %vm706, %v5926, 0
      %v6018 = vsel %vm706, %v5927, 0
      %v6021 = vsel %vm706, %v5928, 0
      %v6024 = vsel %vm706, %v5929, 0
      %v6027 = vsel %vm706, %v5930, 0
      %6029 = vmatpush.msra.mxu0 0.0
      %6030 = vmatpush.msra.mxu0 0.0
      %6031 = vmatpush.msra.mxu0 0.0
      %6032 = vmatpush.msra.mxu0 0.0
      %6033 = vmatpush.msra.mxu0 0.0
      %6034 = vmatpush.msra.mxu0 0.0
      %6035 = vmatpush.msra.mxu0 0.0
      %6036 = vmatpush.msra.mxu0 0.0
      %6037 = vmatpush.msra.mxu0 0.0
      %6038 = vmatpush.msra.mxu0 0.0
      %6039 = vmatpush.msra.mxu0 0.0
      %6040 = vmatpush.msra.mxu0 0.0
      %6041 = vmatpush.msra.mxu0 0.0
      %6042 = vmatpush.msra.mxu0 0.0
      %6043 = vmatpush.msra.mxu0 0.0
      %6044 = vmatpush.msra.mxu0 %v5932
      %6045 = vmatmul.f32.gmra.mxu0 %v5934
      %v6046 = vpop.f32.mrf.mxu0
      %v6047 = vadd.f32 0.0, %v6046
      %6048 = vmatmul.f32.gmra.mxu0 %v5937
      %v6049 = vpop.f32.mrf.mxu0
      %v6050 = vadd.f32 0.0, %v6049
      %6051 = vmatmul.f32.gmra.mxu0 %v5940
      %v6052 = vpop.f32.mrf.mxu0
      %v6053 = vadd.f32 0.0, %v6052
      %6054 = vmatmul.f32.gmra.mxu0 %v5943
      %v6055 = vpop.f32.mrf.mxu0
      %v6056 = vadd.f32 0.0, %v6055
      %6057 = vmatmul.f32.gmra.mxu0 %v5946
      %v6058 = vpop.f32.mrf.mxu0
      %v6059 = vadd.f32 0.0, %v6058
      %6060 = vmatmul.f32.gmra.mxu0 %v5949
      %v6061 = vpop.f32.mrf.mxu0
      %v6062 = vadd.f32 0.0, %v6061
      %6063 = vmatmul.f32.gmra.mxu0 %v5952
      %v6064 = vpop.f32.mrf.mxu0
      %v6065 = vadd.f32 0.0, %v6064
      %6066 = vmatmul.f32.gmra.mxu0 %v5955
      %v6067 = vpop.f32.mrf.mxu0
      %v6068 = vadd.f32 0.0, %v6067
      %6069 = vmatmul.f32.gmra.mxu0 %v5958
      %v6070 = vpop.f32.mrf.mxu0
      %v6071 = vadd.f32 0.0, %v6070
      %6072 = vmatmul.f32.gmra.mxu0 %v5961
      %v6073 = vpop.f32.mrf.mxu0
      %v6074 = vadd.f32 0.0, %v6073
      %6075 = vmatmul.f32.gmra.mxu0 %v5964
      %v6076 = vpop.f32.mrf.mxu0
      %v6077 = vadd.f32 0.0, %v6076
      %6078 = vmatmul.f32.gmra.mxu0 %v5967
      %v6079 = vpop.f32.mrf.mxu0
      %v6080 = vadd.f32 0.0, %v6079
      %6081 = vmatmul.f32.gmra.mxu0 %v5970
      %v6082 = vpop.f32.mrf.mxu0
      %v6083 = vadd.f32 0.0, %v6082
      %6084 = vmatmul.f32.gmra.mxu0 %v5973
      %v6085 = vpop.f32.mrf.mxu0
      %v6086 = vadd.f32 0.0, %v6085
      %6087 = vmatmul.f32.gmra.mxu0 %v5976
      %v6088 = vpop.f32.mrf.mxu0
      %v6089 = vadd.f32 0.0, %v6088
      %6090 = vmatmul.f32.gmra.mxu0 %v5979
      %v6091 = vpop.f32.mrf.mxu0
      %v6092 = vadd.f32 0.0, %v6091
      %6093 = vmatmul.f32.gmra.mxu0 %v5982
      %v6094 = vpop.f32.mrf.mxu0
      %v6095 = vadd.f32 0.0, %v6094
      %6096 = vmatmul.f32.gmra.mxu0 %v5985
      %v6097 = vpop.f32.mrf.mxu0
      %v6098 = vadd.f32 0.0, %v6097
      %6099 = vmatmul.f32.gmra.mxu0 %v5988
      %v6100 = vpop.f32.mrf.mxu0
      %v6101 = vadd.f32 0.0, %v6100
      %6102 = vmatmul.f32.gmra.mxu0 %v5991
      %v6103 = vpop.f32.mrf.mxu0
      %v6104 = vadd.f32 0.0, %v6103
      %6105 = vmatmul.f32.gmra.mxu0 %v5994
      %v6106 = vpop.f32.mrf.mxu0
      %v6107 = vadd.f32 0.0, %v6106
      %6108 = vmatmul.f32.gmra.mxu0 %v5997
      %v6109 = vpop.f32.mrf.mxu0
      %v6110 = vadd.f32 0.0, %v6109
      %6111 = vmatmul.f32.gmra.mxu0 %v6000
      %v6112 = vpop.f32.mrf.mxu0
      %v6113 = vadd.f32 0.0, %v6112
      %6114 = vmatmul.f32.gmra.mxu0 %v6003
      %v6115 = vpop.f32.mrf.mxu0
      %v6116 = vadd.f32 0.0, %v6115
      %6117 = vmatmul.f32.gmra.mxu0 %v6006
      %v6118 = vpop.f32.mrf.mxu0
      %v6119 = vadd.f32 0.0, %v6118
      %6120 = vmatmul.f32.gmra.mxu0 %v6009
      %v6121 = vpop.f32.mrf.mxu0
      %v6122 = vadd.f32 0.0, %v6121
      %6123 = vmatmul.f32.gmra.mxu0 %v6012
      %v6124 = vpop.f32.mrf.mxu0
      %v6125 = vadd.f32 0.0, %v6124
      %6126 = vmatmul.f32.gmra.mxu0 %v6015
      %v6127 = vpop.f32.mrf.mxu0
      %v6128 = vadd.f32 0.0, %v6127
      %6129 = vmatmul.f32.gmra.mxu0 %v6018
      %v6130 = vpop.f32.mrf.mxu0
      %v6131 = vadd.f32 0.0, %v6130
      %6132 = vmatmul.f32.gmra.mxu0 %v6021
      %v6133 = vpop.f32.mrf.mxu0
      %v6134 = vadd.f32 0.0, %v6133
      %6135 = vmatmul.f32.gmra.mxu0 %v6024
      %v6136 = vpop.f32.mrf.mxu0
      %v6137 = vadd.f32 0.0, %v6136
      %6138 = vmatmul.f32.gmra.mxu0 %v6027
      %v6139 = vpop.f32.mrf.mxu0
      %v6140 = vadd.f32 0.0, %v6139
      %6141 = vdwg.mxu0
      %v6142 = vadd.f32 %v5835, %v6047
      %v6143 = vadd.f32 %v5836, %v6050
      %v6144 = vadd.f32 %v5837, %v6053
      %v6145 = vadd.f32 %v5838, %v6056
      %v6146 = vadd.f32 %v5839, %v6059
      %v6147 = vadd.f32 %v5840, %v6062
      %v6148 = vadd.f32 %v5841, %v6065
      %v6149 = vadd.f32 %v5842, %v6068
      %v6150 = vadd.f32 %v5843, %v6071
      %v6151 = vadd.f32 %v5844, %v6074
      %v6152 = vadd.f32 %v5845, %v6077
      %v6153 = vadd.f32 %v5846, %v6080
      %v6154 = vadd.f32 %v5847, %v6083
      %v6155 = vadd.f32 %v5848, %v6086
      %v6156 = vadd.f32 %v5849, %v6089
      %v6157 = vadd.f32 %v5850, %v6092
      %v6158 = vadd.f32 %v5851, %v6095
      %v6159 = vadd.f32 %v5852, %v6098
      %v6160 = vadd.f32 %v5853, %v6101
      %v6161 = vadd.f32 %v5854, %v6104
      %v6162 = vadd.f32 %v5855, %v6107
      %v6163 = vadd.f32 %v5856, %v6110
      %v6164 = vadd.f32 %v5857, %v6113
      %v6165 = vadd.f32 %v5858, %v6116
      %v6166 = vadd.f32 %v5859, %v6119
      %v6167 = vadd.f32 %v5860, %v6122
      %v6168 = vadd.f32 %v5861, %v6125
      %v6169 = vadd.f32 %v5862, %v6128
      %v6170 = vadd.f32 %v5863, %v6131
      %v6171 = vadd.f32 %v5864, %v6134
      %v6172 = vadd.f32 %v5865, %v6137
      %v6173 = vadd.f32 %v5866, %v6140
      %v6174 = vld [vmem:[%s4] sm:$0x1]
      %v6176 = vperm.slane %v6174, 0
      %v6178 = vadd.f32 %v6142, %v6176
      %v6179 = vadd.f32 %v6143, %v6176
      %v6180 = vadd.f32 %v6144, %v6176
      %v6181 = vadd.f32 %v6145, %v6176
      %v6182 = vadd.f32 %v6146, %v6176
      %v6183 = vadd.f32 %v6147, %v6176
      %v6184 = vadd.f32 %v6148, %v6176
      %v6185 = vadd.f32 %v6149, %v6176
      %v6186 = vadd.f32 %v6150, %v6176
      %v6187 = vadd.f32 %v6151, %v6176
      %v6188 = vadd.f32 %v6152, %v6176
      %v6189 = vadd.f32 %v6153, %v6176
      %v6190 = vadd.f32 %v6154, %v6176
      %v6191 = vadd.f32 %v6155, %v6176
      %v6192 = vadd.f32 %v6156, %v6176
      %v6193 = vadd.f32 %v6157, %v6176
      %v6194 = vadd.f32 %v6158, %v6176
      %v6195 = vadd.f32 %v6159, %v6176
      %v6196 = vadd.f32 %v6160, %v6176
      %v6197 = vadd.f32 %v6161, %v6176
      %v6198 = vadd.f32 %v6162, %v6176
      %v6199 = vadd.f32 %v6163, %v6176
      %v6200 = vadd.f32 %v6164, %v6176
      %v6201 = vadd.f32 %v6165, %v6176
      %v6202 = vadd.f32 %v6166, %v6176
      %v6203 = vadd.f32 %v6167, %v6176
      %v6204 = vadd.f32 %v6168, %v6176
      %v6205 = vadd.f32 %v6169, %v6176
      %v6206 = vadd.f32 %v6170, %v6176
      %v6207 = vadd.f32 %v6171, %v6176
      %v6208 = vadd.f32 %v6172, %v6176
      %v6209 = vadd.f32 %v6173, %v6176
      %v6210 = vmax.f32 %v6178, 0.0
      %v6211 = vmax.f32 %v6179, 0.0
      %v6212 = vmax.f32 %v6180, 0.0
      %v6213 = vmax.f32 %v6181, 0.0
      %v6214 = vmax.f32 %v6182, 0.0
      %v6215 = vmax.f32 %v6183, 0.0
      %v6216 = vmax.f32 %v6184, 0.0
      %v6217 = vmax.f32 %v6185, 0.0
      %v6218 = vmax.f32 %v6186, 0.0
      %v6219 = vmax.f32 %v6187, 0.0
      %v6220 = vmax.f32 %v6188, 0.0
      %v6221 = vmax.f32 %v6189, 0.0
      %v6222 = vmax.f32 %v6190, 0.0
      %v6223 = vmax.f32 %v6191, 0.0
      %v6224 = vmax.f32 %v6192, 0.0
      %v6225 = vmax.f32 %v6193, 0.0
      %v6226 = vmax.f32 %v6194, 0.0
      %v6227 = vmax.f32 %v6195, 0.0
      %v6228 = vmax.f32 %v6196, 0.0
      %v6229 = vmax.f32 %v6197, 0.0
      %v6230 = vmax.f32 %v6198, 0.0
      %v6231 = vmax.f32 %v6199, 0.0
      %v6232 = vmax.f32 %v6200, 0.0
      %v6233 = vmax.f32 %v6201, 0.0
      %v6234 = vmax.f32 %v6202, 0.0
      %v6235 = vmax.f32 %v6203, 0.0
      %v6236 = vmax.f32 %v6204, 0.0
      %v6237 = vmax.f32 %v6205, 0.0
      %v6238 = vmax.f32 %v6206, 0.0
      %v6239 = vmax.f32 %v6207, 0.0
      %v6240 = vmax.f32 %v6208, 0.0
      %v6241 = vmax.f32 %v6209, 0.0
      %6242 = vst.msk [vmem:[%s224] sm:$0xff] %vm706, %v6210
      %6243 = vst.msk [vmem:[%s224 + $0x8] sm:$0xff] %vm706, %v6211
      %6244 = vst.msk [vmem:[%s224 + $0x10] sm:$0xff] %vm706, %v6212
      %6245 = vst.msk [vmem:[%s224 + $0x18] sm:$0xff] %vm706, %v6213
      %6246 = vst.msk [vmem:[%s224 + $0x20] sm:$0xff] %vm706, %v6214
      %6247 = vst.msk [vmem:[%s224 + $0x28] sm:$0xff] %vm706, %v6215
      %6248 = vst.msk [vmem:[%s224 + $0x30] sm:$0xff] %vm706, %v6216
      %6249 = vst.msk [vmem:[%s224 + $0x38] sm:$0xff] %vm706, %v6217
      %6250 = vst.msk [vmem:[%s224 + $0x40] sm:$0xff] %vm706, %v6218
      %6251 = vst.msk [vmem:[%s224 + $0x48] sm:$0xff] %vm706, %v6219
      %6252 = vst.msk [vmem:[%s224 + $0x50] sm:$0xff] %vm706, %v6220
      %6253 = vst.msk [vmem:[%s224 + $0x58] sm:$0xff] %vm706, %v6221
      %6254 = vst.msk [vmem:[%s224 + $0x60] sm:$0xff] %vm706, %v6222
      %6255 = vst.msk [vmem:[%s224 + $0x68] sm:$0xff] %vm706, %v6223
      %6256 = vst.msk [vmem:[%s224 + $0x70] sm:$0xff] %vm706, %v6224
      %6257 = vst.msk [vmem:[%s224 + $0x78] sm:$0xff] %vm706, %v6225
      %6258 = vst.msk [vmem:[%s224 + $0x80] sm:$0xff] %vm706, %v6226
      %6259 = vst.msk [vmem:[%s224 + $0x88] sm:$0xff] %vm706, %v6227
      %6260 = vst.msk [vmem:[%s224 + $0x90] sm:$0xff] %vm706, %v6228
      %6261 = vst.msk [vmem:[%s224 + $0x98] sm:$0xff] %vm706, %v6229
      %6262 = vst.msk [vmem:[%s224 + $0xa0] sm:$0xff] %vm706, %v6230
      %6263 = vst.msk [vmem:[%s224 + $0xa8] sm:$0xff] %vm706, %v6231
      %6264 = vst.msk [vmem:[%s224 + $0xb0] sm:$0xff] %vm706, %v6232
      %6265 = vst.msk [vmem:[%s224 + $0xb8] sm:$0xff] %vm706, %v6233
      %6266 = vst.msk [vmem:[%s224 + $0xc0] sm:$0xff] %vm706, %v6234
      %6267 = vst.msk [vmem:[%s224 + $0xc8] sm:$0xff] %vm706, %v6235
      %6268 = vst.msk [vmem:[%s224 + $0xd0] sm:$0xff] %vm706, %v6236
      %6269 = vst.msk [vmem:[%s224 + $0xd8] sm:$0xff] %vm706, %v6237
      %6270 = vst.msk [vmem:[%s224 + $0xe0] sm:$0xff] %vm706, %v6238
      %6271 = vst.msk [vmem:[%s224 + $0xe8] sm:$0xff] %vm706, %v6239
      %6272 = vst.msk [vmem:[%s224 + $0xf0] sm:$0xff] %vm706, %v6240
      %6273 = vst.msk [vmem:[%s224 + $0xf8] sm:$0xff] %vm706, %v6241
      %p6274 = scmp.lt.s32.totalorder %s16, 1
      %s6275 = scalar_select %p6274, %s16, 1
      %s6276 = smul.addr %s6275, 32
      %s6277 = smul.addr %s6276, 8
      %s6278 = scalar_lea.vmem %s5, %s6277
      // Predicated region
      $region41: #{tpu_custom_call.1} parent=39 // pred_check
        %p6279 = pneg %p144
      $region42: #{tpu_custom_call.1} parent=39 // pred_check_branch
        %6281 = sbr.rel (%p6279) target = $region44
      $region43: #{tpu_custom_call.1} parent=39 // pred_region
        _
      $region44: #{tpu_custom_call.1} parent=39 // pred_fallthru
        _
    $region40: #{tpu_custom_call.1} parent=5 // pred_fallthru
      _
    %p6282 = scmp.le.s32.totalorder 2, %s11
    // Predicated region
    $region45: #{tpu_custom_call.1} parent=5 // pred_check
      %p6283 = pneg %p6282
    $region46: #{tpu_custom_call.1} parent=5 // pred_check_branch
      %6285 = sbr.rel (%p6283) target = $region48
    $region47: #{tpu_custom_call.1} parent=5 // pred_region
      %s6286 = ssub.s32 %s11, 2
      // Predicated region
      $region49: #{tpu_custom_call.1} parent=47 // pred_check
        %p6287 = pneg %p150
      $region50: #{tpu_custom_call.1} parent=47 // pred_check_branch
        %6289 = sbr.rel (%p6287) target = $region52
      $region51: #{tpu_custom_call.1} parent=47 // pred_region
        %p6290 = scmp.lt.s32.totalorder %s17, 1
        %s6291 = scalar_select %p6290, %s17, 1
        %s6292 = smul.addr %s6291, 32
        %s6293 = smul.addr %s6292, 8
        %s6294 = scalar_lea.vmem %s5, %s6293
      $region52: #{tpu_custom_call.1} parent=47 // pred_fallthru
        _
    $region48: #{tpu_custom_call.1} parent=5 // pred_fallthru
      _
  $region6: #{tpu_custom_call.1} parent=0 // loop_footer
    %s15 = sadd.s32 1, %s11
  $region7: #{tpu_custom_call.1} parent=0 // loop_footer_branch
    %10 = sbr.rel target = $region3
  $region8: #{tpu_custom_call.1} parent=0 // loop_exit
    _

</llo_original>
